<compile_context>
chip_gen: v7x
topology: tpu7x:2x2x1
jax: 0.10.0
libtpu: 0.0.40
codegen_flags: <defaults>
</compile_context>

<pallas_src>
import functools

import jax
import jax.numpy as jnp
from jax import lax
from jax.experimental import pallas as pl
from jax.experimental.pallas import tpu as pltpu


def _make_resblock_kernel(n_taps, inv_n, eps, has_proj):
    """Builds the fused ResBlock kernel body (one batch sample per grid step)."""

    def _conv(h, w_ref, smat_ref, b):
        # h: (C, T) f32, w_ref: (K, C_out, C), smat_ref: (K, T, T), b: (C_out, 1)
        acc = None
        for k in range(n_taps):
            # shift-with-zero-fill along time, expressed as h @ S_k (all MXU)
            hs = jnp.dot(h, smat_ref[k], preferred_element_type=jnp.float32)
            zk = jnp.dot(w_ref[k], hs, preferred_element_type=jnp.float32)
            acc = zk if acc is None else acc + zk
        return acc + b

    def _group_norm(h, gmat, gamma, beta):
        # h: (C, T); gmat[c, c'] = 1 iff channels c and c' share a group.
        gsum = jnp.sum(jnp.dot(gmat, h, preferred_element_type=jnp.float32),
                       axis=1, keepdims=True)                    # (C, 1)
        mean = gsum * inv_n
        cen = h - mean
        gvar = jnp.sum(jnp.dot(gmat, cen * cen,
                               preferred_element_type=jnp.float32),
                       axis=1, keepdims=True) * inv_n            # (C, 1)
        return cen * (lax.rsqrt(gvar + eps) * gamma) + beta

    def kernel(*refs):
        if has_proj:
            (x_ref, w1, b1, g1, be1, w2, b2, g2, be2,
             ws, bs, gs, bes, gmat_ref, smat_ref, o_ref) = refs
        else:
            (x_ref, w1, b1, g1, be1, w2, b2, g2, be2,
             gmat_ref, smat_ref, o_ref) = refs

        x = x_ref[0].astype(jnp.float32)                         # (C_in, T)
        gmat = gmat_ref[...]

        # Left branch, entirely in VMEM / registers.
        h = _conv(x, w1, smat_ref, b1[...])
        h = _group_norm(h, gmat, g1[...], be1[...])
        h = jnp.maximum(h, 0.0)
        h = _conv(h, w2, smat_ref, b2[...])
        h = _group_norm(h, gmat, g2[...], be2[...])

        # Shortcut branch.
        if has_proj:
            s = jnp.dot(ws[...], x, preferred_element_type=jnp.float32) + bs[...]
            s = _group_norm(s, gmat, gs[...], bes[...])
        else:
            s = x

        o_ref[0] = jnp.maximum(h + s, 0.0).astype(o_ref.dtype)

    return kernel


def res_block_forward(x, params, *, chs_grp, kernel_size=5, stride=1,
                      dilation=1, eps=1e-5):
    """Fused ResBlock forward. x: (B, C_in, T) float32 in PyTorch NCW layout."""
    if stride != 1:
        # TODO(synk): stride != 1 (strided conv + strided 1x1 shortcut) not implemented.
        raise NotImplementedError("stride != 1 is not supported")

    B, C_in, T = x.shape
    C_out = params["b1"].shape[0]
    K = kernel_size
    P = dilation * (K - 1) // 2
    has_proj = "ws" in params
    inv_n = 1.0 / float(T * chs_grp)   # GroupNorm count: chs_grp channels * T

    # (K, T, T) shift-with-zero-fill matrices, shared by both K-tap convolutions:
    # smat[k][i, j] = 1 iff i == j + (k*dilation - P). Constant-folded under jit.
    ii = jnp.arange(T, dtype=jnp.int32)[:, None]
    jj = jnp.arange(T, dtype=jnp.int32)[None, :]
    smat = jnp.stack(
        [(ii - jj == (k * dilation - P)).astype(jnp.float32) for k in range(K)])

    names = ["w1", "b1", "g1", "be1", "w2", "b2", "g2", "be2"]
    if has_proj:
        names += ["ws", "bs", "gs", "bes"]
    names += ["gmat"]
    operands = [x] + [params[n] for n in names] + [smat]

    def _const_spec(shape):
        def index_map(b):
            return (0,) * len(shape)
        return pl.BlockSpec(shape, index_map)

    in_specs = [pl.BlockSpec((1, C_in, T), lambda b: (b, 0, 0))]
    in_specs += [_const_spec(a.shape) for a in operands[1:]]

    kern = _make_resblock_kernel(K, inv_n, eps, has_proj)

    # Advisory cost hint for the XLA scheduler.
    conv_flops = 2 * K * T * (C_in * T + C_out * C_in) \
               + 2 * K * T * (C_out * T + C_out * C_out)
    gn_flops = (3 if has_proj else 2) * 4 * C_out * C_out * T
    sc_flops = (2 * C_out * C_in * T) if has_proj else 0
    cost = pl.CostEstimate(
        flops=B * (conv_flops + gn_flops + sc_flops),
        transcendentals=B * (3 if has_proj else 2) * C_out,
        bytes_accessed=4 * (x.size + B * C_out * T
                            + sum(a.size for a in operands[1:])),
    )

    return pl.pallas_call(
        kern,
        out_shape=jax.ShapeDtypeStruct((B, C_out, T), x.dtype),
        grid_spec=pltpu.PrefetchScalarGridSpec(
            num_scalar_prefetch=0,
            grid=(B,),
            in_specs=in_specs,
            out_specs=pl.BlockSpec((1, C_out, T), lambda b: (b, 0, 0)),
        ),
        compiler_params=pltpu.CompilerParams(
            dimension_semantics=("parallel",),
        ),
        cost_estimate=cost,
    )(*operands)


def init_resblock_params(key, in_channels, out_channels, chs_grp, kernel_size=5):
    """Raw parameters in PyTorch layout (Conv1d weight: (C_out, C_in, K))."""
    K = kernel_size
    keys = jax.random.split(key, 12)

    def xavier_uniform(k, shape, fan_in, fan_out, gain):
        limit = gain * (6.0 / (fan_in + fan_out)) ** 0.5
        return jax.random.uniform(k, shape, jnp.float32, -limit, limit)

    gain_relu = 2.0 ** 0.5  # torch.nn.init.calculate_gain('relu')
    raw = {}
    raw["w1"] = xavier_uniform(keys[0], (out_channels, in_channels, K),
                               in_channels * K, out_channels * K, gain_relu)
    b1b = 1.0 / (in_channels * K) ** 0.5
    raw["b1"] = jax.random.uniform(keys[1], (out_channels,), jnp.float32, -b1b, b1b)
    raw["w2"] = xavier_uniform(keys[2], (out_channels, out_channels, K),
                               out_channels * K, out_channels * K, gain_relu)
    b2b = 1.0 / (out_channels * K) ** 0.5
    raw["b2"] = jax.random.uniform(keys[3], (out_channels,), jnp.float32, -b2b, b2b)
    raw["ws"] = xavier_uniform(keys[4], (out_channels, in_channels, 1),
                               in_channels, out_channels, gain_relu)
    bsb = 1.0 / in_channels ** 0.5
    raw["bs"] = jax.random.uniform(keys[5], (out_channels,), jnp.float32, -bsb, bsb)
    # GroupNorm affine params (PyTorch default init is ones/zeros; randomized
    # here so the affine path is actually exercised by the check).
    raw["g1"] = 1.0 + 0.1 * jax.random.normal(keys[6], (out_channels,), jnp.float32)
    raw["g2"] = 1.0 + 0.1 * jax.random.normal(keys[7], (out_channels,), jnp.float32)
    raw["gs"] = 1.0 + 0.1 * jax.random.normal(keys[8], (out_channels,), jnp.float32)
    raw["be1"] = 0.1 * jax.random.normal(keys[9], (out_channels,), jnp.float32)
    raw["be2"] = 0.1 * jax.random.normal(keys[10], (out_channels,), jnp.float32)
    raw["bes"] = 0.1 * jax.random.normal(keys[11], (out_channels,), jnp.float32)
    return raw


def pack_resblock_params(raw, chs_grp):
    """One-time re-layout of the parameters for the kernel (no per-call transposes)."""
    out_channels = raw["b1"].shape[0]
    col = lambda v: v.reshape(-1, 1)                 # per-channel vec -> (C, 1)
    taps = lambda w: jnp.transpose(w, (2, 0, 1))     # (C_out,C_in,K) -> (K,C_out,C_in)
    packed = {
        "w1": taps(raw["w1"]), "b1": col(raw["b1"]),
        "g1": col(raw["g1"]), "be1": col(raw["be1"]),
        "w2": taps(raw["w2"]), "b2": col(raw["b2"]),
        "g2": col(raw["g2"]), "be2": col(raw["be2"]),
    }
    if "ws" in raw:
        packed.update({
            "ws": raw["ws"][:, :, 0], "bs": col(raw["bs"]),
            "gs": col(raw["gs"]), "bes": col(raw["bes"]),
        })
    gid = jnp.arange(out_channels, dtype=jnp.int32) // chs_grp
    packed["gmat"] = (gid[:, None] == gid[None, :]).astype(jnp.float32)
    return packed


def resblock_reference(x, raw, *, chs_grp, kernel_size=5, dilation=1, eps=1e-5):
    """Pure-JAX reference matching the PyTorch ResBlock forward."""
    def conv1d(h, w, b, pad):
        y = lax.conv_general_dilated(
            h, w, window_strides=(1,), padding=[(pad, pad)],
            rhs_dilation=(dilation,), dimension_numbers=("NCH", "OIH", "NCH"),
            precision=lax.Precision.HIGHEST)
        return y + b[None, :, None]

    def group_norm(h, gamma, beta):
        b, c, t = h.shape
        g = c // chs_grp
        hg = h.reshape(b, g, chs_grp * t)
        mean = hg.mean(axis=2, keepdims=True)
        var = ((hg - mean) ** 2).mean(axis=2, keepdims=True)
        hn = ((hg - mean) / jnp.sqrt(var + eps)).reshape(b, c, t)
        return hn * gamma[None, :, None] + beta[None, :, None]

    pad = dilation * (kernel_size - 1) // 2
    h = conv1d(x, raw["w1"], raw["b1"], pad)
    h = group_norm(h, raw["g1"], raw["be1"])
    h = jax.nn.relu(h)
    h = conv1d(h, raw["w2"], raw["b2"], pad)
    h = group_norm(h, raw["g2"], raw["be2"])
    if "ws" in raw:
        s = conv1d(x, raw["ws"], raw["bs"], 0)
        s = group_norm(s, raw["gs"], raw["bes"])
    else:
        s = x
    return jax.nn.relu(h + s)


if __name__ == "__main__":
    key = jax.random.PRNGKey(0)
    k_x, k_p = jax.random.split(key)

    # Small but TPU-friendly shapes: batch=4 keeps the grid >= 2 (v7x megacore),
    # T=128 makes the output lane-dense (no masked stores).
    batch, in_channels, out_channels, T = 4, 32, 64, 128
    chs_grp, kernel_size = 8, 5

    x = jax.random.normal(k_x, (batch, in_channels, T), dtype=jnp.float32)
    raw = init_resblock_params(k_p, in_channels, out_channels, chs_grp, kernel_size)
    params = pack_resblock_params(raw, chs_grp)      # done once, at init time

    fwd = jax.jit(functools.partial(res_block_forward, chs_grp=chs_grp,
                                    kernel_size=kernel_size, dilation=1))
    y = fwd(x, params)
    jax.block_until_ready(y)

    y_ref = resblock_reference(x, raw, chs_grp=chs_grp,
                               kernel_size=kernel_size, dilation=1)
    assert y.shape == (batch, out_channels, T)
    assert bool(jnp.allclose(y, y_ref, atol=2e-2, rtol=2e-2)), (
        "max abs err = %e" % float(jnp.max(jnp.abs(y - y_ref))))
    print("KERNEL_OK")
</pallas_src>

<mosaic_0001>
module attributes {stable_mosaic.version = 11 : i64} {
  func.func @kernel(%arg0: i32, %arg1: memref<1x32x128xf32, #tpu.memory_space<vmem>>, %arg2: memref<5x64x32xf32, #tpu.memory_space<vmem>>, %arg3: memref<64x1xf32, #tpu.memory_space<vmem>>, %arg4: memref<64x1xf32, #tpu.memory_space<vmem>>, %arg5: memref<64x1xf32, #tpu.memory_space<vmem>>, %arg6: memref<5x64x64xf32, #tpu.memory_space<vmem>>, %arg7: memref<64x1xf32, #tpu.memory_space<vmem>>, %arg8: memref<64x1xf32, #tpu.memory_space<vmem>>, %arg9: memref<64x1xf32, #tpu.memory_space<vmem>>, %arg10: memref<64x32xf32, #tpu.memory_space<vmem>>, %arg11: memref<64x1xf32, #tpu.memory_space<vmem>>, %arg12: memref<64x1xf32, #tpu.memory_space<vmem>>, %arg13: memref<64x1xf32, #tpu.memory_space<vmem>>, %arg14: memref<64x64xf32, #tpu.memory_space<vmem>>, %arg15: memref<5x128x128xf32, #tpu.memory_space<vmem>>, %arg16: memref<1x64x128xf32, #tpu.memory_space<vmem>>) attributes {dimension_semantics = [#tpu.dimension_semantics<parallel>], iteration_bounds = array<i64: 4>, scalar_prefetch = 0 : i64, scratch_operands = 0 : i64, tpu.core_type = #tpu.core_type<tc>, window_params = [{transform_indices = @transform_0, window_bounds = array<i64: 1, 32, 128>}, {pipeline_mode = #tpu.pipeline_mode<synchronous>, transform_indices = @transform_1, window_bounds = array<i64: 5, 64, 32>}, {pipeline_mode = #tpu.pipeline_mode<synchronous>, transform_indices = @transform_2, window_bounds = array<i64: 64, 1>}, {pipeline_mode = #tpu.pipeline_mode<synchronous>, transform_indices = @transform_3, window_bounds = array<i64: 64, 1>}, {pipeline_mode = #tpu.pipeline_mode<synchronous>, transform_indices = @transform_4, window_bounds = array<i64: 64, 1>}, {pipeline_mode = #tpu.pipeline_mode<synchronous>, transform_indices = @transform_5, window_bounds = array<i64: 5, 64, 64>}, {pipeline_mode = #tpu.pipeline_mode<synchronous>, transform_indices = @transform_6, window_bounds = array<i64: 64, 1>}, {pipeline_mode = #tpu.pipeline_mode<synchronous>, transform_indices = @transform_7, window_bounds = array<i64: 64, 1>}, {pipeline_mode = #tpu.pipeline_mode<synchronous>, transform_indices = @transform_8, window_bounds = array<i64: 64, 1>}, {pipeline_mode = #tpu.pipeline_mode<synchronous>, transform_indices = @transform_9, window_bounds = array<i64: 64, 32>}, {pipeline_mode = #tpu.pipeline_mode<synchronous>, transform_indices = @transform_10, window_bounds = array<i64: 64, 1>}, {pipeline_mode = #tpu.pipeline_mode<synchronous>, transform_indices = @transform_11, window_bounds = array<i64: 64, 1>}, {pipeline_mode = #tpu.pipeline_mode<synchronous>, transform_indices = @transform_12, window_bounds = array<i64: 64, 1>}, {pipeline_mode = #tpu.pipeline_mode<synchronous>, transform_indices = @transform_13, window_bounds = array<i64: 64, 64>}, {pipeline_mode = #tpu.pipeline_mode<synchronous>, transform_indices = @transform_14, window_bounds = array<i64: 5, 128, 128>}, {transform_indices = @transform_15, window_bounds = array<i64: 1, 64, 128>}]} {
    %c0 = arith.constant 0 : index
    %c0_0 = arith.constant 0 : index
    %c0_1 = arith.constant 0 : index
    %0 = vector.load %arg1[%c0, %c0_0, %c0_1] : memref<1x32x128xf32, #tpu.memory_space<vmem>>, vector<1x32x128xf32>
    %1 = vector.shape_cast %0 : vector<1x32x128xf32> to vector<32x128xf32>
    %c0_2 = arith.constant 0 : index
    %c0_3 = arith.constant 0 : index
    %2 = vector.load %arg14[%c0_2, %c0_3] : memref<64x64xf32, #tpu.memory_space<vmem>>, vector<64x64xf32>
    %c0_4 = arith.constant 0 : index
    %c0_5 = arith.constant 0 : index
    %3 = vector.load %arg3[%c0_4, %c0_5] : memref<64x1xf32, #tpu.memory_space<vmem>>, vector<64x1xf32>
    %c0_6 = arith.constant 0 : index
    %c0_7 = arith.constant 0 : index
    %c0_8 = arith.constant 0 : index
    %4 = vector.load %arg15[%c0_6, %c0_7, %c0_8] : memref<5x128x128xf32, #tpu.memory_space<vmem>>, vector<1x128x128xf32>
    %5 = vector.shape_cast %4 : vector<1x128x128xf32> to vector<128x128xf32>
    %cst = arith.constant dense<0.000000e+00> : vector<32x128xf32>
    %6 = tpu.matmul %1, %5, %cst {dimension_numbers = #tpu.dot_dimension_numbers<[1], [0], [0], [1], [0, 0, 1, 1], [], []>} : vector<32x128xf32>, vector<128x128xf32>, vector<32x128xf32> -> vector<32x128xf32>
    %c0_9 = arith.constant 0 : index
    %c0_10 = arith.constant 0 : index
    %c0_11 = arith.constant 0 : index
    %7 = vector.load %arg2[%c0_9, %c0_10, %c0_11] : memref<5x64x32xf32, #tpu.memory_space<vmem>>, vector<1x64x32xf32>
    %8 = vector.shape_cast %7 : vector<1x64x32xf32> to vector<64x32xf32>
    %cst_12 = arith.constant dense<0.000000e+00> : vector<64x128xf32>
    %9 = tpu.matmul %8, %6, %cst_12 {dimension_numbers = #tpu.dot_dimension_numbers<[1], [0], [0], [1], [0, 0, 1, 1], [], []>} : vector<64x32xf32>, vector<32x128xf32>, vector<64x128xf32> -> vector<64x128xf32>
    %c1 = arith.constant 1 : index
    %c0_13 = arith.constant 0 : index
    %c0_14 = arith.constant 0 : index
    %10 = vector.load %arg15[%c1, %c0_13, %c0_14] : memref<5x128x128xf32, #tpu.memory_space<vmem>>, vector<1x128x128xf32>
    %11 = vector.shape_cast %10 : vector<1x128x128xf32> to vector<128x128xf32>
    %cst_15 = arith.constant dense<0.000000e+00> : vector<32x128xf32>
    %12 = tpu.matmul %1, %11, %cst_15 {dimension_numbers = #tpu.dot_dimension_numbers<[1], [0], [0], [1], [0, 0, 1, 1], [], []>} : vector<32x128xf32>, vector<128x128xf32>, vector<32x128xf32> -> vector<32x128xf32>
    %c1_16 = arith.constant 1 : index
    %c0_17 = arith.constant 0 : index
    %c0_18 = arith.constant 0 : index
    %13 = vector.load %arg2[%c1_16, %c0_17, %c0_18] : memref<5x64x32xf32, #tpu.memory_space<vmem>>, vector<1x64x32xf32>
    %14 = vector.shape_cast %13 : vector<1x64x32xf32> to vector<64x32xf32>
    %cst_19 = arith.constant dense<0.000000e+00> : vector<64x128xf32>
    %15 = tpu.matmul %14, %12, %cst_19 {dimension_numbers = #tpu.dot_dimension_numbers<[1], [0], [0], [1], [0, 0, 1, 1], [], []>} : vector<64x32xf32>, vector<32x128xf32>, vector<64x128xf32> -> vector<64x128xf32>
    %16 = arith.addf %9, %15 : vector<64x128xf32>
    %c2 = arith.constant 2 : index
    %c0_20 = arith.constant 0 : index
    %c0_21 = arith.constant 0 : index
    %17 = vector.load %arg15[%c2, %c0_20, %c0_21] : memref<5x128x128xf32, #tpu.memory_space<vmem>>, vector<1x128x128xf32>
    %18 = vector.shape_cast %17 : vector<1x128x128xf32> to vector<128x128xf32>
    %cst_22 = arith.constant dense<0.000000e+00> : vector<32x128xf32>
    %19 = tpu.matmul %1, %18, %cst_22 {dimension_numbers = #tpu.dot_dimension_numbers<[1], [0], [0], [1], [0, 0, 1, 1], [], []>} : vector<32x128xf32>, vector<128x128xf32>, vector<32x128xf32> -> vector<32x128xf32>
    %c2_23 = arith.constant 2 : index
    %c0_24 = arith.constant 0 : index
    %c0_25 = arith.constant 0 : index
    %20 = vector.load %arg2[%c2_23, %c0_24, %c0_25] : memref<5x64x32xf32, #tpu.memory_space<vmem>>, vector<1x64x32xf32>
    %21 = vector.shape_cast %20 : vector<1x64x32xf32> to vector<64x32xf32>
    %cst_26 = arith.constant dense<0.000000e+00> : vector<64x128xf32>
    %22 = tpu.matmul %21, %19, %cst_26 {dimension_numbers = #tpu.dot_dimension_numbers<[1], [0], [0], [1], [0, 0, 1, 1], [], []>} : vector<64x32xf32>, vector<32x128xf32>, vector<64x128xf32> -> vector<64x128xf32>
    %23 = arith.addf %16, %22 : vector<64x128xf32>
    %c3 = arith.constant 3 : index
    %c0_27 = arith.constant 0 : index
    %c0_28 = arith.constant 0 : index
    %24 = vector.load %arg15[%c3, %c0_27, %c0_28] : memref<5x128x128xf32, #tpu.memory_space<vmem>>, vector<1x128x128xf32>
    %25 = vector.shape_cast %24 : vector<1x128x128xf32> to vector<128x128xf32>
    %cst_29 = arith.constant dense<0.000000e+00> : vector<32x128xf32>
    %26 = tpu.matmul %1, %25, %cst_29 {dimension_numbers = #tpu.dot_dimension_numbers<[1], [0], [0], [1], [0, 0, 1, 1], [], []>} : vector<32x128xf32>, vector<128x128xf32>, vector<32x128xf32> -> vector<32x128xf32>
    %c3_30 = arith.constant 3 : index
    %c0_31 = arith.constant 0 : index
    %c0_32 = arith.constant 0 : index
    %27 = vector.load %arg2[%c3_30, %c0_31, %c0_32] : memref<5x64x32xf32, #tpu.memory_space<vmem>>, vector<1x64x32xf32>
    %28 = vector.shape_cast %27 : vector<1x64x32xf32> to vector<64x32xf32>
    %cst_33 = arith.constant dense<0.000000e+00> : vector<64x128xf32>
    %29 = tpu.matmul %28, %26, %cst_33 {dimension_numbers = #tpu.dot_dimension_numbers<[1], [0], [0], [1], [0, 0, 1, 1], [], []>} : vector<64x32xf32>, vector<32x128xf32>, vector<64x128xf32> -> vector<64x128xf32>
    %30 = arith.addf %23, %29 : vector<64x128xf32>
    %c4 = arith.constant 4 : index
    %c0_34 = arith.constant 0 : index
    %c0_35 = arith.constant 0 : index
    %31 = vector.load %arg15[%c4, %c0_34, %c0_35] : memref<5x128x128xf32, #tpu.memory_space<vmem>>, vector<1x128x128xf32>
    %32 = vector.shape_cast %31 : vector<1x128x128xf32> to vector<128x128xf32>
    %cst_36 = arith.constant dense<0.000000e+00> : vector<32x128xf32>
    %33 = tpu.matmul %1, %32, %cst_36 {dimension_numbers = #tpu.dot_dimension_numbers<[1], [0], [0], [1], [0, 0, 1, 1], [], []>} : vector<32x128xf32>, vector<128x128xf32>, vector<32x128xf32> -> vector<32x128xf32>
    %c4_37 = arith.constant 4 : index
    %c0_38 = arith.constant 0 : index
    %c0_39 = arith.constant 0 : index
    %34 = vector.load %arg2[%c4_37, %c0_38, %c0_39] : memref<5x64x32xf32, #tpu.memory_space<vmem>>, vector<1x64x32xf32>
    %35 = vector.shape_cast %34 : vector<1x64x32xf32> to vector<64x32xf32>
    %cst_40 = arith.constant dense<0.000000e+00> : vector<64x128xf32>
    %36 = tpu.matmul %35, %33, %cst_40 {dimension_numbers = #tpu.dot_dimension_numbers<[1], [0], [0], [1], [0, 0, 1, 1], [], []>} : vector<64x32xf32>, vector<32x128xf32>, vector<64x128xf32> -> vector<64x128xf32>
    %37 = arith.addf %30, %36 : vector<64x128xf32>
    %38 = vector.broadcast %3 : vector<64x1xf32> to vector<64x128xf32>
    %39 = arith.addf %37, %38 : vector<64x128xf32>
    %c0_41 = arith.constant 0 : index
    %c0_42 = arith.constant 0 : index
    %40 = vector.load %arg4[%c0_41, %c0_42] : memref<64x1xf32, #tpu.memory_space<vmem>>, vector<64x1xf32>
    %c0_43 = arith.constant 0 : index
    %c0_44 = arith.constant 0 : index
    %41 = vector.load %arg5[%c0_43, %c0_44] : memref<64x1xf32, #tpu.memory_space<vmem>>, vector<64x1xf32>
    %cst_45 = arith.constant dense<0.000000e+00> : vector<64x128xf32>
    %42 = tpu.matmul %2, %39, %cst_45 {dimension_numbers = #tpu.dot_dimension_numbers<[1], [0], [0], [1], [0, 0, 1, 1], [], []>} : vector<64x64xf32>, vector<64x128xf32>, vector<64x128xf32> -> vector<64x128xf32>
    %cst_46 = arith.constant dense<0.000000e+00> : vector<64xf32>
    %43 = vector.multi_reduction <add>, %42, %cst_46 [1] : vector<64x128xf32> to vector<64xf32>
    %44 = vector.shape_cast %43 : vector<64xf32> to vector<64x1xf32>
    %cst_47 = arith.constant 9.765625E-4 : f32
    %45 = vector.broadcast %cst_47 : f32 to vector<64x1xf32>
    %46 = arith.mulf %44, %45 : vector<64x1xf32>
    %47 = vector.broadcast %46 : vector<64x1xf32> to vector<64x128xf32>
    %48 = arith.subf %39, %47 : vector<64x128xf32>
    %49 = arith.mulf %48, %48 : vector<64x128xf32>
    %cst_48 = arith.constant dense<0.000000e+00> : vector<64x128xf32>
    %50 = tpu.matmul %2, %49, %cst_48 {dimension_numbers = #tpu.dot_dimension_numbers<[1], [0], [0], [1], [0, 0, 1, 1], [], []>} : vector<64x64xf32>, vector<64x128xf32>, vector<64x128xf32> -> vector<64x128xf32>
    %cst_49 = arith.constant dense<0.000000e+00> : vector<64xf32>
    %51 = vector.multi_reduction <add>, %50, %cst_49 [1] : vector<64x128xf32> to vector<64xf32>
    %52 = vector.shape_cast %51 : vector<64xf32> to vector<64x1xf32>
    %cst_50 = arith.constant 9.765625E-4 : f32
    %53 = vector.broadcast %cst_50 : f32 to vector<64x1xf32>
    %54 = arith.mulf %52, %53 : vector<64x1xf32>
    %cst_51 = arith.constant 9.99999974E-6 : f32
    %55 = vector.broadcast %cst_51 : f32 to vector<64x1xf32>
    %56 = arith.addf %54, %55 : vector<64x1xf32>
    %57 = math.rsqrt %56 : vector<64x1xf32>
    %58 = arith.mulf %57, %40 : vector<64x1xf32>
    %59 = vector.broadcast %58 : vector<64x1xf32> to vector<64x128xf32>
    %60 = arith.mulf %48, %59 : vector<64x128xf32>
    %61 = vector.broadcast %41 : vector<64x1xf32> to vector<64x128xf32>
    %62 = arith.addf %60, %61 : vector<64x128xf32>
    %cst_52 = arith.constant 0.000000e+00 : f32
    %63 = vector.broadcast %cst_52 : f32 to vector<64x128xf32>
    %64 = arith.maximumf %62, %63 : vector<64x128xf32>
    %c0_53 = arith.constant 0 : index
    %c0_54 = arith.constant 0 : index
    %65 = vector.load %arg7[%c0_53, %c0_54] : memref<64x1xf32, #tpu.memory_space<vmem>>, vector<64x1xf32>
    %c0_55 = arith.constant 0 : index
    %c0_56 = arith.constant 0 : index
    %c0_57 = arith.constant 0 : index
    %66 = vector.load %arg15[%c0_55, %c0_56, %c0_57] : memref<5x128x128xf32, #tpu.memory_space<vmem>>, vector<1x128x128xf32>
    %67 = vector.shape_cast %66 : vector<1x128x128xf32> to vector<128x128xf32>
    %cst_58 = arith.constant dense<0.000000e+00> : vector<64x128xf32>
    %68 = tpu.matmul %64, %67, %cst_58 {dimension_numbers = #tpu.dot_dimension_numbers<[1], [0], [0], [1], [0, 0, 1, 1], [], []>} : vector<64x128xf32>, vector<128x128xf32>, vector<64x128xf32> -> vector<64x128xf32>
    %c0_59 = arith.constant 0 : index
    %c0_60 = arith.constant 0 : index
    %c0_61 = arith.constant 0 : index
    %69 = vector.load %arg6[%c0_59, %c0_60, %c0_61] : memref<5x64x64xf32, #tpu.memory_space<vmem>>, vector<1x64x64xf32>
    %70 = vector.shape_cast %69 : vector<1x64x64xf32> to vector<64x64xf32>
    %cst_62 = arith.constant dense<0.000000e+00> : vector<64x128xf32>
    %71 = tpu.matmul %70, %68, %cst_62 {dimension_numbers = #tpu.dot_dimension_numbers<[1], [0], [0], [1], [0, 0, 1, 1], [], []>} : vector<64x64xf32>, vector<64x128xf32>, vector<64x128xf32> -> vector<64x128xf32>
    %c1_63 = arith.constant 1 : index
    %c0_64 = arith.constant 0 : index
    %c0_65 = arith.constant 0 : index
    %72 = vector.load %arg15[%c1_63, %c0_64, %c0_65] : memref<5x128x128xf32, #tpu.memory_space<vmem>>, vector<1x128x128xf32>
    %73 = vector.shape_cast %72 : vector<1x128x128xf32> to vector<128x128xf32>
    %cst_66 = arith.constant dense<0.000000e+00> : vector<64x128xf32>
    %74 = tpu.matmul %64, %73, %cst_66 {dimension_numbers = #tpu.dot_dimension_numbers<[1], [0], [0], [1], [0, 0, 1, 1], [], []>} : vector<64x128xf32>, vector<128x128xf32>, vector<64x128xf32> -> vector<64x128xf32>
    %c1_67 = arith.constant 1 : index
    %c0_68 = arith.constant 0 : index
    %c0_69 = arith.constant 0 : index
    %75 = vector.load %arg6[%c1_67, %c0_68, %c0_69] : memref<5x64x64xf32, #tpu.memory_space<vmem>>, vector<1x64x64xf32>
    %76 = vector.shape_cast %75 : vector<1x64x64xf32> to vector<64x64xf32>
    %cst_70 = arith.constant dense<0.000000e+00> : vector<64x128xf32>
    %77 = tpu.matmul %76, %74, %cst_70 {dimension_numbers = #tpu.dot_dimension_numbers<[1], [0], [0], [1], [0, 0, 1, 1], [], []>} : vector<64x64xf32>, vector<64x128xf32>, vector<64x128xf32> -> vector<64x128xf32>
    %78 = arith.addf %71, %77 : vector<64x128xf32>
    %c2_71 = arith.constant 2 : index
    %c0_72 = arith.constant 0 : index
    %c0_73 = arith.constant 0 : index
    %79 = vector.load %arg15[%c2_71, %c0_72, %c0_73] : memref<5x128x128xf32, #tpu.memory_space<vmem>>, vector<1x128x128xf32>
    %80 = vector.shape_cast %79 : vector<1x128x128xf32> to vector<128x128xf32>
    %cst_74 = arith.constant dense<0.000000e+00> : vector<64x128xf32>
    %81 = tpu.matmul %64, %80, %cst_74 {dimension_numbers = #tpu.dot_dimension_numbers<[1], [0], [0], [1], [0, 0, 1, 1], [], []>} : vector<64x128xf32>, vector<128x128xf32>, vector<64x128xf32> -> vector<64x128xf32>
    %c2_75 = arith.constant 2 : index
    %c0_76 = arith.constant 0 : index
    %c0_77 = arith.constant 0 : index
    %82 = vector.load %arg6[%c2_75, %c0_76, %c0_77] : memref<5x64x64xf32, #tpu.memory_space<vmem>>, vector<1x64x64xf32>
    %83 = vector.shape_cast %82 : vector<1x64x64xf32> to vector<64x64xf32>
    %cst_78 = arith.constant dense<0.000000e+00> : vector<64x128xf32>
    %84 = tpu.matmul %83, %81, %cst_78 {dimension_numbers = #tpu.dot_dimension_numbers<[1], [0], [0], [1], [0, 0, 1, 1], [], []>} : vector<64x64xf32>, vector<64x128xf32>, vector<64x128xf32> -> vector<64x128xf32>
    %85 = arith.addf %78, %84 : vector<64x128xf32>
    %c3_79 = arith.constant 3 : index
    %c0_80 = arith.constant 0 : index
    %c0_81 = arith.constant 0 : index
    %86 = vector.load %arg15[%c3_79, %c0_80, %c0_81] : memref<5x128x128xf32, #tpu.memory_space<vmem>>, vector<1x128x128xf32>
    %87 = vector.shape_cast %86 : vector<1x128x128xf32> to vector<128x128xf32>
    %cst_82 = arith.constant dense<0.000000e+00> : vector<64x128xf32>
    %88 = tpu.matmul %64, %87, %cst_82 {dimension_numbers = #tpu.dot_dimension_numbers<[1], [0], [0], [1], [0, 0, 1, 1], [], []>} : vector<64x128xf32>, vector<128x128xf32>, vector<64x128xf32> -> vector<64x128xf32>
    %c3_83 = arith.constant 3 : index
    %c0_84 = arith.constant 0 : index
    %c0_85 = arith.constant 0 : index
    %89 = vector.load %arg6[%c3_83, %c0_84, %c0_85] : memref<5x64x64xf32, #tpu.memory_space<vmem>>, vector<1x64x64xf32>
    %90 = vector.shape_cast %89 : vector<1x64x64xf32> to vector<64x64xf32>
    %cst_86 = arith.constant dense<0.000000e+00> : vector<64x128xf32>
    %91 = tpu.matmul %90, %88, %cst_86 {dimension_numbers = #tpu.dot_dimension_numbers<[1], [0], [0], [1], [0, 0, 1, 1], [], []>} : vector<64x64xf32>, vector<64x128xf32>, vector<64x128xf32> -> vector<64x128xf32>
    %92 = arith.addf %85, %91 : vector<64x128xf32>
    %c4_87 = arith.constant 4 : index
    %c0_88 = arith.constant 0 : index
    %c0_89 = arith.constant 0 : index
    %93 = vector.load %arg15[%c4_87, %c0_88, %c0_89] : memref<5x128x128xf32, #tpu.memory_space<vmem>>, vector<1x128x128xf32>
    %94 = vector.shape_cast %93 : vector<1x128x128xf32> to vector<128x128xf32>
    %cst_90 = arith.constant dense<0.000000e+00> : vector<64x128xf32>
    %95 = tpu.matmul %64, %94, %cst_90 {dimension_numbers = #tpu.dot_dimension_numbers<[1], [0], [0], [1], [0, 0, 1, 1], [], []>} : vector<64x128xf32>, vector<128x128xf32>, vector<64x128xf32> -> vector<64x128xf32>
    %c4_91 = arith.constant 4 : index
    %c0_92 = arith.constant 0 : index
    %c0_93 = arith.constant 0 : index
    %96 = vector.load %arg6[%c4_91, %c0_92, %c0_93] : memref<5x64x64xf32, #tpu.memory_space<vmem>>, vector<1x64x64xf32>
    %97 = vector.shape_cast %96 : vector<1x64x64xf32> to vector<64x64xf32>
    %cst_94 = arith.constant dense<0.000000e+00> : vector<64x128xf32>
    %98 = tpu.matmul %97, %95, %cst_94 {dimension_numbers = #tpu.dot_dimension_numbers<[1], [0], [0], [1], [0, 0, 1, 1], [], []>} : vector<64x64xf32>, vector<64x128xf32>, vector<64x128xf32> -> vector<64x128xf32>
    %99 = arith.addf %92, %98 : vector<64x128xf32>
    %100 = vector.broadcast %65 : vector<64x1xf32> to vector<64x128xf32>
    %101 = arith.addf %99, %100 : vector<64x128xf32>
    %c0_95 = arith.constant 0 : index
    %c0_96 = arith.constant 0 : index
    %102 = vector.load %arg8[%c0_95, %c0_96] : memref<64x1xf32, #tpu.memory_space<vmem>>, vector<64x1xf32>
    %c0_97 = arith.constant 0 : index
    %c0_98 = arith.constant 0 : index
    %103 = vector.load %arg9[%c0_97, %c0_98] : memref<64x1xf32, #tpu.memory_space<vmem>>, vector<64x1xf32>
    %cst_99 = arith.constant dense<0.000000e+00> : vector<64x128xf32>
    %104 = tpu.matmul %2, %101, %cst_99 {dimension_numbers = #tpu.dot_dimension_numbers<[1], [0], [0], [1], [0, 0, 1, 1], [], []>} : vector<64x64xf32>, vector<64x128xf32>, vector<64x128xf32> -> vector<64x128xf32>
    %cst_100 = arith.constant dense<0.000000e+00> : vector<64xf32>
    %105 = vector.multi_reduction <add>, %104, %cst_100 [1] : vector<64x128xf32> to vector<64xf32>
    %106 = vector.shape_cast %105 : vector<64xf32> to vector<64x1xf32>
    %cst_101 = arith.constant 9.765625E-4 : f32
    %107 = vector.broadcast %cst_101 : f32 to vector<64x1xf32>
    %108 = arith.mulf %106, %107 : vector<64x1xf32>
    %109 = vector.broadcast %108 : vector<64x1xf32> to vector<64x128xf32>
    %110 = arith.subf %101, %109 : vector<64x128xf32>
    %111 = arith.mulf %110, %110 : vector<64x128xf32>
    %cst_102 = arith.constant dense<0.000000e+00> : vector<64x128xf32>
    %112 = tpu.matmul %2, %111, %cst_102 {dimension_numbers = #tpu.dot_dimension_numbers<[1], [0], [0], [1], [0, 0, 1, 1], [], []>} : vector<64x64xf32>, vector<64x128xf32>, vector<64x128xf32> -> vector<64x128xf32>
    %cst_103 = arith.constant dense<0.000000e+00> : vector<64xf32>
    %113 = vector.multi_reduction <add>, %112, %cst_103 [1] : vector<64x128xf32> to vector<64xf32>
    %114 = vector.shape_cast %113 : vector<64xf32> to vector<64x1xf32>
    %cst_104 = arith.constant 9.765625E-4 : f32
    %115 = vector.broadcast %cst_104 : f32 to vector<64x1xf32>
    %116 = arith.mulf %114, %115 : vector<64x1xf32>
    %cst_105 = arith.constant 9.99999974E-6 : f32
    %117 = vector.broadcast %cst_105 : f32 to vector<64x1xf32>
    %118 = arith.addf %116, %117 : vector<64x1xf32>
    %119 = math.rsqrt %118 : vector<64x1xf32>
    %120 = arith.mulf %119, %102 : vector<64x1xf32>
    %121 = vector.broadcast %120 : vector<64x1xf32> to vector<64x128xf32>
    %122 = arith.mulf %110, %121 : vector<64x128xf32>
    %123 = vector.broadcast %103 : vector<64x1xf32> to vector<64x128xf32>
    %124 = arith.addf %122, %123 : vector<64x128xf32>
    %c0_106 = arith.constant 0 : index
    %c0_107 = arith.constant 0 : index
    %125 = vector.load %arg10[%c0_106, %c0_107] : memref<64x32xf32, #tpu.memory_space<vmem>>, vector<64x32xf32>
    %cst_108 = arith.constant dense<0.000000e+00> : vector<64x128xf32>
    %126 = tpu.matmul %125, %1, %cst_108 {dimension_numbers = #tpu.dot_dimension_numbers<[1], [0], [0], [1], [0, 0, 1, 1], [], []>} : vector<64x32xf32>, vector<32x128xf32>, vector<64x128xf32> -> vector<64x128xf32>
    %c0_109 = arith.constant 0 : index
    %c0_110 = arith.constant 0 : index
    %127 = vector.load %arg11[%c0_109, %c0_110] : memref<64x1xf32, #tpu.memory_space<vmem>>, vector<64x1xf32>
    %128 = vector.broadcast %127 : vector<64x1xf32> to vector<64x128xf32>
    %129 = arith.addf %126, %128 : vector<64x128xf32>
    %c0_111 = arith.constant 0 : index
    %c0_112 = arith.constant 0 : index
    %130 = vector.load %arg12[%c0_111, %c0_112] : memref<64x1xf32, #tpu.memory_space<vmem>>, vector<64x1xf32>
    %c0_113 = arith.constant 0 : index
    %c0_114 = arith.constant 0 : index
    %131 = vector.load %arg13[%c0_113, %c0_114] : memref<64x1xf32, #tpu.memory_space<vmem>>, vector<64x1xf32>
    %cst_115 = arith.constant dense<0.000000e+00> : vector<64x128xf32>
    %132 = tpu.matmul %2, %129, %cst_115 {dimension_numbers = #tpu.dot_dimension_numbers<[1], [0], [0], [1], [0, 0, 1, 1], [], []>} : vector<64x64xf32>, vector<64x128xf32>, vector<64x128xf32> -> vector<64x128xf32>
    %cst_116 = arith.constant dense<0.000000e+00> : vector<64xf32>
    %133 = vector.multi_reduction <add>, %132, %cst_116 [1] : vector<64x128xf32> to vector<64xf32>
    %134 = vector.shape_cast %133 : vector<64xf32> to vector<64x1xf32>
    %cst_117 = arith.constant 9.765625E-4 : f32
    %135 = vector.broadcast %cst_117 : f32 to vector<64x1xf32>
    %136 = arith.mulf %134, %135 : vector<64x1xf32>
    %137 = vector.broadcast %136 : vector<64x1xf32> to vector<64x128xf32>
    %138 = arith.subf %129, %137 : vector<64x128xf32>
    %139 = arith.mulf %138, %138 : vector<64x128xf32>
    %cst_118 = arith.constant dense<0.000000e+00> : vector<64x128xf32>
    %140 = tpu.matmul %2, %139, %cst_118 {dimension_numbers = #tpu.dot_dimension_numbers<[1], [0], [0], [1], [0, 0, 1, 1], [], []>} : vector<64x64xf32>, vector<64x128xf32>, vector<64x128xf32> -> vector<64x128xf32>
    %cst_119 = arith.constant dense<0.000000e+00> : vector<64xf32>
    %141 = vector.multi_reduction <add>, %140, %cst_119 [1] : vector<64x128xf32> to vector<64xf32>
    %142 = vector.shape_cast %141 : vector<64xf32> to vector<64x1xf32>
    %cst_120 = arith.constant 9.765625E-4 : f32
    %143 = vector.broadcast %cst_120 : f32 to vector<64x1xf32>
    %144 = arith.mulf %142, %143 : vector<64x1xf32>
    %cst_121 = arith.constant 9.99999974E-6 : f32
    %145 = vector.broadcast %cst_121 : f32 to vector<64x1xf32>
    %146 = arith.addf %144, %145 : vector<64x1xf32>
    %147 = math.rsqrt %146 : vector<64x1xf32>
    %148 = arith.mulf %147, %130 : vector<64x1xf32>
    %149 = vector.broadcast %148 : vector<64x1xf32> to vector<64x128xf32>
    %150 = arith.mulf %138, %149 : vector<64x128xf32>
    %151 = vector.broadcast %131 : vector<64x1xf32> to vector<64x128xf32>
    %152 = arith.addf %150, %151 : vector<64x128xf32>
    %153 = arith.addf %124, %152 : vector<64x128xf32>
    %cst_122 = arith.constant 0.000000e+00 : f32
    %154 = vector.broadcast %cst_122 : f32 to vector<64x128xf32>
    %155 = arith.maximumf %153, %154 : vector<64x128xf32>
    %c0_123 = arith.constant 0 : index
    %c0_124 = arith.constant 0 : index
    %c0_125 = arith.constant 0 : index
    %156 = vector.load %arg16[%c0_123, %c0_124, %c0_125] : memref<1x64x128xf32, #tpu.memory_space<vmem>>, vector<1x64x128xf32>
    %157 = vector.shape_cast %156 : vector<1x64x128xf32> to vector<64x128xf32>
    %158 = vector.shape_cast %155 : vector<64x128xf32> to vector<1x64x128xf32>
    tpu.vector_store %arg16[%c0_123, %c0_124, %c0_125], %158 {strides = array<i32>} : memref<1x64x128xf32, #tpu.memory_space<vmem>>, vector<1x64x128xf32>,
    return
  }
  func.func @transform_0(%arg0: i32) -> (i32, i32, i32) {
    %c0_i32 = arith.constant 0 : i32
    %c0_i32_0 = arith.constant 0 : i32
    %c0_i32_1 = arith.constant 0 : i32
    return %arg0, %c0_i32, %c0_i32_0 : i32, i32, i32
  }
  func.func @transform_1(%arg0: i32) -> (i32, i32, i32) {
    %c0_i32 = arith.constant 0 : i32
    %c0_i32_0 = arith.constant 0 : i32
    %c0_i32_1 = arith.constant 0 : i32
    %c0_i32_2 = arith.constant 0 : i32
    return %c0_i32, %c0_i32_0, %c0_i32_1 : i32, i32, i32
  }
  func.func @transform_2(%arg0: i32) -> (i32, i32) {
    %c0_i32 = arith.constant 0 : i32
    %c0_i32_0 = arith.constant 0 : i32
    %c0_i32_1 = arith.constant 0 : i32
    return %c0_i32, %c0_i32_0 : i32, i32
  }
  func.func @transform_3(%arg0: i32) -> (i32, i32) {
    %c0_i32 = arith.constant 0 : i32
    %c0_i32_0 = arith.constant 0 : i32
    %c0_i32_1 = arith.constant 0 : i32
    return %c0_i32, %c0_i32_0 : i32, i32
  }
  func.func @transform_4(%arg0: i32) -> (i32, i32) {
    %c0_i32 = arith.constant 0 : i32
    %c0_i32_0 = arith.constant 0 : i32
    %c0_i32_1 = arith.constant 0 : i32
    return %c0_i32, %c0_i32_0 : i32, i32
  }
  func.func @transform_5(%arg0: i32) -> (i32, i32, i32) {
    %c0_i32 = arith.constant 0 : i32
    %c0_i32_0 = arith.constant 0 : i32
    %c0_i32_1 = arith.constant 0 : i32
    %c0_i32_2 = arith.constant 0 : i32
    return %c0_i32, %c0_i32_0, %c0_i32_1 : i32, i32, i32
  }
  func.func @transform_6(%arg0: i32) -> (i32, i32) {
    %c0_i32 = arith.constant 0 : i32
    %c0_i32_0 = arith.constant 0 : i32
    %c0_i32_1 = arith.constant 0 : i32
    return %c0_i32, %c0_i32_0 : i32, i32
  }
  func.func @transform_7(%arg0: i32) -> (i32, i32) {
    %c0_i32 = arith.constant 0 : i32
    %c0_i32_0 = arith.constant 0 : i32
    %c0_i32_1 = arith.constant 0 : i32
    return %c0_i32, %c0_i32_0 : i32, i32
  }
  func.func @transform_8(%arg0: i32) -> (i32, i32) {
    %c0_i32 = arith.constant 0 : i32
    %c0_i32_0 = arith.constant 0 : i32
    %c0_i32_1 = arith.constant 0 : i32
    return %c0_i32, %c0_i32_0 : i32, i32
  }
  func.func @transform_9(%arg0: i32) -> (i32, i32) {
    %c0_i32 = arith.constant 0 : i32
    %c0_i32_0 = arith.constant 0 : i32
    %c0_i32_1 = arith.constant 0 : i32
    return %c0_i32, %c0_i32_0 : i32, i32
  }
  func.func @transform_10(%arg0: i32) -> (i32, i32) {
    %c0_i32 = arith.constant 0 : i32
    %c0_i32_0 = arith.constant 0 : i32
    %c0_i32_1 = arith.constant 0 : i32
    return %c0_i32, %c0_i32_0 : i32, i32
  }
  func.func @transform_11(%arg0: i32) -> (i32, i32) {
    %c0_i32 = arith.constant 0 : i32
    %c0_i32_0 = arith.constant 0 : i32
    %c0_i32_1 = arith.constant 0 : i32
    return %c0_i32, %c0_i32_0 : i32, i32
  }
  func.func @transform_12(%arg0: i32) -> (i32, i32) {
    %c0_i32 = arith.constant 0 : i32
    %c0_i32_0 = arith.constant 0 : i32
    %c0_i32_1 = arith.constant 0 : i32
    return %c0_i32, %c0_i32_0 : i32, i32
  }
  func.func @transform_13(%arg0: i32) -> (i32, i32) {
    %c0_i32 = arith.constant 0 : i32
    %c0_i32_0 = arith.constant 0 : i32
    %c0_i32_1 = arith.constant 0 : i32
    return %c0_i32, %c0_i32_0 : i32, i32
  }
  func.func @transform_14(%arg0: i32) -> (i32, i32, i32) {
    %c0_i32 = arith.constant 0 : i32
    %c0_i32_0 = arith.constant 0 : i32
    %c0_i32_1 = arith.constant 0 : i32
    %c0_i32_2 = arith.constant 0 : i32
    return %c0_i32, %c0_i32_0, %c0_i32_1 : i32, i32, i32
  }
  func.func @transform_15(%arg0: i32) -> (i32, i32, i32) {
    %c0_i32 = arith.constant 0 : i32
    %c0_i32_0 = arith.constant 0 : i32
    %c0_i32_1 = arith.constant 0 : i32
    return %arg0, %c0_i32, %c0_i32_0 : i32, i32, i32
  }
}

</mosaic_0001>

<llo_original>
// kernel: res_block_forward.1
$region0: #{res_block_forward.1}
  #allocation0 [shape = 'u32[]', space=smem, size = 0x4, offset = 0x4, fixed_abs, tag = 'smem constant byte address 0x4 - core index']
  #allocation1 [shape = 'u32[144,128]{1,0:T(1,128)}', space=vmem, size = 0x12000, scoped, tag = 'internal scratch']
  %s0 = inlined_call_operand.vmem [shape: f32[4,32,128], index: 0, kind: input, shape index: {}]
  %s1 = inlined_call_operand.vmem [shape: f32[5,64,32], index: 1, kind: input, shape index: {}]
  %s2 = inlined_call_operand.vmem [shape: f32[64,1], index: 2, kind: input, shape index: {}]
  %s3 = inlined_call_operand.vmem [shape: f32[64,1], index: 3, kind: input, shape index: {}]
  %s4 = inlined_call_operand.vmem [shape: f32[64,1], index: 4, kind: input, shape index: {}]
  %s5 = inlined_call_operand.vmem [shape: f32[5,64,64], index: 5, kind: input, shape index: {}]
  %s6 = inlined_call_operand.vmem [shape: f32[64,1], index: 6, kind: input, shape index: {}]
  %s7 = inlined_call_operand.vmem [shape: f32[64,1], index: 7, kind: input, shape index: {}]
  %s8 = inlined_call_operand.vmem [shape: f32[64,1], index: 8, kind: input, shape index: {}]
  %s9 = inlined_call_operand.vmem [shape: f32[64,32], index: 9, kind: input, shape index: {}]
  %s10 = inlined_call_operand.vmem [shape: f32[64,1], index: 10, kind: input, shape index: {}]
  %s11 = inlined_call_operand.vmem [shape: f32[64,1], index: 11, kind: input, shape index: {}]
  %s12 = inlined_call_operand.vmem [shape: f32[64,1], index: 12, kind: input, shape index: {}]
  %s13 = inlined_call_operand.vmem [shape: f32[64,64], index: 13, kind: input, shape index: {}]
  %s14 = inlined_call_operand.vmem [shape: f32[5,128,128], index: 14, kind: input, shape index: {}]
  %s15 = inlined_call_operand.hbm [shape: f32[4,64,128], index: 15, kind: output, shape index: {}]
  %s16 = sld [smem:[#allocation0]]
  $region93: #{res_block_forward.1} parent=0
    _
  %s18 = ssub.s32 1, %s16
  %s19 = scalar_select 0, %s18, %s16
  $region1: #{res_block_forward.1} parent=0
    #allocation2 [shape = 'u8[65536]{0}', space=vmem, size = 0x10000, scoped, tag = 'output window, operand 0']
    #allocation3 [shape = 's32[2]{0}', space=sflag, size = 0x8, scoped, tag = 'scoped memory for res_block_forward.1']
    %20 = vsyncpa [#allocation3], 0
    %s21 = scalar_lea.sflag [#allocation3], 1
    %22 = vsyncpa %s21, 0
    loop: start=0, step=1, limit=6
    $region2: #{res_block_forward.1} parent=1 // loop_pre_header
      _
    $region3: #{res_block_forward.1} parent=1 // loop_header
      %s24 = sphi 0, %s28
      %p25 = scmp.ge.s32.totalorder %s24, 6
      %s34 = sphi 0, %s36
      %s37 = sphi 0, %s34
      %s38 = sphi 0, %s37
      %s54 = sphi 0, %s38
      %s58 = sphi 0, %s58
      %s60 = sphi 0, %s58
      %s61 = sphi 0, %s60
      %s75 = sphi 0, %s61
      %s79 = sphi 0, %s79
      %s81 = sphi 0, %s79
      %s82 = sphi 0, %s81
      %s96 = sphi 0, %s82
      %s100 = sphi 0, %s100
      %s102 = sphi 0, %s100
      %s103 = sphi 0, %s102
      %s117 = sphi 0, %s103
      %s121 = sphi 0, %s121
      %s123 = sphi 0, %s121
      %s124 = sphi 0, %s123
      %s138 = sphi 0, %s124
      %s142 = sphi 0, %s142
      %s144 = sphi 0, %s142
      %s145 = sphi 0, %s144
      %s159 = sphi 0, %s145
      %s163 = sphi 0, %s163
      %s165 = sphi 0, %s163
      %s166 = sphi 0, %s165
      %s180 = sphi 0, %s166
      %s184 = sphi 0, %s184
      %s186 = sphi 0, %s184
      %s187 = sphi 0, %s186
      %s201 = sphi 0, %s187
      %s205 = sphi 0, %s205
      %s207 = sphi 0, %s205
      %s208 = sphi 0, %s207
      %s222 = sphi 0, %s208
      %s226 = sphi 0, %s226
      %s228 = sphi 0, %s226
      %s229 = sphi 0, %s228
      %s243 = sphi 0, %s229
      %s247 = sphi 0, %s247
      %s249 = sphi 0, %s247
      %s250 = sphi 0, %s249
      %s264 = sphi 0, %s250
      %s268 = sphi 0, %s268
      %s270 = sphi 0, %s268
      %s271 = sphi 0, %s270
      %s285 = sphi 0, %s271
      %s289 = sphi 0, %s289
      %s291 = sphi 0, %s289
      %s292 = sphi 0, %s291
      %s306 = sphi 0, %s292
      %s310 = sphi 0, %s310
      %s312 = sphi 0, %s310
      %s313 = sphi 0, %s312
      %s327 = sphi 0, %s313
      %s331 = sphi 0, %s331
      %s333 = sphi 0, %s331
      %s334 = sphi 0, %s333
      %s348 = sphi 0, %s334
      %s354 = sphi 0, %s356
      %s357 = sphi 0, %s354
      %s358 = sphi 0, %s357
      %s374 = sphi 0, %s358
    $region4: #{res_block_forward.1} parent=1 // loop_header_branch
      %27 = sbr.rel (%p25) target = $region8
    $region5: #{res_block_forward.1} parent=1 // loop_body
      %s29 = ssub.s32 %s24, 1
      %s30 = ssub.s32 %s24, 2
      %s31 = sadd.s32 %s24, 1
      %s32 = ssub.s32 %s24, %s31
      %p33 = scmp.eq.s32.totalorder %s32, 0
      %s35 = sadd.s32 %s34, 1
      %s36 = scalar_select %p33, %s34, %s35
      %p39 = pneg %p33
      %p40 = scmp.eq.s32.totalorder %s24, 3
      %p41 = por %p39, %p40
      %p42 = scmp.ne.s32.totalorder %s34, %s37
      %p43 = scmp.eq.s32.totalorder %s24, 0
      %p44 = por %p42, %p43
      %p45 = scmp.ne.s32.totalorder %s34, %s37
      %p46 = scmp.eq.s32.totalorder %s29, 3
      %p47 = por %p45, %p46
      %p48 = scmp.ne.s32.totalorder %s37, %s38
      %p49 = scmp.eq.s32.totalorder %s29, 0
      %p50 = por %p48, %p49
      %p51 = scmp.ne.s32.totalorder %s37, %s38
      %p52 = scmp.eq.s32.totalorder %s30, 3
      %p53 = por %p51, %p52
      %p55 = scmp.ne.s32.totalorder %s38, %s54
      %p56 = scmp.eq.s32.totalorder %s30, 0
      %p57 = por %p55, %p56
      %s59 = sadd.s32 %s58, 1
      %p62 = scmp.eq.s32.totalorder %s24, 3
      %p63 = scmp.ne.s32.totalorder %s58, %s60
      %p64 = scmp.eq.s32.totalorder %s24, 0
      %p65 = por %p63, %p64
      %p66 = scmp.ne.s32.totalorder %s58, %s60
      %p67 = scmp.eq.s32.totalorder %s29, 3
      %p68 = por %p66, %p67
      %p69 = scmp.ne.s32.totalorder %s60, %s61
      %p70 = scmp.eq.s32.totalorder %s29, 0
      %p71 = por %p69, %p70
      %p72 = scmp.ne.s32.totalorder %s60, %s61
      %p73 = scmp.eq.s32.totalorder %s30, 3
      %p74 = por %p72, %p73
      %p76 = scmp.ne.s32.totalorder %s61, %s75
      %p77 = scmp.eq.s32.totalorder %s30, 0
      %p78 = por %p76, %p77
      %s80 = sadd.s32 %s79, 1
      %p83 = scmp.eq.s32.totalorder %s24, 3
      %p84 = scmp.ne.s32.totalorder %s79, %s81
      %p85 = scmp.eq.s32.totalorder %s24, 0
      %p86 = por %p84, %p85
      %p87 = scmp.ne.s32.totalorder %s79, %s81
      %p88 = scmp.eq.s32.totalorder %s29, 3
      %p89 = por %p87, %p88
      %p90 = scmp.ne.s32.totalorder %s81, %s82
      %p91 = scmp.eq.s32.totalorder %s29, 0
      %p92 = por %p90, %p91
      %p93 = scmp.ne.s32.totalorder %s81, %s82
      %p94 = scmp.eq.s32.totalorder %s30, 3
      %p95 = por %p93, %p94
      %p97 = scmp.ne.s32.totalorder %s82, %s96
      %p98 = scmp.eq.s32.totalorder %s30, 0
      %p99 = por %p97, %p98
      %s101 = sadd.s32 %s100, 1
      %p104 = scmp.eq.s32.totalorder %s24, 3
      %p105 = scmp.ne.s32.totalorder %s100, %s102
      %p106 = scmp.eq.s32.totalorder %s24, 0
      %p107 = por %p105, %p106
      %p108 = scmp.ne.s32.totalorder %s100, %s102
      %p109 = scmp.eq.s32.totalorder %s29, 3
      %p110 = por %p108, %p109
      %p111 = scmp.ne.s32.totalorder %s102, %s103
      %p112 = scmp.eq.s32.totalorder %s29, 0
      %p113 = por %p111, %p112
      %p114 = scmp.ne.s32.totalorder %s102, %s103
      %p115 = scmp.eq.s32.totalorder %s30, 3
      %p116 = por %p114, %p115
      %p118 = scmp.ne.s32.totalorder %s103, %s117
      %p119 = scmp.eq.s32.totalorder %s30, 0
      %p120 = por %p118, %p119
      %s122 = sadd.s32 %s121, 1
      %p125 = scmp.eq.s32.totalorder %s24, 3
      %p126 = scmp.ne.s32.totalorder %s121, %s123
      %p127 = scmp.eq.s32.totalorder %s24, 0
      %p128 = por %p126, %p127
      %p129 = scmp.ne.s32.totalorder %s121, %s123
      %p130 = scmp.eq.s32.totalorder %s29, 3
      %p131 = por %p129, %p130
      %p132 = scmp.ne.s32.totalorder %s123, %s124
      %p133 = scmp.eq.s32.totalorder %s29, 0
      %p134 = por %p132, %p133
      %p135 = scmp.ne.s32.totalorder %s123, %s124
      %p136 = scmp.eq.s32.totalorder %s30, 3
      %p137 = por %p135, %p136
      %p139 = scmp.ne.s32.totalorder %s124, %s138
      %p140 = scmp.eq.s32.totalorder %s30, 0
      %p141 = por %p139, %p140
      %s143 = sadd.s32 %s142, 1
      %p146 = scmp.eq.s32.totalorder %s24, 3
      %p147 = scmp.ne.s32.totalorder %s142, %s144
      %p148 = scmp.eq.s32.totalorder %s24, 0
      %p149 = por %p147, %p148
      %p150 = scmp.ne.s32.totalorder %s142, %s144
      %p151 = scmp.eq.s32.totalorder %s29, 3
      %p152 = por %p150, %p151
      %p153 = scmp.ne.s32.totalorder %s144, %s145
      %p154 = scmp.eq.s32.totalorder %s29, 0
      %p155 = por %p153, %p154
      %p156 = scmp.ne.s32.totalorder %s144, %s145
      %p157 = scmp.eq.s32.totalorder %s30, 3
      %p158 = por %p156, %p157
      %p160 = scmp.ne.s32.totalorder %s145, %s159
      %p161 = scmp.eq.s32.totalorder %s30, 0
      %p162 = por %p160, %p161
      %s164 = sadd.s32 %s163, 1
      %p167 = scmp.eq.s32.totalorder %s24, 3
      %p168 = scmp.ne.s32.totalorder %s163, %s165
      %p169 = scmp.eq.s32.totalorder %s24, 0
      %p170 = por %p168, %p169
      %p171 = scmp.ne.s32.totalorder %s163, %s165
      %p172 = scmp.eq.s32.totalorder %s29, 3
      %p173 = por %p171, %p172
      %p174 = scmp.ne.s32.totalorder %s165, %s166
      %p175 = scmp.eq.s32.totalorder %s29, 0
      %p176 = por %p174, %p175
      %p177 = scmp.ne.s32.totalorder %s165, %s166
      %p178 = scmp.eq.s32.totalorder %s30, 3
      %p179 = por %p177, %p178
      %p181 = scmp.ne.s32.totalorder %s166, %s180
      %p182 = scmp.eq.s32.totalorder %s30, 0
      %p183 = por %p181, %p182
      %s185 = sadd.s32 %s184, 1
      %p188 = scmp.eq.s32.totalorder %s24, 3
      %p189 = scmp.ne.s32.totalorder %s184, %s186
      %p190 = scmp.eq.s32.totalorder %s24, 0
      %p191 = por %p189, %p190
      %p192 = scmp.ne.s32.totalorder %s184, %s186
      %p193 = scmp.eq.s32.totalorder %s29, 3
      %p194 = por %p192, %p193
      %p195 = scmp.ne.s32.totalorder %s186, %s187
      %p196 = scmp.eq.s32.totalorder %s29, 0
      %p197 = por %p195, %p196
      %p198 = scmp.ne.s32.totalorder %s186, %s187
      %p199 = scmp.eq.s32.totalorder %s30, 3
      %p200 = por %p198, %p199
      %p202 = scmp.ne.s32.totalorder %s187, %s201
      %p203 = scmp.eq.s32.totalorder %s30, 0
      %p204 = por %p202, %p203
      %s206 = sadd.s32 %s205, 1
      %p209 = scmp.eq.s32.totalorder %s24, 3
      %p210 = scmp.ne.s32.totalorder %s205, %s207
      %p211 = scmp.eq.s32.totalorder %s24, 0
      %p212 = por %p210, %p211
      %p213 = scmp.ne.s32.totalorder %s205, %s207
      %p214 = scmp.eq.s32.totalorder %s29, 3
      %p215 = por %p213, %p214
      %p216 = scmp.ne.s32.totalorder %s207, %s208
      %p217 = scmp.eq.s32.totalorder %s29, 0
      %p218 = por %p216, %p217
      %p219 = scmp.ne.s32.totalorder %s207, %s208
      %p220 = scmp.eq.s32.totalorder %s30, 3
      %p221 = por %p219, %p220
      %p223 = scmp.ne.s32.totalorder %s208, %s222
      %p224 = scmp.eq.s32.totalorder %s30, 0
      %p225 = por %p223, %p224
      %s227 = sadd.s32 %s226, 1
      %p230 = scmp.eq.s32.totalorder %s24, 3
      %p231 = scmp.ne.s32.totalorder %s226, %s228
      %p232 = scmp.eq.s32.totalorder %s24, 0
      %p233 = por %p231, %p232
      %p234 = scmp.ne.s32.totalorder %s226, %s228
      %p235 = scmp.eq.s32.totalorder %s29, 3
      %p236 = por %p234, %p235
      %p237 = scmp.ne.s32.totalorder %s228, %s229
      %p238 = scmp.eq.s32.totalorder %s29, 0
      %p239 = por %p237, %p238
      %p240 = scmp.ne.s32.totalorder %s228, %s229
      %p241 = scmp.eq.s32.totalorder %s30, 3
      %p242 = por %p240, %p241
      %p244 = scmp.ne.s32.totalorder %s229, %s243
      %p245 = scmp.eq.s32.totalorder %s30, 0
      %p246 = por %p244, %p245
      %s248 = sadd.s32 %s247, 1
      %p251 = scmp.eq.s32.totalorder %s24, 3
      %p252 = scmp.ne.s32.totalorder %s247, %s249
      %p253 = scmp.eq.s32.totalorder %s24, 0
      %p254 = por %p252, %p253
      %p255 = scmp.ne.s32.totalorder %s247, %s249
      %p256 = scmp.eq.s32.totalorder %s29, 3
      %p257 = por %p255, %p256
      %p258 = scmp.ne.s32.totalorder %s249, %s250
      %p259 = scmp.eq.s32.totalorder %s29, 0
      %p260 = por %p258, %p259
      %p261 = scmp.ne.s32.totalorder %s249, %s250
      %p262 = scmp.eq.s32.totalorder %s30, 3
      %p263 = por %p261, %p262
      %p265 = scmp.ne.s32.totalorder %s250, %s264
      %p266 = scmp.eq.s32.totalorder %s30, 0
      %p267 = por %p265, %p266
      %s269 = sadd.s32 %s268, 1
      %p272 = scmp.eq.s32.totalorder %s24, 3
      %p273 = scmp.ne.s32.totalorder %s268, %s270
      %p274 = scmp.eq.s32.totalorder %s24, 0
      %p275 = por %p273, %p274
      %p276 = scmp.ne.s32.totalorder %s268, %s270
      %p277 = scmp.eq.s32.totalorder %s29, 3
      %p278 = por %p276, %p277
      %p279 = scmp.ne.s32.totalorder %s270, %s271
      %p280 = scmp.eq.s32.totalorder %s29, 0
      %p281 = por %p279, %p280
      %p282 = scmp.ne.s32.totalorder %s270, %s271
      %p283 = scmp.eq.s32.totalorder %s30, 3
      %p284 = por %p282, %p283
      %p286 = scmp.ne.s32.totalorder %s271, %s285
      %p287 = scmp.eq.s32.totalorder %s30, 0
      %p288 = por %p286, %p287
      %s290 = sadd.s32 %s289, 1
      %p293 = scmp.eq.s32.totalorder %s24, 3
      %p294 = scmp.ne.s32.totalorder %s289, %s291
      %p295 = scmp.eq.s32.totalorder %s24, 0
      %p296 = por %p294, %p295
      %p297 = scmp.ne.s32.totalorder %s289, %s291
      %p298 = scmp.eq.s32.totalorder %s29, 3
      %p299 = por %p297, %p298
      %p300 = scmp.ne.s32.totalorder %s291, %s292
      %p301 = scmp.eq.s32.totalorder %s29, 0
      %p302 = por %p300, %p301
      %p303 = scmp.ne.s32.totalorder %s291, %s292
      %p304 = scmp.eq.s32.totalorder %s30, 3
      %p305 = por %p303, %p304
      %p307 = scmp.ne.s32.totalorder %s292, %s306
      %p308 = scmp.eq.s32.totalorder %s30, 0
      %p309 = por %p307, %p308
      %s311 = sadd.s32 %s310, 1
      %p314 = scmp.eq.s32.totalorder %s24, 3
      %p315 = scmp.ne.s32.totalorder %s310, %s312
      %p316 = scmp.eq.s32.totalorder %s24, 0
      %p317 = por %p315, %p316
      %p318 = scmp.ne.s32.totalorder %s310, %s312
      %p319 = scmp.eq.s32.totalorder %s29, 3
      %p320 = por %p318, %p319
      %p321 = scmp.ne.s32.totalorder %s312, %s313
      %p322 = scmp.eq.s32.totalorder %s29, 0
      %p323 = por %p321, %p322
      %p324 = scmp.ne.s32.totalorder %s312, %s313
      %p325 = scmp.eq.s32.totalorder %s30, 3
      %p326 = por %p324, %p325
      %p328 = scmp.ne.s32.totalorder %s313, %s327
      %p329 = scmp.eq.s32.totalorder %s30, 0
      %p330 = por %p328, %p329
      %s332 = sadd.s32 %s331, 1
      %p335 = scmp.eq.s32.totalorder %s24, 3
      %p336 = scmp.ne.s32.totalorder %s331, %s333
      %p337 = scmp.eq.s32.totalorder %s24, 0
      %p338 = por %p336, %p337
      %p339 = scmp.ne.s32.totalorder %s331, %s333
      %p340 = scmp.eq.s32.totalorder %s29, 3
      %p341 = por %p339, %p340
      %p342 = scmp.ne.s32.totalorder %s333, %s334
      %p343 = scmp.eq.s32.totalorder %s29, 0
      %p344 = por %p342, %p343
      %p345 = scmp.ne.s32.totalorder %s333, %s334
      %p346 = scmp.eq.s32.totalorder %s30, 3
      %p347 = por %p345, %p346
      %p349 = scmp.ne.s32.totalorder %s334, %s348
      %p350 = scmp.eq.s32.totalorder %s30, 0
      %p351 = por %p349, %p350
      %s352 = ssub.s32 %s24, %s31
      %p353 = scmp.eq.s32.totalorder %s352, 0
      %s355 = sadd.s32 %s354, 1
      %s356 = scalar_select %p353, %s354, %s355
      %p359 = pneg %p353
      %p360 = scmp.eq.s32.totalorder %s24, 3
      %p361 = por %p359, %p360
      %p362 = scmp.ne.s32.totalorder %s354, %s357
      %p363 = scmp.eq.s32.totalorder %s24, 0
      %p364 = por %p362, %p363
      %p365 = scmp.ne.s32.totalorder %s354, %s357
      %p366 = scmp.eq.s32.totalorder %s29, 3
      %p367 = por %p365, %p366
      %p368 = scmp.ne.s32.totalorder %s357, %s358
      %p369 = scmp.eq.s32.totalorder %s29, 0
      %p370 = por %p368, %p369
      %p371 = scmp.ne.s32.totalorder %s357, %s358
      %p372 = scmp.eq.s32.totalorder %s30, 3
      %p373 = por %p371, %p372
      %p375 = scmp.ne.s32.totalorder %s358, %s374
      %p376 = scmp.eq.s32.totalorder %s30, 0
      %p377 = por %p375, %p376
      %p378 = scmp.le.s32.totalorder 1, %s24
      %p379 = scmp.lt.s32.totalorder %s24, 5
      %p380 = pnand %p378, %p379
      %p381 = pneg %p380
      // Predicated region
      $region9: #{res_block_forward.1} parent=5 // pred_check
        _
      $region10: #{res_block_forward.1} parent=5 // pred_check_branch
        %383 = sbr.rel (%p380) target = $region12
      $region11: #{res_block_forward.1} parent=5 // pred_region
        %s384 = ssub.s32 %s24, 1
        // Predicated region
        $region13: #{res_block_forward.1} parent=11 // pred_check
          %p385 = pneg %p71
        $region14: #{res_block_forward.1} parent=11 // pred_check_branch
          %387 = sbr.rel (%p385) target = $region16
        $region15: #{res_block_forward.1} parent=11 // pred_region
          _
        $region16: #{res_block_forward.1} parent=11 // pred_fallthru
          _
        // Predicated region
        $region17: #{res_block_forward.1} parent=11 // pred_check
          %p388 = pneg %p92
        $region18: #{res_block_forward.1} parent=11 // pred_check_branch
          %390 = sbr.rel (%p388) target = $region20
        $region19: #{res_block_forward.1} parent=11 // pred_region
          _
        $region20: #{res_block_forward.1} parent=11 // pred_fallthru
          _
        // Predicated region
        $region21: #{res_block_forward.1} parent=11 // pred_check
          %p391 = pneg %p113
        $region22: #{res_block_forward.1} parent=11 // pred_check_branch
          %393 = sbr.rel (%p391) target = $region24
        $region23: #{res_block_forward.1} parent=11 // pred_region
          _
        $region24: #{res_block_forward.1} parent=11 // pred_fallthru
          _
        // Predicated region
        $region25: #{res_block_forward.1} parent=11 // pred_check
          %p394 = pneg %p134
        $region26: #{res_block_forward.1} parent=11 // pred_check_branch
          %396 = sbr.rel (%p394) target = $region28
        $region27: #{res_block_forward.1} parent=11 // pred_region
          _
        $region28: #{res_block_forward.1} parent=11 // pred_fallthru
          _
        // Predicated region
        $region29: #{res_block_forward.1} parent=11 // pred_check
          %p397 = pneg %p155
        $region30: #{res_block_forward.1} parent=11 // pred_check_branch
          %399 = sbr.rel (%p397) target = $region32
        $region31: #{res_block_forward.1} parent=11 // pred_region
          _
        $region32: #{res_block_forward.1} parent=11 // pred_fallthru
          _
        // Predicated region
        $region33: #{res_block_forward.1} parent=11 // pred_check
          %p400 = pneg %p176
        $region34: #{res_block_forward.1} parent=11 // pred_check_branch
          %402 = sbr.rel (%p400) target = $region36
        $region35: #{res_block_forward.1} parent=11 // pred_region
          _
        $region36: #{res_block_forward.1} parent=11 // pred_fallthru
          _
        // Predicated region
        $region37: #{res_block_forward.1} parent=11 // pred_check
          %p403 = pneg %p197
        $region38: #{res_block_forward.1} parent=11 // pred_check_branch
          %405 = sbr.rel (%p403) target = $region40
        $region39: #{res_block_forward.1} parent=11 // pred_region
          _
        $region40: #{res_block_forward.1} parent=11 // pred_fallthru
          _
        // Predicated region
        $region41: #{res_block_forward.1} parent=11 // pred_check
          %p406 = pneg %p218
        $region42: #{res_block_forward.1} parent=11 // pred_check_branch
          %408 = sbr.rel (%p406) target = $region44
        $region43: #{res_block_forward.1} parent=11 // pred_region
          _
        $region44: #{res_block_forward.1} parent=11 // pred_fallthru
          _
        // Predicated region
        $region45: #{res_block_forward.1} parent=11 // pred_check
          %p409 = pneg %p239
        $region46: #{res_block_forward.1} parent=11 // pred_check_branch
          %411 = sbr.rel (%p409) target = $region48
        $region47: #{res_block_forward.1} parent=11 // pred_region
          _
        $region48: #{res_block_forward.1} parent=11 // pred_fallthru
          _
        // Predicated region
        $region49: #{res_block_forward.1} parent=11 // pred_check
          %p412 = pneg %p260
        $region50: #{res_block_forward.1} parent=11 // pred_check_branch
          %414 = sbr.rel (%p412) target = $region52
        $region51: #{res_block_forward.1} parent=11 // pred_region
          _
        $region52: #{res_block_forward.1} parent=11 // pred_fallthru
          _
        // Predicated region
        $region53: #{res_block_forward.1} parent=11 // pred_check
          %p415 = pneg %p281
        $region54: #{res_block_forward.1} parent=11 // pred_check_branch
          %417 = sbr.rel (%p415) target = $region56
        $region55: #{res_block_forward.1} parent=11 // pred_region
          _
        $region56: #{res_block_forward.1} parent=11 // pred_fallthru
          _
        // Predicated region
        $region57: #{res_block_forward.1} parent=11 // pred_check
          %p418 = pneg %p302
        $region58: #{res_block_forward.1} parent=11 // pred_check_branch
          %420 = sbr.rel (%p418) target = $region60
        $region59: #{res_block_forward.1} parent=11 // pred_region
          _
        $region60: #{res_block_forward.1} parent=11 // pred_fallthru
          _
        // Predicated region
        $region61: #{res_block_forward.1} parent=11 // pred_check
          %p421 = pneg %p323
        $region62: #{res_block_forward.1} parent=11 // pred_check_branch
          %423 = sbr.rel (%p421) target = $region64
        $region63: #{res_block_forward.1} parent=11 // pred_region
          _
        $region64: #{res_block_forward.1} parent=11 // pred_fallthru
          _
        // Predicated region
        $region65: #{res_block_forward.1} parent=11 // pred_check
          %p424 = pneg %p344
        $region66: #{res_block_forward.1} parent=11 // pred_check_branch
          %426 = sbr.rel (%p424) target = $region68
        $region67: #{res_block_forward.1} parent=11 // pred_region
          _
        $region68: #{res_block_forward.1} parent=11 // pred_fallthru
          _
      $region12: #{res_block_forward.1} parent=5 // pred_fallthru
        _
      %p427 = scmp.lt.s32.totalorder %s24, 4
      // Predicated region
      $region69: #{res_block_forward.1} parent=5 // pred_check
        %p428 = pneg %p427
      $region70: #{res_block_forward.1} parent=5 // pred_check_branch
        %430 = sbr.rel (%p428) target = $region72
      $region71: #{res_block_forward.1} parent=5 // pred_region
        // Predicated region
        $region73: #{res_block_forward.1} parent=71 // pred_check
          %p431 = pneg %p44
        $region74: #{res_block_forward.1} parent=71 // pred_check_branch
          %433 = sbr.rel (%p431) target = $region76
        $region75: #{res_block_forward.1} parent=71 // pred_region
          %p434 = scmp.lt.s32.totalorder %s24, 3
          %s435 = scalar_select %p434, %s24, 3
          %s436 = smul.addr %s435, 4
          %s437 = smul.addr %s436, 8
          %s438 = scalar_lea.vmem %s0, %s437
        $region76: #{res_block_forward.1} parent=71 // pred_fallthru
          _
      $region72: #{res_block_forward.1} parent=5 // pred_fallthru
        _
      %p439 = scmp.le.s32.totalorder 1, %s24
      %p440 = scmp.lt.s32.totalorder %s24, 5
      %p441 = pnand %p439, %p440
      %p442 = pneg %p441
      // Predicated region
      $region77: #{res_block_forward.1} parent=5 // pred_check
        _
      $region78: #{res_block_forward.1} parent=5 // pred_check_branch
        %444 = sbr.rel (%p441) target = $region80
      $region79: #{res_block_forward.1} parent=5 // pred_region
        %s445 = ssub.s32 %s24, 1
        %p446 = scmp.lt.s32.totalorder %s29, 3
        %s447 = scalar_select %p446, %s29, 3
        %s448 = smul.addr %s447, 4
        %s449 = smul.addr %s448, 8
        %s450 = scalar_lea.vmem %s0, %s449
        %p451 = pneg %p50
        %p452 = pneg %p47
        %p453 = pneg %p71
        %p454 = pneg %p68
        %p455 = pneg %p92
        %p456 = pneg %p89
        %p457 = pneg %p113
        %p458 = pneg %p110
        %p459 = pneg %p134
        %p460 = pneg %p131
        %p461 = pneg %p155
        %p462 = pneg %p152
        %p463 = pneg %p176
        %p464 = pneg %p173
        %p465 = pneg %p197
        %p466 = pneg %p194
        %p467 = pneg %p218
        %p468 = pneg %p215
        %p469 = pneg %p239
        %p470 = pneg %p236
        %p471 = pneg %p260
        %p472 = pneg %p257
        %p473 = pneg %p281
        %p474 = pneg %p278
        %p475 = pneg %p302
        %p476 = pneg %p299
        %p477 = pneg %p323
        %p478 = pneg %p320
        %p479 = pneg %p344
        %p480 = pneg %p341
        %p481 = pneg %p370
        %p482 = pneg %p367
        %s483 = sand.u32 %s357, 1
        %s484 = scalar_lea.sflag [#allocation3], %s483
        %s485 = sand.u32 %s357, 1
        %s486 = smul.addr %s485, 64
        %s487 = scalar_lea.vmem [#allocation2], %s486
        %p488 = scmp.lt.s32.totalorder %s29, 3
        %s489 = scalar_select %p488, %s29, 3
        %s490 = smul.addr %s489, 4
        %s491 = smul.addr %s490, 8
        %s492 = scalar_lea.vmem %s0, %s491
        %v493 = vld [vmem:[%s492] sm:$0xff]
        %v494 = vld [vmem:[%s492 + $0x8] sm:$0xff]
        %v495 = vld [vmem:[%s492 + $0x10] sm:$0xff]
        %v496 = vld [vmem:[%s492 + $0x18] sm:$0xff]
        %v497 = vld [vmem:[%s13] sm:$0xff]
        %v498 = vld [vmem:[%s13 + $0x8] sm:$0xff]
        %v499 = vld [vmem:[%s13 + $0x10] sm:$0xff]
        %v500 = vld [vmem:[%s13 + $0x18] sm:$0xff]
        %v501 = vld [vmem:[%s13 + $0x20] sm:$0xff]
        %v502 = vld [vmem:[%s13 + $0x28] sm:$0xff]
        %v503 = vld [vmem:[%s13 + $0x30] sm:$0xff]
        %v504 = vld [vmem:[%s13 + $0x38] sm:$0xff]
        %v505 = vld [vmem:[%s2] sm:$0xff]
        %v506 = vld [vmem:[%s2 + $0x8] sm:$0xff]
        %v507 = vld [vmem:[%s2 + $0x10] sm:$0xff]
        %v508 = vld [vmem:[%s2 + $0x18] sm:$0xff]
        %v509 = vld [vmem:[%s2 + $0x20] sm:$0xff]
        %v510 = vld [vmem:[%s2 + $0x28] sm:$0xff]
        %v511 = vld [vmem:[%s2 + $0x30] sm:$0xff]
        %v512 = vld [vmem:[%s2 + $0x38] sm:$0xff]
        %v513 = vld [vmem:[%s14] sm:$0xff]
        %v514 = vld [vmem:[%s14 + $0x8] sm:$0xff]
        %v515 = vld [vmem:[%s14 + $0x10] sm:$0xff]
        %v516 = vld [vmem:[%s14 + $0x18] sm:$0xff]
        %v517 = vld [vmem:[%s14 + $0x20] sm:$0xff]
        %v518 = vld [vmem:[%s14 + $0x28] sm:$0xff]
        %v519 = vld [vmem:[%s14 + $0x30] sm:$0xff]
        %v520 = vld [vmem:[%s14 + $0x38] sm:$0xff]
        %v521 = vld [vmem:[%s14 + $0x40] sm:$0xff]
        %v522 = vld [vmem:[%s14 + $0x48] sm:$0xff]
        %v523 = vld [vmem:[%s14 + $0x50] sm:$0xff]
        %v524 = vld [vmem:[%s14 + $0x58] sm:$0xff]
        %v525 = vld [vmem:[%s14 + $0x60] sm:$0xff]
        %v526 = vld [vmem:[%s14 + $0x68] sm:$0xff]
        %v527 = vld [vmem:[%s14 + $0x70] sm:$0xff]
        %v528 = vld [vmem:[%s14 + $0x78] sm:$0xff]
        %529 = vmatprep.subr.mxu0 0.0
        %530 = vmatpush1.msra.mxu0 %v513
        %531 = vmatprep.subr.mxu0 0.0
        %532 = vmatpush1.msra.mxu0 %v514
        %533 = vmatprep.subr.mxu0 0.0
        %534 = vmatpush1.msra.mxu0 %v515
        %535 = vmatprep.subr.mxu0 0.0
        %536 = vmatpush1.msra.mxu0 %v516
        %537 = vmatprep.subr.mxu0 0.0
        %538 = vmatpush1.msra.mxu0 %v517
        %539 = vmatprep.subr.mxu0 0.0
        %540 = vmatpush1.msra.mxu0 %v518
        %541 = vmatprep.subr.mxu0 0.0
        %542 = vmatpush1.msra.mxu0 %v519
        %543 = vmatprep.subr.mxu0 0.0
        %544 = vmatpush1.msra.mxu0 %v520
        %545 = vmatprep.subr.mxu0 0.0
        %546 = vmatpush1.msra.mxu0 %v521
        %547 = vmatprep.subr.mxu0 0.0
        %548 = vmatpush1.msra.mxu0 %v522
        %549 = vmatprep.subr.mxu0 0.0
        %550 = vmatpush1.msra.mxu0 %v523
        %551 = vmatprep.subr.mxu0 0.0
        %552 = vmatpush1.msra.mxu0 %v524
        %553 = vmatprep.subr.mxu0 0.0
        %554 = vmatpush1.msra.mxu0 %v525
        %555 = vmatprep.subr.mxu0 0.0
        %556 = vmatpush1.msra.mxu0 %v526
        %557 = vmatprep.subr.mxu0 0.0
        %558 = vmatpush1.msra.mxu0 %v527
        %559 = vmatprep.subr.mxu0 0.0
        %560 = vmatpush1.msra.mxu0 %v528
        %561 = vmatprep.subr.mxu0 0.0
        %562 = vmatpush1.msra.mxu0 0.0
        %563 = vmatprep.subr.mxu0 0.0
        %564 = vmatpush1.msra.mxu0 0.0
        %565 = vmatprep.subr.mxu0 0.0
        %566 = vmatpush1.msra.mxu0 0.0
        %567 = vmatprep.subr.mxu0 0.0
        %568 = vmatpush1.msra.mxu0 0.0
        %569 = vmatprep.subr.mxu0 0.0
        %570 = vmatpush1.msra.mxu0 0.0
        %571 = vmatprep.subr.mxu0 0.0
        %572 = vmatpush1.msra.mxu0 0.0
        %573 = vmatprep.subr.mxu0 0.0
        %574 = vmatpush1.msra.mxu0 0.0
        %575 = vmatprep.subr.mxu0 0.0
        %576 = vmatpush1.msra.mxu0 0.0
        %577 = vmatprep.subr.mxu0 0.0
        %578 = vmatpush1.msra.mxu0 0.0
        %579 = vmatprep.subr.mxu0 0.0
        %580 = vmatpush1.msra.mxu0 0.0
        %581 = vmatprep.subr.mxu0 0.0
        %582 = vmatpush1.msra.mxu0 0.0
        %583 = vmatprep.subr.mxu0 0.0
        %584 = vmatpush1.msra.mxu0 0.0
        %585 = vmatprep.subr.mxu0 0.0
        %586 = vmatpush1.msra.mxu0 0.0
        %587 = vmatprep.subr.mxu0 0.0
        %588 = vmatpush1.msra.mxu0 0.0
        %589 = vmatprep.subr.mxu0 0.0
        %590 = vmatpush1.msra.mxu0 0.0
        %591 = vmatprep.subr.mxu0 0.0
        %592 = vmatpush1.msra.mxu0 0.0
        %593 = vmatprep.mubr.f32.mxu0 0.0
        %594 = vmatmul.mubr.f32.gmra.mrb[0].mxu0 %v493
        %v595 = vpop.f32.mrb[0].mxu0
        %v596 = vadd.f32 0.0, %v595
        %v597 = vpop.f32.mrb[0].mxu0
        %598 = vmatprep.mubr.f32.mxu0 0.0
        %599 = vmatmul.mubr.f32.gmra.mrb[0].mxu0 %v494
        %v600 = vpop.f32.mrb[0].mxu0
        %v601 = vadd.f32 0.0, %v600
        %v602 = vpop.f32.mrb[0].mxu0
        %603 = vmatprep.mubr.f32.mxu0 0.0
        %604 = vmatmul.mubr.f32.gmra.mrb[0].mxu0 %v495
        %v605 = vpop.f32.mrb[0].mxu0
        %v606 = vadd.f32 0.0, %v605
        %v607 = vpop.f32.mrb[0].mxu0
        %608 = vmatprep.mubr.f32.mxu0 0.0
        %609 = vmatmul.mubr.f32.gmra.mrb[0].mxu0 %v496
        %v610 = vpop.f32.mrb[0].mxu0
        %v611 = vadd.f32 0.0, %v610
        %v612 = vpop.f32.mrb[0].mxu0
        %613 = vdwg.mxu0
        %v614 = vld [vmem:[%s1] sm:$0xff]
        %v615 = vld [vmem:[%s1 + $0x8] sm:$0xff]
        %v616 = vld [vmem:[%s1 + $0x10] sm:$0xff]
        %v617 = vld [vmem:[%s1 + $0x18] sm:$0xff]
        %v618 = vld [vmem:[%s1 + $0x20] sm:$0xff]
        %v619 = vld [vmem:[%s1 + $0x28] sm:$0xff]
        %v620 = vld [vmem:[%s1 + $0x30] sm:$0xff]
        %v621 = vld [vmem:[%s1 + $0x38] sm:$0xff]
        %s622 = scalar_lea.vmem %s14, 128
        %v623 = vld [vmem:[%s622] sm:$0xff]
        %v624 = vld [vmem:[%s622 + $0x8] sm:$0xff]
        %v625 = vld [vmem:[%s622 + $0x10] sm:$0xff]
        %v626 = vld [vmem:[%s622 + $0x18] sm:$0xff]
        %v627 = vld [vmem:[%s622 + $0x20] sm:$0xff]
        %v628 = vld [vmem:[%s622 + $0x28] sm:$0xff]
        %v629 = vld [vmem:[%s622 + $0x30] sm:$0xff]
        %v630 = vld [vmem:[%s622 + $0x38] sm:$0xff]
        %v631 = vld [vmem:[%s622 + $0x40] sm:$0xff]
        %v632 = vld [vmem:[%s622 + $0x48] sm:$0xff]
        %v633 = vld [vmem:[%s622 + $0x50] sm:$0xff]
        %v634 = vld [vmem:[%s622 + $0x58] sm:$0xff]
        %v635 = vld [vmem:[%s622 + $0x60] sm:$0xff]
        %v636 = vld [vmem:[%s622 + $0x68] sm:$0xff]
        %v637 = vld [vmem:[%s622 + $0x70] sm:$0xff]
        %v638 = vld [vmem:[%s622 + $0x78] sm:$0xff]
        %639 = vmatprep.subr.mxu0 0.0
        %640 = vmatpush1.msra.mxu0 %v623
        %641 = vmatprep.subr.mxu0 0.0
        %642 = vmatpush1.msra.mxu0 %v624
        %643 = vmatprep.subr.mxu0 0.0
        %644 = vmatpush1.msra.mxu0 %v625
        %645 = vmatprep.subr.mxu0 0.0
        %646 = vmatpush1.msra.mxu0 %v626
        %647 = vmatprep.subr.mxu0 0.0
        %648 = vmatpush1.msra.mxu0 %v627
        %649 = vmatprep.subr.mxu0 0.0
        %650 = vmatpush1.msra.mxu0 %v628
        %651 = vmatprep.subr.mxu0 0.0
        %652 = vmatpush1.msra.mxu0 %v629
        %653 = vmatprep.subr.mxu0 0.0
        %654 = vmatpush1.msra.mxu0 %v630
        %655 = vmatprep.subr.mxu0 0.0
        %656 = vmatpush1.msra.mxu0 %v631
        %657 = vmatprep.subr.mxu0 0.0
        %658 = vmatpush1.msra.mxu0 %v632
        %659 = vmatprep.subr.mxu0 0.0
        %660 = vmatpush1.msra.mxu0 %v633
        %661 = vmatprep.subr.mxu0 0.0
        %662 = vmatpush1.msra.mxu0 %v634
        %663 = vmatprep.subr.mxu0 0.0
        %664 = vmatpush1.msra.mxu0 %v635
        %665 = vmatprep.subr.mxu0 0.0
        %666 = vmatpush1.msra.mxu0 %v636
        %667 = vmatprep.subr.mxu0 0.0
        %668 = vmatpush1.msra.mxu0 %v637
        %669 = vmatprep.subr.mxu0 0.0
        %670 = vmatpush1.msra.mxu0 %v638
        %671 = vmatprep.subr.mxu0 0.0
        %672 = vmatpush1.msra.mxu0 0.0
        %673 = vmatprep.subr.mxu0 0.0
        %674 = vmatpush1.msra.mxu0 0.0
        %675 = vmatprep.subr.mxu0 0.0
        %676 = vmatpush1.msra.mxu0 0.0
        %677 = vmatprep.subr.mxu0 0.0
        %678 = vmatpush1.msra.mxu0 0.0
        %679 = vmatprep.subr.mxu0 0.0
        %680 = vmatpush1.msra.mxu0 0.0
        %681 = vmatprep.subr.mxu0 0.0
        %682 = vmatpush1.msra.mxu0 0.0
        %683 = vmatprep.subr.mxu0 0.0
        %684 = vmatpush1.msra.mxu0 0.0
        %685 = vmatprep.subr.mxu0 0.0
        %686 = vmatpush1.msra.mxu0 0.0
        %687 = vmatprep.subr.mxu0 0.0
        %688 = vmatpush1.msra.mxu0 0.0
        %689 = vmatprep.subr.mxu0 0.0
        %690 = vmatpush1.msra.mxu0 0.0
        %691 = vmatprep.subr.mxu0 0.0
        %692 = vmatpush1.msra.mxu0 0.0
        %693 = vmatprep.subr.mxu0 0.0
        %694 = vmatpush1.msra.mxu0 0.0
        %695 = vmatprep.subr.mxu0 0.0
        %696 = vmatpush1.msra.mxu0 0.0
        %697 = vmatprep.subr.mxu0 0.0
        %698 = vmatpush1.msra.mxu0 0.0
        %699 = vmatprep.subr.mxu0 0.0
        %700 = vmatpush1.msra.mxu0 0.0
        %701 = vmatprep.subr.mxu0 0.0
        %702 = vmatpush1.msra.mxu0 0.0
        %703 = vmatprep.mubr.f32.mxu0 0.0
        %704 = vmatmul.mubr.f32.gmra.mrb[0].mxu0 %v493
        %v705 = vpop.f32.mrb[0].mxu0
        %v706 = vadd.f32 0.0, %v705
        %v707 = vpop.f32.mrb[0].mxu0
        %708 = vmatprep.mubr.f32.mxu0 0.0
        %709 = vmatmul.mubr.f32.gmra.mrb[0].mxu0 %v494
        %v710 = vpop.f32.mrb[0].mxu0
        %v711 = vadd.f32 0.0, %v710
        %v712 = vpop.f32.mrb[0].mxu0
        %713 = vmatprep.mubr.f32.mxu0 0.0
        %714 = vmatmul.mubr.f32.gmra.mrb[0].mxu0 %v495
        %v715 = vpop.f32.mrb[0].mxu0
        %v716 = vadd.f32 0.0, %v715
        %v717 = vpop.f32.mrb[0].mxu0
        %718 = vmatprep.mubr.f32.mxu0 0.0
        %719 = vmatmul.mubr.f32.gmra.mrb[0].mxu0 %v496
        %v720 = vpop.f32.mrb[0].mxu0
        %v721 = vadd.f32 0.0, %v720
        %v722 = vpop.f32.mrb[0].mxu0
        %723 = vdwg.mxu0
        %s724 = scalar_lea.vmem %s1, 64
        %v725 = vld [vmem:[%s724] sm:$0xff]
        %v726 = vld [vmem:[%s724 + $0x8] sm:$0xff]
        %v727 = vld [vmem:[%s724 + $0x10] sm:$0xff]
        %v728 = vld [vmem:[%s724 + $0x18] sm:$0xff]
        %v729 = vld [vmem:[%s724 + $0x20] sm:$0xff]
        %v730 = vld [vmem:[%s724 + $0x28] sm:$0xff]
        %v731 = vld [vmem:[%s724 + $0x30] sm:$0xff]
        %v732 = vld [vmem:[%s724 + $0x38] sm:$0xff]
        %vm733 = vcmask 261120
        %v735 = vsel %vm733, %v725, 0
        %v738 = vsel %vm733, %v726, 0
        %v741 = vsel %vm733, %v727, 0
        %v744 = vsel %vm733, %v728, 0
        %v747 = vsel %vm733, %v729, 0
        %v750 = vsel %vm733, %v730, 0
        %v753 = vsel %vm733, %v731, 0
        %v756 = vsel %vm733, %v732, 0
        %758 = vmatprep.subr.mxu0 0.0
        %759 = vmatpush1.msra.mxu0 %v706
        %760 = vmatprep.subr.mxu0 0.0
        %761 = vmatpush1.msra.mxu0 %v711
        %762 = vmatprep.subr.mxu0 0.0
        %763 = vmatpush1.msra.mxu0 %v716
        %764 = vmatprep.subr.mxu0 0.0
        %765 = vmatpush1.msra.mxu0 %v721
        %766 = vmatprep.subr.mxu0 0.0
        %767 = vmatpush1.msra.mxu0 0.0
        %768 = vmatprep.subr.mxu0 0.0
        %769 = vmatpush1.msra.mxu0 0.0
        %770 = vmatprep.subr.mxu0 0.0
        %771 = vmatpush1.msra.mxu0 0.0
        %772 = vmatprep.subr.mxu0 0.0
        %773 = vmatpush1.msra.mxu0 0.0
        %774 = vmatprep.subr.mxu0 0.0
        %775 = vmatpush1.msra.mxu0 0.0
        %776 = vmatprep.subr.mxu0 0.0
        %777 = vmatpush1.msra.mxu0 0.0
        %778 = vmatprep.subr.mxu0 0.0
        %779 = vmatpush1.msra.mxu0 0.0
        %780 = vmatprep.subr.mxu0 0.0
        %781 = vmatpush1.msra.mxu0 0.0
        %782 = vmatprep.subr.mxu0 0.0
        %783 = vmatpush1.msra.mxu0 0.0
        %784 = vmatprep.subr.mxu0 0.0
        %785 = vmatpush1.msra.mxu0 0.0
        %786 = vmatprep.subr.mxu0 0.0
        %787 = vmatpush1.msra.mxu0 0.0
        %788 = vmatprep.subr.mxu0 0.0
        %789 = vmatpush1.msra.mxu0 0.0
        %790 = vmatprep.subr.mxu0 0.0
        %791 = vmatpush1.msra.mxu0 0.0
        %792 = vmatprep.subr.mxu0 0.0
        %793 = vmatpush1.msra.mxu0 0.0
        %794 = vmatprep.subr.mxu0 0.0
        %795 = vmatpush1.msra.mxu0 0.0
        %796 = vmatprep.subr.mxu0 0.0
        %797 = vmatpush1.msra.mxu0 0.0
        %798 = vmatprep.subr.mxu0 0.0
        %799 = vmatpush1.msra.mxu0 0.0
        %800 = vmatprep.subr.mxu0 0.0
        %801 = vmatpush1.msra.mxu0 0.0
        %802 = vmatprep.subr.mxu0 0.0
        %803 = vmatpush1.msra.mxu0 0.0
        %804 = vmatprep.subr.mxu0 0.0
        %805 = vmatpush1.msra.mxu0 0.0
        %806 = vmatprep.subr.mxu0 0.0
        %807 = vmatpush1.msra.mxu0 0.0
        %808 = vmatprep.subr.mxu0 0.0
        %809 = vmatpush1.msra.mxu0 0.0
        %810 = vmatprep.subr.mxu0 0.0
        %811 = vmatpush1.msra.mxu0 0.0
        %812 = vmatprep.subr.mxu0 0.0
        %813 = vmatpush1.msra.mxu0 0.0
        %814 = vmatprep.subr.mxu0 0.0
        %815 = vmatpush1.msra.mxu0 0.0
        %816 = vmatprep.subr.mxu0 0.0
        %817 = vmatpush1.msra.mxu0 0.0
        %818 = vmatprep.subr.mxu0 0.0
        %819 = vmatpush1.msra.mxu0 0.0
        %820 = vmatprep.subr.mxu0 0.0
        %821 = vmatpush1.msra.mxu0 0.0
        %822 = vmatprep.mubr.f32.mxu0 0.0
        %823 = vmatmul.mubr.f32.gmra.mrb[0].mxu0 %v735
        %v824 = vpop.f32.mrb[0].mxu0
        %v825 = vadd.f32 0.0, %v824
        %v826 = vpop.f32.mrb[0].mxu0
        %827 = vmatprep.mubr.f32.mxu0 0.0
        %828 = vmatmul.mubr.f32.gmra.mrb[0].mxu0 %v738
        %v829 = vpop.f32.mrb[0].mxu0
        %v830 = vadd.f32 0.0, %v829
        %v831 = vpop.f32.mrb[0].mxu0
        %832 = vmatprep.mubr.f32.mxu0 0.0
        %833 = vmatmul.mubr.f32.gmra.mrb[0].mxu0 %v741
        %v834 = vpop.f32.mrb[0].mxu0
        %v835 = vadd.f32 0.0, %v834
        %v836 = vpop.f32.mrb[0].mxu0
        %837 = vmatprep.mubr.f32.mxu0 0.0
        %838 = vmatmul.mubr.f32.gmra.mrb[0].mxu0 %v744
        %v839 = vpop.f32.mrb[0].mxu0
        %v840 = vadd.f32 0.0, %v839
        %v841 = vpop.f32.mrb[0].mxu0
        %842 = vmatprep.mubr.f32.mxu0 0.0
        %843 = vmatmul.mubr.f32.gmra.mrb[0].mxu0 %v747
        %v844 = vpop.f32.mrb[0].mxu0
        %v845 = vadd.f32 0.0, %v844
        %v846 = vpop.f32.mrb[0].mxu0
        %847 = vmatprep.mubr.f32.mxu0 0.0
        %848 = vmatmul.mubr.f32.gmra.mrb[0].mxu0 %v750
        %v849 = vpop.f32.mrb[0].mxu0
        %v850 = vadd.f32 0.0, %v849
        %v851 = vpop.f32.mrb[0].mxu0
        %852 = vmatprep.mubr.f32.mxu0 0.0
        %853 = vmatmul.mubr.f32.gmra.mrb[0].mxu0 %v753
        %v854 = vpop.f32.mrb[0].mxu0
        %v855 = vadd.f32 0.0, %v854
        %v856 = vpop.f32.mrb[0].mxu0
        %857 = vmatprep.mubr.f32.mxu0 0.0
        %858 = vmatmul.mubr.f32.gmra.mrb[0].mxu0 %v756
        %v859 = vpop.f32.mrb[0].mxu0
        %v860 = vadd.f32 0.0, %v859
        %v861 = vpop.f32.mrb[0].mxu0
        %862 = vdwg.mxu0
        %v864 = vsel %vm733, %v614, 0
        %v867 = vsel %vm733, %v615, 0
        %v870 = vsel %vm733, %v616, 0
        %v873 = vsel %vm733, %v617, 0
        %v876 = vsel %vm733, %v618, 0
        %v879 = vsel %vm733, %v619, 0
        %v882 = vsel %vm733, %v620, 0
        %v885 = vsel %vm733, %v621, 0
        %887 = vmatprep.subr.mxu0 0.0
        %888 = vmatpush1.msra.mxu0 %v596
        %889 = vmatprep.subr.mxu0 0.0
        %890 = vmatpush1.msra.mxu0 %v601
        %891 = vmatprep.subr.mxu0 0.0
        %892 = vmatpush1.msra.mxu0 %v606
        %893 = vmatprep.subr.mxu0 0.0
        %894 = vmatpush1.msra.mxu0 %v611
        %895 = vmatprep.subr.mxu0 0.0
        %896 = vmatpush1.msra.mxu0 0.0
        %897 = vmatprep.subr.mxu0 0.0
        %898 = vmatpush1.msra.mxu0 0.0
        %899 = vmatprep.subr.mxu0 0.0
        %900 = vmatpush1.msra.mxu0 0.0
        %901 = vmatprep.subr.mxu0 0.0
        %902 = vmatpush1.msra.mxu0 0.0
        %903 = vmatprep.subr.mxu0 0.0
        %904 = vmatpush1.msra.mxu0 0.0
        %905 = vmatprep.subr.mxu0 0.0
        %906 = vmatpush1.msra.mxu0 0.0
        %907 = vmatprep.subr.mxu0 0.0
        %908 = vmatpush1.msra.mxu0 0.0
        %909 = vmatprep.subr.mxu0 0.0
        %910 = vmatpush1.msra.mxu0 0.0
        %911 = vmatprep.subr.mxu0 0.0
        %912 = vmatpush1.msra.mxu0 0.0
        %913 = vmatprep.subr.mxu0 0.0
        %914 = vmatpush1.msra.mxu0 0.0
        %915 = vmatprep.subr.mxu0 0.0
        %916 = vmatpush1.msra.mxu0 0.0
        %917 = vmatprep.subr.mxu0 0.0
        %918 = vmatpush1.msra.mxu0 0.0
        %919 = vmatprep.subr.mxu0 0.0
        %920 = vmatpush1.msra.mxu0 0.0
        %921 = vmatprep.subr.mxu0 0.0
        %922 = vmatpush1.msra.mxu0 0.0
        %923 = vmatprep.subr.mxu0 0.0
        %924 = vmatpush1.msra.mxu0 0.0
        %925 = vmatprep.subr.mxu0 0.0
        %926 = vmatpush1.msra.mxu0 0.0
        %927 = vmatprep.subr.mxu0 0.0
        %928 = vmatpush1.msra.mxu0 0.0
        %929 = vmatprep.subr.mxu0 0.0
        %930 = vmatpush1.msra.mxu0 0.0
        %931 = vmatprep.subr.mxu0 0.0
        %932 = vmatpush1.msra.mxu0 0.0
        %933 = vmatprep.subr.mxu0 0.0
        %934 = vmatpush1.msra.mxu0 0.0
        %935 = vmatprep.subr.mxu0 0.0
        %936 = vmatpush1.msra.mxu0 0.0
        %937 = vmatprep.subr.mxu0 0.0
        %938 = vmatpush1.msra.mxu0 0.0
        %939 = vmatprep.subr.mxu0 0.0
        %940 = vmatpush1.msra.mxu0 0.0
        %941 = vmatprep.subr.mxu0 0.0
        %942 = vmatpush1.msra.mxu0 0.0
        %943 = vmatprep.subr.mxu0 0.0
        %944 = vmatpush1.msra.mxu0 0.0
        %945 = vmatprep.subr.mxu0 0.0
        %946 = vmatpush1.msra.mxu0 0.0
        %947 = vmatprep.subr.mxu0 0.0
        %948 = vmatpush1.msra.mxu0 0.0
        %949 = vmatprep.subr.mxu0 0.0
        %950 = vmatpush1.msra.mxu0 0.0
        %951 = vmatprep.mubr.f32.mxu0 0.0
        %952 = vmatmul.mubr.f32.gmra.mrb[0].mxu0 %v864
        %v953 = vpop.f32.mrb[0].mxu0
        %v954 = vadd.f32 %v825, %v953
        %v955 = vpop.f32.mrb[0].mxu0
        %956 = vmatprep.mubr.f32.mxu0 0.0
        %957 = vmatmul.mubr.f32.gmra.mrb[0].mxu0 %v867
        %v958 = vpop.f32.mrb[0].mxu0
        %v959 = vadd.f32 %v830, %v958
        %v960 = vpop.f32.mrb[0].mxu0
        %961 = vmatprep.mubr.f32.mxu0 0.0
        %962 = vmatmul.mubr.f32.gmra.mrb[0].mxu0 %v870
        %v963 = vpop.f32.mrb[0].mxu0
        %v964 = vadd.f32 %v835, %v963
        %v965 = vpop.f32.mrb[0].mxu0
        %966 = vmatprep.mubr.f32.mxu0 0.0
        %967 = vmatmul.mubr.f32.gmra.mrb[0].mxu0 %v873
        %v968 = vpop.f32.mrb[0].mxu0
        %v969 = vadd.f32 %v840, %v968
        %v970 = vpop.f32.mrb[0].mxu0
        %971 = vmatprep.mubr.f32.mxu0 0.0
        %972 = vmatmul.mubr.f32.gmra.mrb[0].mxu0 %v876
        %v973 = vpop.f32.mrb[0].mxu0
        %v974 = vadd.f32 %v845, %v973
        %v975 = vpop.f32.mrb[0].mxu0
        %976 = vmatprep.mubr.f32.mxu0 0.0
        %977 = vmatmul.mubr.f32.gmra.mrb[0].mxu0 %v879
        %v978 = vpop.f32.mrb[0].mxu0
        %v979 = vadd.f32 %v850, %v978
        %v980 = vpop.f32.mrb[0].mxu0
        %981 = vmatprep.mubr.f32.mxu0 0.0
        %982 = vmatmul.mubr.f32.gmra.mrb[0].mxu0 %v882
        %v983 = vpop.f32.mrb[0].mxu0
        %v984 = vadd.f32 %v855, %v983
        %v985 = vpop.f32.mrb[0].mxu0
        %986 = vmatprep.mubr.f32.mxu0 0.0
        %987 = vmatmul.mubr.f32.gmra.mrb[0].mxu0 %v885
        %v988 = vpop.f32.mrb[0].mxu0
        %v989 = vadd.f32 %v860, %v988
        %v990 = vpop.f32.mrb[0].mxu0
        %991 = vdwg.mxu0
        %s992 = scalar_lea.vmem %s14, 256
        %v993 = vld [vmem:[%s992] sm:$0xff]
        %v994 = vld [vmem:[%s992 + $0x8] sm:$0xff]
        %v995 = vld [vmem:[%s992 + $0x10] sm:$0xff]
        %v996 = vld [vmem:[%s992 + $0x18] sm:$0xff]
        %v997 = vld [vmem:[%s992 + $0x20] sm:$0xff]
        %v998 = vld [vmem:[%s992 + $0x28] sm:$0xff]
        %v999 = vld [vmem:[%s992 + $0x30] sm:$0xff]
        %v1000 = vld [vmem:[%s992 + $0x38] sm:$0xff]
        %v1001 = vld [vmem:[%s992 + $0x40] sm:$0xff]
        %v1002 = vld [vmem:[%s992 + $0x48] sm:$0xff]
        %v1003 = vld [vmem:[%s992 + $0x50] sm:$0xff]
        %v1004 = vld [vmem:[%s992 + $0x58] sm:$0xff]
        %v1005 = vld [vmem:[%s992 + $0x60] sm:$0xff]
        %v1006 = vld [vmem:[%s992 + $0x68] sm:$0xff]
        %v1007 = vld [vmem:[%s992 + $0x70] sm:$0xff]
        %v1008 = vld [vmem:[%s992 + $0x78] sm:$0xff]
        %1009 = vmatprep.subr.mxu0 0.0
        %1010 = vmatpush1.msra.mxu0 %v993
        %1011 = vmatprep.subr.mxu0 0.0
        %1012 = vmatpush1.msra.mxu0 %v994
        %1013 = vmatprep.subr.mxu0 0.0
        %1014 = vmatpush1.msra.mxu0 %v995
        %1015 = vmatprep.subr.mxu0 0.0
        %1016 = vmatpush1.msra.mxu0 %v996
        %1017 = vmatprep.subr.mxu0 0.0
        %1018 = vmatpush1.msra.mxu0 %v997
        %1019 = vmatprep.subr.mxu0 0.0
        %1020 = vmatpush1.msra.mxu0 %v998
        %1021 = vmatprep.subr.mxu0 0.0
        %1022 = vmatpush1.msra.mxu0 %v999
        %1023 = vmatprep.subr.mxu0 0.0
        %1024 = vmatpush1.msra.mxu0 %v1000
        %1025 = vmatprep.subr.mxu0 0.0
        %1026 = vmatpush1.msra.mxu0 %v1001
        %1027 = vmatprep.subr.mxu0 0.0
        %1028 = vmatpush1.msra.mxu0 %v1002
        %1029 = vmatprep.subr.mxu0 0.0
        %1030 = vmatpush1.msra.mxu0 %v1003
        %1031 = vmatprep.subr.mxu0 0.0
        %1032 = vmatpush1.msra.mxu0 %v1004
        %1033 = vmatprep.subr.mxu0 0.0
        %1034 = vmatpush1.msra.mxu0 %v1005
        %1035 = vmatprep.subr.mxu0 0.0
        %1036 = vmatpush1.msra.mxu0 %v1006
        %1037 = vmatprep.subr.mxu0 0.0
        %1038 = vmatpush1.msra.mxu0 %v1007
        %1039 = vmatprep.subr.mxu0 0.0
        %1040 = vmatpush1.msra.mxu0 %v1008
        %1041 = vmatprep.subr.mxu0 0.0
        %1042 = vmatpush1.msra.mxu0 0.0
        %1043 = vmatprep.subr.mxu0 0.0
        %1044 = vmatpush1.msra.mxu0 0.0
        %1045 = vmatprep.subr.mxu0 0.0
        %1046 = vmatpush1.msra.mxu0 0.0
        %1047 = vmatprep.subr.mxu0 0.0
        %1048 = vmatpush1.msra.mxu0 0.0
        %1049 = vmatprep.subr.mxu0 0.0
        %1050 = vmatpush1.msra.mxu0 0.0
        %1051 = vmatprep.subr.mxu0 0.0
        %1052 = vmatpush1.msra.mxu0 0.0
        %1053 = vmatprep.subr.mxu0 0.0
        %1054 = vmatpush1.msra.mxu0 0.0
        %1055 = vmatprep.subr.mxu0 0.0
        %1056 = vmatpush1.msra.mxu0 0.0
        %1057 = vmatprep.subr.mxu0 0.0
        %1058 = vmatpush1.msra.mxu0 0.0
        %1059 = vmatprep.subr.mxu0 0.0
        %1060 = vmatpush1.msra.mxu0 0.0
        %1061 = vmatprep.subr.mxu0 0.0
        %1062 = vmatpush1.msra.mxu0 0.0
        %1063 = vmatprep.subr.mxu0 0.0
        %1064 = vmatpush1.msra.mxu0 0.0
        %1065 = vmatprep.subr.mxu0 0.0
        %1066 = vmatpush1.msra.mxu0 0.0
        %1067 = vmatprep.subr.mxu0 0.0
        %1068 = vmatpush1.msra.mxu0 0.0
        %1069 = vmatprep.subr.mxu0 0.0
        %1070 = vmatpush1.msra.mxu0 0.0
        %1071 = vmatprep.subr.mxu0 0.0
        %1072 = vmatpush1.msra.mxu0 0.0
        %1073 = vmatprep.mubr.f32.mxu0 0.0
        %1074 = vmatmul.mubr.f32.gmra.mrb[0].mxu0 %v493
        %v1075 = vpop.f32.mrb[0].mxu0
        %v1076 = vadd.f32 0.0, %v1075
        %v1077 = vpop.f32.mrb[0].mxu0
        %1078 = vmatprep.mubr.f32.mxu0 0.0
        %1079 = vmatmul.mubr.f32.gmra.mrb[0].mxu0 %v494
        %v1080 = vpop.f32.mrb[0].mxu0
        %v1081 = vadd.f32 0.0, %v1080
        %v1082 = vpop.f32.mrb[0].mxu0
        %1083 = vmatprep.mubr.f32.mxu0 0.0
        %1084 = vmatmul.mubr.f32.gmra.mrb[0].mxu0 %v495
        %v1085 = vpop.f32.mrb[0].mxu0
        %v1086 = vadd.f32 0.0, %v1085
        %v1087 = vpop.f32.mrb[0].mxu0
        %1088 = vmatprep.mubr.f32.mxu0 0.0
        %1089 = vmatmul.mubr.f32.gmra.mrb[0].mxu0 %v496
        %v1090 = vpop.f32.mrb[0].mxu0
        %v1091 = vadd.f32 0.0, %v1090
        %v1092 = vpop.f32.mrb[0].mxu0
        %1093 = vdwg.mxu0
        %s1094 = scalar_lea.vmem %s1, 128
        %v1095 = vld [vmem:[%s1094] sm:$0xff]
        %v1096 = vld [vmem:[%s1094 + $0x8] sm:$0xff]
        %v1097 = vld [vmem:[%s1094 + $0x10] sm:$0xff]
        %v1098 = vld [vmem:[%s1094 + $0x18] sm:$0xff]
        %v1099 = vld [vmem:[%s1094 + $0x20] sm:$0xff]
        %v1100 = vld [vmem:[%s1094 + $0x28] sm:$0xff]
        %v1101 = vld [vmem:[%s1094 + $0x30] sm:$0xff]
        %v1102 = vld [vmem:[%s1094 + $0x38] sm:$0xff]
        %v1104 = vsel %vm733, %v1095, 0
        %v1107 = vsel %vm733, %v1096, 0
        %v1110 = vsel %vm733, %v1097, 0
        %v1113 = vsel %vm733, %v1098, 0
        %v1116 = vsel %vm733, %v1099, 0
        %v1119 = vsel %vm733, %v1100, 0
        %v1122 = vsel %vm733, %v1101, 0
        %v1125 = vsel %vm733, %v1102, 0
        %1127 = vmatprep.subr.mxu0 0.0
        %1128 = vmatpush1.msra.mxu0 %v1076
        %1129 = vmatprep.subr.mxu0 0.0
        %1130 = vmatpush1.msra.mxu0 %v1081
        %1131 = vmatprep.subr.mxu0 0.0
        %1132 = vmatpush1.msra.mxu0 %v1086
        %1133 = vmatprep.subr.mxu0 0.0
        %1134 = vmatpush1.msra.mxu0 %v1091
        %1135 = vmatprep.subr.mxu0 0.0
        %1136 = vmatpush1.msra.mxu0 0.0
        %1137 = vmatprep.subr.mxu0 0.0
        %1138 = vmatpush1.msra.mxu0 0.0
        %1139 = vmatprep.subr.mxu0 0.0
        %1140 = vmatpush1.msra.mxu0 0.0
        %1141 = vmatprep.subr.mxu0 0.0
        %1142 = vmatpush1.msra.mxu0 0.0
        %1143 = vmatprep.subr.mxu0 0.0
        %1144 = vmatpush1.msra.mxu0 0.0
        %1145 = vmatprep.subr.mxu0 0.0
        %1146 = vmatpush1.msra.mxu0 0.0
        %1147 = vmatprep.subr.mxu0 0.0
        %1148 = vmatpush1.msra.mxu0 0.0
        %1149 = vmatprep.subr.mxu0 0.0
        %1150 = vmatpush1.msra.mxu0 0.0
        %1151 = vmatprep.subr.mxu0 0.0
        %1152 = vmatpush1.msra.mxu0 0.0
        %1153 = vmatprep.subr.mxu0 0.0
        %1154 = vmatpush1.msra.mxu0 0.0
        %1155 = vmatprep.subr.mxu0 0.0
        %1156 = vmatpush1.msra.mxu0 0.0
        %1157 = vmatprep.subr.mxu0 0.0
        %1158 = vmatpush1.msra.mxu0 0.0
        %1159 = vmatprep.subr.mxu0 0.0
        %1160 = vmatpush1.msra.mxu0 0.0
        %1161 = vmatprep.subr.mxu0 0.0
        %1162 = vmatpush1.msra.mxu0 0.0
        %1163 = vmatprep.subr.mxu0 0.0
        %1164 = vmatpush1.msra.mxu0 0.0
        %1165 = vmatprep.subr.mxu0 0.0
        %1166 = vmatpush1.msra.mxu0 0.0
        %1167 = vmatprep.subr.mxu0 0.0
        %1168 = vmatpush1.msra.mxu0 0.0
        %1169 = vmatprep.subr.mxu0 0.0
        %1170 = vmatpush1.msra.mxu0 0.0
        %1171 = vmatprep.subr.mxu0 0.0
        %1172 = vmatpush1.msra.mxu0 0.0
        %1173 = vmatprep.subr.mxu0 0.0
        %1174 = vmatpush1.msra.mxu0 0.0
        %1175 = vmatprep.subr.mxu0 0.0
        %1176 = vmatpush1.msra.mxu0 0.0
        %1177 = vmatprep.subr.mxu0 0.0
        %1178 = vmatpush1.msra.mxu0 0.0
        %1179 = vmatprep.subr.mxu0 0.0
        %1180 = vmatpush1.msra.mxu0 0.0
        %1181 = vmatprep.subr.mxu0 0.0
        %1182 = vmatpush1.msra.mxu0 0.0
        %1183 = vmatprep.subr.mxu0 0.0
        %1184 = vmatpush1.msra.mxu0 0.0
        %1185 = vmatprep.subr.mxu0 0.0
        %1186 = vmatpush1.msra.mxu0 0.0
        %1187 = vmatprep.subr.mxu0 0.0
        %1188 = vmatpush1.msra.mxu0 0.0
        %1189 = vmatprep.subr.mxu0 0.0
        %1190 = vmatpush1.msra.mxu0 0.0
        %1191 = vmatprep.mubr.f32.mxu0 0.0
        %1192 = vmatmul.mubr.f32.gmra.mrb[0].mxu0 %v1104
        %v1193 = vpop.f32.mrb[0].mxu0
        %v1194 = vadd.f32 0.0, %v1193
        %v1195 = vpop.f32.mrb[0].mxu0
        %1196 = vmatprep.mubr.f32.mxu0 0.0
        %1197 = vmatmul.mubr.f32.gmra.mrb[0].mxu0 %v1107
        %v1198 = vpop.f32.mrb[0].mxu0
        %v1199 = vadd.f32 0.0, %v1198
        %v1200 = vpop.f32.mrb[0].mxu0
        %1201 = vmatprep.mubr.f32.mxu0 0.0
        %1202 = vmatmul.mubr.f32.gmra.mrb[0].mxu0 %v1110
        %v1203 = vpop.f32.mrb[0].mxu0
        %v1204 = vadd.f32 0.0, %v1203
        %v1205 = vpop.f32.mrb[0].mxu0
        %1206 = vmatprep.mubr.f32.mxu0 0.0
        %1207 = vmatmul.mubr.f32.gmra.mrb[0].mxu0 %v1113
        %v1208 = vpop.f32.mrb[0].mxu0
        %v1209 = vadd.f32 0.0, %v1208
        %v1210 = vpop.f32.mrb[0].mxu0
        %1211 = vmatprep.mubr.f32.mxu0 0.0
        %1212 = vmatmul.mubr.f32.gmra.mrb[0].mxu0 %v1116
        %v1213 = vpop.f32.mrb[0].mxu0
        %v1214 = vadd.f32 0.0, %v1213
        %v1215 = vpop.f32.mrb[0].mxu0
        %1216 = vmatprep.mubr.f32.mxu0 0.0
        %1217 = vmatmul.mubr.f32.gmra.mrb[0].mxu0 %v1119
        %v1218 = vpop.f32.mrb[0].mxu0
        %v1219 = vadd.f32 0.0, %v1218
        %v1220 = vpop.f32.mrb[0].mxu0
        %1221 = vmatprep.mubr.f32.mxu0 0.0
        %1222 = vmatmul.mubr.f32.gmra.mrb[0].mxu0 %v1122
        %v1223 = vpop.f32.mrb[0].mxu0
        %v1224 = vadd.f32 0.0, %v1223
        %v1225 = vpop.f32.mrb[0].mxu0
        %1226 = vmatprep.mubr.f32.mxu0 0.0
        %1227 = vmatmul.mubr.f32.gmra.mrb[0].mxu0 %v1125
        %v1228 = vpop.f32.mrb[0].mxu0
        %v1229 = vadd.f32 0.0, %v1228
        %v1230 = vpop.f32.mrb[0].mxu0
        %1231 = vdwg.mxu0
        %v1232 = vadd.f32 %v954, %v1194
        %v1233 = vadd.f32 %v959, %v1199
        %v1234 = vadd.f32 %v964, %v1204
        %v1235 = vadd.f32 %v969, %v1209
        %v1236 = vadd.f32 %v974, %v1214
        %v1237 = vadd.f32 %v979, %v1219
        %v1238 = vadd.f32 %v984, %v1224
        %v1239 = vadd.f32 %v989, %v1229
        %s1240 = scalar_lea.vmem %s14, 384
        %v1241 = vld [vmem:[%s1240] sm:$0xff]
        %v1242 = vld [vmem:[%s1240 + $0x8] sm:$0xff]
        %v1243 = vld [vmem:[%s1240 + $0x10] sm:$0xff]
        %v1244 = vld [vmem:[%s1240 + $0x18] sm:$0xff]
        %v1245 = vld [vmem:[%s1240 + $0x20] sm:$0xff]
        %v1246 = vld [vmem:[%s1240 + $0x28] sm:$0xff]
        %v1247 = vld [vmem:[%s1240 + $0x30] sm:$0xff]
        %v1248 = vld [vmem:[%s1240 + $0x38] sm:$0xff]
        %v1249 = vld [vmem:[%s1240 + $0x40] sm:$0xff]
        %v1250 = vld [vmem:[%s1240 + $0x48] sm:$0xff]
        %v1251 = vld [vmem:[%s1240 + $0x50] sm:$0xff]
        %v1252 = vld [vmem:[%s1240 + $0x58] sm:$0xff]
        %v1253 = vld [vmem:[%s1240 + $0x60] sm:$0xff]
        %v1254 = vld [vmem:[%s1240 + $0x68] sm:$0xff]
        %v1255 = vld [vmem:[%s1240 + $0x70] sm:$0xff]
        %v1256 = vld [vmem:[%s1240 + $0x78] sm:$0xff]
        %1257 = vmatprep.subr.mxu0 0.0
        %1258 = vmatpush1.msra.mxu0 %v1241
        %1259 = vmatprep.subr.mxu0 0.0
        %1260 = vmatpush1.msra.mxu0 %v1242
        %1261 = vmatprep.subr.mxu0 0.0
        %1262 = vmatpush1.msra.mxu0 %v1243
        %1263 = vmatprep.subr.mxu0 0.0
        %1264 = vmatpush1.msra.mxu0 %v1244
        %1265 = vmatprep.subr.mxu0 0.0
        %1266 = vmatpush1.msra.mxu0 %v1245
        %1267 = vmatprep.subr.mxu0 0.0
        %1268 = vmatpush1.msra.mxu0 %v1246
        %1269 = vmatprep.subr.mxu0 0.0
        %1270 = vmatpush1.msra.mxu0 %v1247
        %1271 = vmatprep.subr.mxu0 0.0
        %1272 = vmatpush1.msra.mxu0 %v1248
        %1273 = vmatprep.subr.mxu0 0.0
        %1274 = vmatpush1.msra.mxu0 %v1249
        %1275 = vmatprep.subr.mxu0 0.0
        %1276 = vmatpush1.msra.mxu0 %v1250
        %1277 = vmatprep.subr.mxu0 0.0
        %1278 = vmatpush1.msra.mxu0 %v1251
        %1279 = vmatprep.subr.mxu0 0.0
        %1280 = vmatpush1.msra.mxu0 %v1252
        %1281 = vmatprep.subr.mxu0 0.0
        %1282 = vmatpush1.msra.mxu0 %v1253
        %1283 = vmatprep.subr.mxu0 0.0
        %1284 = vmatpush1.msra.mxu0 %v1254
        %1285 = vmatprep.subr.mxu0 0.0
        %1286 = vmatpush1.msra.mxu0 %v1255
        %1287 = vmatprep.subr.mxu0 0.0
        %1288 = vmatpush1.msra.mxu0 %v1256
        %1289 = vmatprep.subr.mxu0 0.0
        %1290 = vmatpush1.msra.mxu0 0.0
        %1291 = vmatprep.subr.mxu0 0.0
        %1292 = vmatpush1.msra.mxu0 0.0
        %1293 = vmatprep.subr.mxu0 0.0
        %1294 = vmatpush1.msra.mxu0 0.0
        %1295 = vmatprep.subr.mxu0 0.0
        %1296 = vmatpush1.msra.mxu0 0.0
        %1297 = vmatprep.subr.mxu0 0.0
        %1298 = vmatpush1.msra.mxu0 0.0
        %1299 = vmatprep.subr.mxu0 0.0
        %1300 = vmatpush1.msra.mxu0 0.0
        %1301 = vmatprep.subr.mxu0 0.0
        %1302 = vmatpush1.msra.mxu0 0.0
        %1303 = vmatprep.subr.mxu0 0.0
        %1304 = vmatpush1.msra.mxu0 0.0
        %1305 = vmatprep.subr.mxu0 0.0
        %1306 = vmatpush1.msra.mxu0 0.0
        %1307 = vmatprep.subr.mxu0 0.0
        %1308 = vmatpush1.msra.mxu0 0.0
        %1309 = vmatprep.subr.mxu0 0.0
        %1310 = vmatpush1.msra.mxu0 0.0
        %1311 = vmatprep.subr.mxu0 0.0
        %1312 = vmatpush1.msra.mxu0 0.0
        %1313 = vmatprep.subr.mxu0 0.0
        %1314 = vmatpush1.msra.mxu0 0.0
        %1315 = vmatprep.subr.mxu0 0.0
        %1316 = vmatpush1.msra.mxu0 0.0
        %1317 = vmatprep.subr.mxu0 0.0
        %1318 = vmatpush1.msra.mxu0 0.0
        %1319 = vmatprep.subr.mxu0 0.0
        %1320 = vmatpush1.msra.mxu0 0.0
        %1321 = vmatprep.mubr.f32.mxu0 0.0
        %1322 = vmatmul.mubr.f32.gmra.mrb[0].mxu0 %v493
        %v1323 = vpop.f32.mrb[0].mxu0
        %v1324 = vadd.f32 0.0, %v1323
        %v1325 = vpop.f32.mrb[0].mxu0
        %1326 = vmatprep.mubr.f32.mxu0 0.0
        %1327 = vmatmul.mubr.f32.gmra.mrb[0].mxu0 %v494
        %v1328 = vpop.f32.mrb[0].mxu0
        %v1329 = vadd.f32 0.0, %v1328
        %v1330 = vpop.f32.mrb[0].mxu0
        %1331 = vmatprep.mubr.f32.mxu0 0.0
        %1332 = vmatmul.mubr.f32.gmra.mrb[0].mxu0 %v495
        %v1333 = vpop.f32.mrb[0].mxu0
        %v1334 = vadd.f32 0.0, %v1333
        %v1335 = vpop.f32.mrb[0].mxu0
        %1336 = vmatprep.mubr.f32.mxu0 0.0
        %1337 = vmatmul.mubr.f32.gmra.mrb[0].mxu0 %v496
        %v1338 = vpop.f32.mrb[0].mxu0
        %v1339 = vadd.f32 0.0, %v1338
        %v1340 = vpop.f32.mrb[0].mxu0
        %1341 = vdwg.mxu0
        %s1342 = scalar_lea.vmem %s1, 192
        %v1343 = vld [vmem:[%s1342] sm:$0xff]
        %v1344 = vld [vmem:[%s1342 + $0x8] sm:$0xff]
        %v1345 = vld [vmem:[%s1342 + $0x10] sm:$0xff]
        %v1346 = vld [vmem:[%s1342 + $0x18] sm:$0xff]
        %v1347 = vld [vmem:[%s1342 + $0x20] sm:$0xff]
        %v1348 = vld [vmem:[%s1342 + $0x28] sm:$0xff]
        %v1349 = vld [vmem:[%s1342 + $0x30] sm:$0xff]
        %v1350 = vld [vmem:[%s1342 + $0x38] sm:$0xff]
        %v1352 = vsel %vm733, %v1343, 0
        %v1355 = vsel %vm733, %v1344, 0
        %v1358 = vsel %vm733, %v1345, 0
        %v1361 = vsel %vm733, %v1346, 0
        %v1364 = vsel %vm733, %v1347, 0
        %v1367 = vsel %vm733, %v1348, 0
        %v1370 = vsel %vm733, %v1349, 0
        %v1373 = vsel %vm733, %v1350, 0
        %1375 = vmatprep.subr.mxu0 0.0
        %1376 = vmatpush1.msra.mxu0 %v1324
        %1377 = vmatprep.subr.mxu0 0.0
        %1378 = vmatpush1.msra.mxu0 %v1329
        %1379 = vmatprep.subr.mxu0 0.0
        %1380 = vmatpush1.msra.mxu0 %v1334
        %1381 = vmatprep.subr.mxu0 0.0
        %1382 = vmatpush1.msra.mxu0 %v1339
        %1383 = vmatprep.subr.mxu0 0.0
        %1384 = vmatpush1.msra.mxu0 0.0
        %1385 = vmatprep.subr.mxu0 0.0
        %1386 = vmatpush1.msra.mxu0 0.0
        %1387 = vmatprep.subr.mxu0 0.0
        %1388 = vmatpush1.msra.mxu0 0.0
        %1389 = vmatprep.subr.mxu0 0.0
        %1390 = vmatpush1.msra.mxu0 0.0
        %1391 = vmatprep.subr.mxu0 0.0
        %1392 = vmatpush1.msra.mxu0 0.0
        %1393 = vmatprep.subr.mxu0 0.0
        %1394 = vmatpush1.msra.mxu0 0.0
        %1395 = vmatprep.subr.mxu0 0.0
        %1396 = vmatpush1.msra.mxu0 0.0
        %1397 = vmatprep.subr.mxu0 0.0
        %1398 = vmatpush1.msra.mxu0 0.0
        %1399 = vmatprep.subr.mxu0 0.0
        %1400 = vmatpush1.msra.mxu0 0.0
        %1401 = vmatprep.subr.mxu0 0.0
        %1402 = vmatpush1.msra.mxu0 0.0
        %1403 = vmatprep.subr.mxu0 0.0
        %1404 = vmatpush1.msra.mxu0 0.0
        %1405 = vmatprep.subr.mxu0 0.0
        %1406 = vmatpush1.msra.mxu0 0.0
        %1407 = vmatprep.subr.mxu0 0.0
        %1408 = vmatpush1.msra.mxu0 0.0
        %1409 = vmatprep.subr.mxu0 0.0
        %1410 = vmatpush1.msra.mxu0 0.0
        %1411 = vmatprep.subr.mxu0 0.0
        %1412 = vmatpush1.msra.mxu0 0.0
        %1413 = vmatprep.subr.mxu0 0.0
        %1414 = vmatpush1.msra.mxu0 0.0
        %1415 = vmatprep.subr.mxu0 0.0
        %1416 = vmatpush1.msra.mxu0 0.0
        %1417 = vmatprep.subr.mxu0 0.0
        %1418 = vmatpush1.msra.mxu0 0.0
        %1419 = vmatprep.subr.mxu0 0.0
        %1420 = vmatpush1.msra.mxu0 0.0
        %1421 = vmatprep.subr.mxu0 0.0
        %1422 = vmatpush1.msra.mxu0 0.0
        %1423 = vmatprep.subr.mxu0 0.0
        %1424 = vmatpush1.msra.mxu0 0.0
        %1425 = vmatprep.subr.mxu0 0.0
        %1426 = vmatpush1.msra.mxu0 0.0
        %1427 = vmatprep.subr.mxu0 0.0
        %1428 = vmatpush1.msra.mxu0 0.0
        %1429 = vmatprep.subr.mxu0 0.0
        %1430 = vmatpush1.msra.mxu0 0.0
        %1431 = vmatprep.subr.mxu0 0.0
        %1432 = vmatpush1.msra.mxu0 0.0
        %1433 = vmatprep.subr.mxu0 0.0
        %1434 = vmatpush1.msra.mxu0 0.0
        %1435 = vmatprep.subr.mxu0 0.0
        %1436 = vmatpush1.msra.mxu0 0.0
        %1437 = vmatprep.subr.mxu0 0.0
        %1438 = vmatpush1.msra.mxu0 0.0
        %1439 = vmatprep.mubr.f32.mxu0 0.0
        %1440 = vmatmul.mubr.f32.gmra.mrb[0].mxu0 %v1352
        %v1441 = vpop.f32.mrb[0].mxu0
        %v1442 = vadd.f32 0.0, %v1441
        %v1443 = vpop.f32.mrb[0].mxu0
        %1444 = vmatprep.mubr.f32.mxu0 0.0
        %1445 = vmatmul.mubr.f32.gmra.mrb[0].mxu0 %v1355
        %v1446 = vpop.f32.mrb[0].mxu0
        %v1447 = vadd.f32 0.0, %v1446
        %v1448 = vpop.f32.mrb[0].mxu0
        %1449 = vmatprep.mubr.f32.mxu0 0.0
        %1450 = vmatmul.mubr.f32.gmra.mrb[0].mxu0 %v1358
        %v1451 = vpop.f32.mrb[0].mxu0
        %v1452 = vadd.f32 0.0, %v1451
        %v1453 = vpop.f32.mrb[0].mxu0
        %1454 = vmatprep.mubr.f32.mxu0 0.0
        %1455 = vmatmul.mubr.f32.gmra.mrb[0].mxu0 %v1361
        %v1456 = vpop.f32.mrb[0].mxu0
        %v1457 = vadd.f32 0.0, %v1456
        %v1458 = vpop.f32.mrb[0].mxu0
        %1459 = vmatprep.mubr.f32.mxu0 0.0
        %1460 = vmatmul.mubr.f32.gmra.mrb[0].mxu0 %v1364
        %v1461 = vpop.f32.mrb[0].mxu0
        %v1462 = vadd.f32 0.0, %v1461
        %v1463 = vpop.f32.mrb[0].mxu0
        %1464 = vmatprep.mubr.f32.mxu0 0.0
        %1465 = vmatmul.mubr.f32.gmra.mrb[0].mxu0 %v1367
        %v1466 = vpop.f32.mrb[0].mxu0
        %v1467 = vadd.f32 0.0, %v1466
        %v1468 = vpop.f32.mrb[0].mxu0
        %1469 = vmatprep.mubr.f32.mxu0 0.0
        %1470 = vmatmul.mubr.f32.gmra.mrb[0].mxu0 %v1370
        %v1471 = vpop.f32.mrb[0].mxu0
        %v1472 = vadd.f32 0.0, %v1471
        %v1473 = vpop.f32.mrb[0].mxu0
        %1474 = vmatprep.mubr.f32.mxu0 0.0
        %1475 = vmatmul.mubr.f32.gmra.mrb[0].mxu0 %v1373
        %v1476 = vpop.f32.mrb[0].mxu0
        %v1477 = vadd.f32 0.0, %v1476
        %v1478 = vpop.f32.mrb[0].mxu0
        %1479 = vdwg.mxu0
        %v1480 = vadd.f32 %v1232, %v1442
        %v1481 = vadd.f32 %v1233, %v1447
        %v1482 = vadd.f32 %v1234, %v1452
        %v1483 = vadd.f32 %v1235, %v1457
        %v1484 = vadd.f32 %v1236, %v1462
        %v1485 = vadd.f32 %v1237, %v1467
        %v1486 = vadd.f32 %v1238, %v1472
        %v1487 = vadd.f32 %v1239, %v1477
        %s1488 = scalar_lea.vmem %s14, 512
        %v1489 = vld [vmem:[%s1488] sm:$0xff]
        %v1490 = vld [vmem:[%s1488 + $0x8] sm:$0xff]
        %v1491 = vld [vmem:[%s1488 + $0x10] sm:$0xff]
        %v1492 = vld [vmem:[%s1488 + $0x18] sm:$0xff]
        %v1493 = vld [vmem:[%s1488 + $0x20] sm:$0xff]
        %v1494 = vld [vmem:[%s1488 + $0x28] sm:$0xff]
        %v1495 = vld [vmem:[%s1488 + $0x30] sm:$0xff]
        %v1496 = vld [vmem:[%s1488 + $0x38] sm:$0xff]
        %v1497 = vld [vmem:[%s1488 + $0x40] sm:$0xff]
        %v1498 = vld [vmem:[%s1488 + $0x48] sm:$0xff]
        %v1499 = vld [vmem:[%s1488 + $0x50] sm:$0xff]
        %v1500 = vld [vmem:[%s1488 + $0x58] sm:$0xff]
        %v1501 = vld [vmem:[%s1488 + $0x60] sm:$0xff]
        %v1502 = vld [vmem:[%s1488 + $0x68] sm:$0xff]
        %v1503 = vld [vmem:[%s1488 + $0x70] sm:$0xff]
        %v1504 = vld [vmem:[%s1488 + $0x78] sm:$0xff]
        %1505 = vmatprep.subr.mxu0 0.0
        %1506 = vmatpush1.msra.mxu0 %v1489
        %1507 = vmatprep.subr.mxu0 0.0
        %1508 = vmatpush1.msra.mxu0 %v1490
        %1509 = vmatprep.subr.mxu0 0.0
        %1510 = vmatpush1.msra.mxu0 %v1491
        %1511 = vmatprep.subr.mxu0 0.0
        %1512 = vmatpush1.msra.mxu0 %v1492
        %1513 = vmatprep.subr.mxu0 0.0
        %1514 = vmatpush1.msra.mxu0 %v1493
        %1515 = vmatprep.subr.mxu0 0.0
        %1516 = vmatpush1.msra.mxu0 %v1494
        %1517 = vmatprep.subr.mxu0 0.0
        %1518 = vmatpush1.msra.mxu0 %v1495
        %1519 = vmatprep.subr.mxu0 0.0
        %1520 = vmatpush1.msra.mxu0 %v1496
        %1521 = vmatprep.subr.mxu0 0.0
        %1522 = vmatpush1.msra.mxu0 %v1497
        %1523 = vmatprep.subr.mxu0 0.0
        %1524 = vmatpush1.msra.mxu0 %v1498
        %1525 = vmatprep.subr.mxu0 0.0
        %1526 = vmatpush1.msra.mxu0 %v1499
        %1527 = vmatprep.subr.mxu0 0.0
        %1528 = vmatpush1.msra.mxu0 %v1500
        %1529 = vmatprep.subr.mxu0 0.0
        %1530 = vmatpush1.msra.mxu0 %v1501
        %1531 = vmatprep.subr.mxu0 0.0
        %1532 = vmatpush1.msra.mxu0 %v1502
        %1533 = vmatprep.subr.mxu0 0.0
        %1534 = vmatpush1.msra.mxu0 %v1503
        %1535 = vmatprep.subr.mxu0 0.0
        %1536 = vmatpush1.msra.mxu0 %v1504
        %1537 = vmatprep.subr.mxu0 0.0
        %1538 = vmatpush1.msra.mxu0 0.0
        %1539 = vmatprep.subr.mxu0 0.0
        %1540 = vmatpush1.msra.mxu0 0.0
        %1541 = vmatprep.subr.mxu0 0.0
        %1542 = vmatpush1.msra.mxu0 0.0
        %1543 = vmatprep.subr.mxu0 0.0
        %1544 = vmatpush1.msra.mxu0 0.0
        %1545 = vmatprep.subr.mxu0 0.0
        %1546 = vmatpush1.msra.mxu0 0.0
        %1547 = vmatprep.subr.mxu0 0.0
        %1548 = vmatpush1.msra.mxu0 0.0
        %1549 = vmatprep.subr.mxu0 0.0
        %1550 = vmatpush1.msra.mxu0 0.0
        %1551 = vmatprep.subr.mxu0 0.0
        %1552 = vmatpush1.msra.mxu0 0.0
        %1553 = vmatprep.subr.mxu0 0.0
        %1554 = vmatpush1.msra.mxu0 0.0
        %1555 = vmatprep.subr.mxu0 0.0
        %1556 = vmatpush1.msra.mxu0 0.0
        %1557 = vmatprep.subr.mxu0 0.0
        %1558 = vmatpush1.msra.mxu0 0.0
        %1559 = vmatprep.subr.mxu0 0.0
        %1560 = vmatpush1.msra.mxu0 0.0
        %1561 = vmatprep.subr.mxu0 0.0
        %1562 = vmatpush1.msra.mxu0 0.0
        %1563 = vmatprep.subr.mxu0 0.0
        %1564 = vmatpush1.msra.mxu0 0.0
        %1565 = vmatprep.subr.mxu0 0.0
        %1566 = vmatpush1.msra.mxu0 0.0
        %1567 = vmatprep.subr.mxu0 0.0
        %1568 = vmatpush1.msra.mxu0 0.0
        %1569 = vmatprep.mubr.f32.mxu0 0.0
        %1570 = vmatmul.mubr.f32.gmra.mrb[0].mxu0 %v493
        %v1571 = vpop.f32.mrb[0].mxu0
        %v1572 = vadd.f32 0.0, %v1571
        %v1573 = vpop.f32.mrb[0].mxu0
        %1574 = vmatprep.mubr.f32.mxu0 0.0
        %1575 = vmatmul.mubr.f32.gmra.mrb[0].mxu0 %v494
        %v1576 = vpop.f32.mrb[0].mxu0
        %v1577 = vadd.f32 0.0, %v1576
        %v1578 = vpop.f32.mrb[0].mxu0
        %1579 = vmatprep.mubr.f32.mxu0 0.0
        %1580 = vmatmul.mubr.f32.gmra.mrb[0].mxu0 %v495
        %v1581 = vpop.f32.mrb[0].mxu0
        %v1582 = vadd.f32 0.0, %v1581
        %v1583 = vpop.f32.mrb[0].mxu0
        %1584 = vmatprep.mubr.f32.mxu0 0.0
        %1585 = vmatmul.mubr.f32.gmra.mrb[0].mxu0 %v496
        %v1586 = vpop.f32.mrb[0].mxu0
        %v1587 = vadd.f32 0.0, %v1586
        %v1588 = vpop.f32.mrb[0].mxu0
        %1589 = vdwg.mxu0
        %s1590 = scalar_lea.vmem %s1, 256
        %v1591 = vld [vmem:[%s1590] sm:$0xff]
        %v1592 = vld [vmem:[%s1590 + $0x8] sm:$0xff]
        %v1593 = vld [vmem:[%s1590 + $0x10] sm:$0xff]
        %v1594 = vld [vmem:[%s1590 + $0x18] sm:$0xff]
        %v1595 = vld [vmem:[%s1590 + $0x20] sm:$0xff]
        %v1596 = vld [vmem:[%s1590 + $0x28] sm:$0xff]
        %v1597 = vld [vmem:[%s1590 + $0x30] sm:$0xff]
        %v1598 = vld [vmem:[%s1590 + $0x38] sm:$0xff]
        %v1600 = vsel %vm733, %v1591, 0
        %v1603 = vsel %vm733, %v1592, 0
        %v1606 = vsel %vm733, %v1593, 0
        %v1609 = vsel %vm733, %v1594, 0
        %v1612 = vsel %vm733, %v1595, 0
        %v1615 = vsel %vm733, %v1596, 0
        %v1618 = vsel %vm733, %v1597, 0
        %v1621 = vsel %vm733, %v1598, 0
        %1623 = vmatprep.subr.mxu0 0.0
        %1624 = vmatpush1.msra.mxu0 %v1572
        %1625 = vmatprep.subr.mxu0 0.0
        %1626 = vmatpush1.msra.mxu0 %v1577
        %1627 = vmatprep.subr.mxu0 0.0
        %1628 = vmatpush1.msra.mxu0 %v1582
        %1629 = vmatprep.subr.mxu0 0.0
        %1630 = vmatpush1.msra.mxu0 %v1587
        %1631 = vmatprep.subr.mxu0 0.0
        %1632 = vmatpush1.msra.mxu0 0.0
        %1633 = vmatprep.subr.mxu0 0.0
        %1634 = vmatpush1.msra.mxu0 0.0
        %1635 = vmatprep.subr.mxu0 0.0
        %1636 = vmatpush1.msra.mxu0 0.0
        %1637 = vmatprep.subr.mxu0 0.0
        %1638 = vmatpush1.msra.mxu0 0.0
        %1639 = vmatprep.subr.mxu0 0.0
        %1640 = vmatpush1.msra.mxu0 0.0
        %1641 = vmatprep.subr.mxu0 0.0
        %1642 = vmatpush1.msra.mxu0 0.0
        %1643 = vmatprep.subr.mxu0 0.0
        %1644 = vmatpush1.msra.mxu0 0.0
        %1645 = vmatprep.subr.mxu0 0.0
        %1646 = vmatpush1.msra.mxu0 0.0
        %1647 = vmatprep.subr.mxu0 0.0
        %1648 = vmatpush1.msra.mxu0 0.0
        %1649 = vmatprep.subr.mxu0 0.0
        %1650 = vmatpush1.msra.mxu0 0.0
        %1651 = vmatprep.subr.mxu0 0.0
        %1652 = vmatpush1.msra.mxu0 0.0
        %1653 = vmatprep.subr.mxu0 0.0
        %1654 = vmatpush1.msra.mxu0 0.0
        %1655 = vmatprep.subr.mxu0 0.0
        %1656 = vmatpush1.msra.mxu0 0.0
        %1657 = vmatprep.subr.mxu0 0.0
        %1658 = vmatpush1.msra.mxu0 0.0
        %1659 = vmatprep.subr.mxu0 0.0
        %1660 = vmatpush1.msra.mxu0 0.0
        %1661 = vmatprep.subr.mxu0 0.0
        %1662 = vmatpush1.msra.mxu0 0.0
        %1663 = vmatprep.subr.mxu0 0.0
        %1664 = vmatpush1.msra.mxu0 0.0
        %1665 = vmatprep.subr.mxu0 0.0
        %1666 = vmatpush1.msra.mxu0 0.0
        %1667 = vmatprep.subr.mxu0 0.0
        %1668 = vmatpush1.msra.mxu0 0.0
        %1669 = vmatprep.subr.mxu0 0.0
        %1670 = vmatpush1.msra.mxu0 0.0
        %1671 = vmatprep.subr.mxu0 0.0
        %1672 = vmatpush1.msra.mxu0 0.0
        %1673 = vmatprep.subr.mxu0 0.0
        %1674 = vmatpush1.msra.mxu0 0.0
        %1675 = vmatprep.subr.mxu0 0.0
        %1676 = vmatpush1.msra.mxu0 0.0
        %1677 = vmatprep.subr.mxu0 0.0
        %1678 = vmatpush1.msra.mxu0 0.0
        %1679 = vmatprep.subr.mxu0 0.0
        %1680 = vmatpush1.msra.mxu0 0.0
        %1681 = vmatprep.subr.mxu0 0.0
        %1682 = vmatpush1.msra.mxu0 0.0
        %1683 = vmatprep.subr.mxu0 0.0
        %1684 = vmatpush1.msra.mxu0 0.0
        %1685 = vmatprep.subr.mxu0 0.0
        %1686 = vmatpush1.msra.mxu0 0.0
        %1687 = vmatprep.mubr.f32.mxu0 0.0
        %1688 = vmatmul.mubr.f32.gmra.mrb[0].mxu0 %v1600
        %v1689 = vpop.f32.mrb[0].mxu0
        %v1690 = vadd.f32 0.0, %v1689
        %v1691 = vpop.f32.mrb[0].mxu0
        %1692 = vmatprep.mubr.f32.mxu0 0.0
        %1693 = vmatmul.mubr.f32.gmra.mrb[0].mxu0 %v1603
        %v1694 = vpop.f32.mrb[0].mxu0
        %v1695 = vadd.f32 0.0, %v1694
        %v1696 = vpop.f32.mrb[0].mxu0
        %1697 = vmatprep.mubr.f32.mxu0 0.0
        %1698 = vmatmul.mubr.f32.gmra.mrb[0].mxu0 %v1606
        %v1699 = vpop.f32.mrb[0].mxu0
        %v1700 = vadd.f32 0.0, %v1699
        %v1701 = vpop.f32.mrb[0].mxu0
        %1702 = vmatprep.mubr.f32.mxu0 0.0
        %1703 = vmatmul.mubr.f32.gmra.mrb[0].mxu0 %v1609
        %v1704 = vpop.f32.mrb[0].mxu0
        %v1705 = vadd.f32 0.0, %v1704
        %v1706 = vpop.f32.mrb[0].mxu0
        %1707 = vmatprep.mubr.f32.mxu0 0.0
        %1708 = vmatmul.mubr.f32.gmra.mrb[0].mxu0 %v1612
        %v1709 = vpop.f32.mrb[0].mxu0
        %v1710 = vadd.f32 0.0, %v1709
        %v1711 = vpop.f32.mrb[0].mxu0
        %1712 = vmatprep.mubr.f32.mxu0 0.0
        %1713 = vmatmul.mubr.f32.gmra.mrb[0].mxu0 %v1615
        %v1714 = vpop.f32.mrb[0].mxu0
        %v1715 = vadd.f32 0.0, %v1714
        %v1716 = vpop.f32.mrb[0].mxu0
        %1717 = vmatprep.mubr.f32.mxu0 0.0
        %1718 = vmatmul.mubr.f32.gmra.mrb[0].mxu0 %v1618
        %v1719 = vpop.f32.mrb[0].mxu0
        %v1720 = vadd.f32 0.0, %v1719
        %v1721 = vpop.f32.mrb[0].mxu0
        %1722 = vmatprep.mubr.f32.mxu0 0.0
        %1723 = vmatmul.mubr.f32.gmra.mrb[0].mxu0 %v1621
        %v1724 = vpop.f32.mrb[0].mxu0
        %v1725 = vadd.f32 0.0, %v1724
        %v1726 = vpop.f32.mrb[0].mxu0
        %1727 = vdwg.mxu0
        %v1728 = vadd.f32 %v1480, %v1690
        %v1729 = vadd.f32 %v1481, %v1695
        %v1730 = vadd.f32 %v1482, %v1700
        %v1731 = vadd.f32 %v1483, %v1705
        %v1732 = vadd.f32 %v1484, %v1710
        %v1733 = vadd.f32 %v1485, %v1715
        %v1734 = vadd.f32 %v1486, %v1720
        %v1735 = vadd.f32 %v1487, %v1725
        %1737 = vset.pattern.permute.xlu0 0
        %1738 = vperm.xlu0 %1737, %v505
        %v1739 = vpop.permute.xlu0 %1738
        %1742 = vset.pattern.permute.xlu0 0
        %1743 = vperm.xlu0 %1742, %v506
        %v1744 = vpop.permute.xlu0 %1743
        %1747 = vset.pattern.permute.xlu0 0
        %1748 = vperm.xlu0 %1747, %v507
        %v1749 = vpop.permute.xlu0 %1748
        %1752 = vset.pattern.permute.xlu0 0
        %1753 = vperm.xlu0 %1752, %v508
        %v1754 = vpop.permute.xlu0 %1753
        %1757 = vset.pattern.permute.xlu0 0
        %1758 = vperm.xlu0 %1757, %v509
        %v1759 = vpop.permute.xlu0 %1758
        %1762 = vset.pattern.permute.xlu0 0
        %1763 = vperm.xlu0 %1762, %v510
        %v1764 = vpop.permute.xlu0 %1763
        %1767 = vset.pattern.permute.xlu0 0
        %1768 = vperm.xlu0 %1767, %v511
        %v1769 = vpop.permute.xlu0 %1768
        %1772 = vset.pattern.permute.xlu0 0
        %1773 = vperm.xlu0 %1772, %v512
        %v1774 = vpop.permute.xlu0 %1773
        %v1776 = vadd.f32 %v1728, %v1739
        %v1777 = vadd.f32 %v1729, %v1744
        %v1778 = vadd.f32 %v1730, %v1749
        %v1779 = vadd.f32 %v1731, %v1754
        %v1780 = vadd.f32 %v1732, %v1759
        %v1781 = vadd.f32 %v1733, %v1764
        %v1782 = vadd.f32 %v1734, %v1769
        %v1783 = vadd.f32 %v1735, %v1774
        %v1784 = vld [vmem:[%s3] sm:$0xff]
        %v1785 = vld [vmem:[%s3 + $0x8] sm:$0xff]
        %v1786 = vld [vmem:[%s3 + $0x10] sm:$0xff]
        %v1787 = vld [vmem:[%s3 + $0x18] sm:$0xff]
        %v1788 = vld [vmem:[%s3 + $0x20] sm:$0xff]
        %v1789 = vld [vmem:[%s3 + $0x28] sm:$0xff]
        %v1790 = vld [vmem:[%s3 + $0x30] sm:$0xff]
        %v1791 = vld [vmem:[%s3 + $0x38] sm:$0xff]
        %v1792 = vld [vmem:[%s4] sm:$0xff]
        %v1793 = vld [vmem:[%s4 + $0x8] sm:$0xff]
        %v1794 = vld [vmem:[%s4 + $0x10] sm:$0xff]
        %v1795 = vld [vmem:[%s4 + $0x18] sm:$0xff]
        %v1796 = vld [vmem:[%s4 + $0x20] sm:$0xff]
        %v1797 = vld [vmem:[%s4 + $0x28] sm:$0xff]
        %v1798 = vld [vmem:[%s4 + $0x30] sm:$0xff]
        %v1799 = vld [vmem:[%s4 + $0x38] sm:$0xff]
        %vm1800 = vcmask 523264
        %v1802 = vsel %vm1800, %v497, 0
        %v1805 = vsel %vm1800, %v498, 0
        %v1808 = vsel %vm1800, %v499, 0
        %v1811 = vsel %vm1800, %v500, 0
        %v1814 = vsel %vm1800, %v501, 0
        %v1817 = vsel %vm1800, %v502, 0
        %v1820 = vsel %vm1800, %v503, 0
        %v1823 = vsel %vm1800, %v504, 0
        %1825 = vmatprep.subr.mxu0 0.0
        %1826 = vmatpush1.msra.mxu0 %v1776
        %1827 = vmatprep.subr.mxu0 0.0
        %1828 = vmatpush1.msra.mxu0 %v1777
        %1829 = vmatprep.subr.mxu0 0.0
        %1830 = vmatpush1.msra.mxu0 %v1778
        %1831 = vmatprep.subr.mxu0 0.0
        %1832 = vmatpush1.msra.mxu0 %v1779
        %1833 = vmatprep.subr.mxu0 0.0
        %1834 = vmatpush1.msra.mxu0 %v1780
        %1835 = vmatprep.subr.mxu0 0.0
        %1836 = vmatpush1.msra.mxu0 %v1781
        %1837 = vmatprep.subr.mxu0 0.0
        %1838 = vmatpush1.msra.mxu0 %v1782
        %1839 = vmatprep.subr.mxu0 0.0
        %1840 = vmatpush1.msra.mxu0 %v1783
        %1841 = vmatprep.subr.mxu0 0.0
        %1842 = vmatpush1.msra.mxu0 0.0
        %1843 = vmatprep.subr.mxu0 0.0
        %1844 = vmatpush1.msra.mxu0 0.0
        %1845 = vmatprep.subr.mxu0 0.0
        %1846 = vmatpush1.msra.mxu0 0.0
        %1847 = vmatprep.subr.mxu0 0.0
        %1848 = vmatpush1.msra.mxu0 0.0
        %1849 = vmatprep.subr.mxu0 0.0
        %1850 = vmatpush1.msra.mxu0 0.0
        %1851 = vmatprep.subr.mxu0 0.0
        %1852 = vmatpush1.msra.mxu0 0.0
        %1853 = vmatprep.subr.mxu0 0.0
        %1854 = vmatpush1.msra.mxu0 0.0
        %1855 = vmatprep.subr.mxu0 0.0
        %1856 = vmatpush1.msra.mxu0 0.0
        %1857 = vmatprep.subr.mxu0 0.0
        %1858 = vmatpush1.msra.mxu0 0.0
        %1859 = vmatprep.subr.mxu0 0.0
        %1860 = vmatpush1.msra.mxu0 0.0
        %1861 = vmatprep.subr.mxu0 0.0
        %1862 = vmatpush1.msra.mxu0 0.0
        %1863 = vmatprep.subr.mxu0 0.0
        %1864 = vmatpush1.msra.mxu0 0.0
        %1865 = vmatprep.subr.mxu0 0.0
        %1866 = vmatpush1.msra.mxu0 0.0
        %1867 = vmatprep.subr.mxu0 0.0
        %1868 = vmatpush1.msra.mxu0 0.0
        %1869 = vmatprep.subr.mxu0 0.0
        %1870 = vmatpush1.msra.mxu0 0.0
        %1871 = vmatprep.subr.mxu0 0.0
        %1872 = vmatpush1.msra.mxu0 0.0
        %1873 = vmatprep.subr.mxu0 0.0
        %1874 = vmatpush1.msra.mxu0 0.0
        %1875 = vmatprep.subr.mxu0 0.0
        %1876 = vmatpush1.msra.mxu0 0.0
        %1877 = vmatprep.subr.mxu0 0.0
        %1878 = vmatpush1.msra.mxu0 0.0
        %1879 = vmatprep.subr.mxu0 0.0
        %1880 = vmatpush1.msra.mxu0 0.0
        %1881 = vmatprep.subr.mxu0 0.0
        %1882 = vmatpush1.msra.mxu0 0.0
        %1883 = vmatprep.subr.mxu0 0.0
        %1884 = vmatpush1.msra.mxu0 0.0
        %1885 = vmatprep.subr.mxu0 0.0
        %1886 = vmatpush1.msra.mxu0 0.0
        %1887 = vmatprep.subr.mxu0 0.0
        %1888 = vmatpush1.msra.mxu0 0.0
        %1889 = vmatprep.mubr.f32.mxu0 0.0
        %1890 = vmatmul.mubr.f32.gmra.mrb[0].mxu0 %v1802
        %v1891 = vpop.f32.mrb[0].mxu0
        %v1892 = vadd.f32 0.0, %v1891
        %v1893 = vpop.f32.mrb[0].mxu0
        %1894 = vmatprep.mubr.f32.mxu0 0.0
        %1895 = vmatmul.mubr.f32.gmra.mrb[0].mxu0 %v1805
        %v1896 = vpop.f32.mrb[0].mxu0
        %v1897 = vadd.f32 0.0, %v1896
        %v1898 = vpop.f32.mrb[0].mxu0
        %1899 = vmatprep.mubr.f32.mxu0 0.0
        %1900 = vmatmul.mubr.f32.gmra.mrb[0].mxu0 %v1808
        %v1901 = vpop.f32.mrb[0].mxu0
        %v1902 = vadd.f32 0.0, %v1901
        %v1903 = vpop.f32.mrb[0].mxu0
        %1904 = vmatprep.mubr.f32.mxu0 0.0
        %1905 = vmatmul.mubr.f32.gmra.mrb[0].mxu0 %v1811
        %v1906 = vpop.f32.mrb[0].mxu0
        %v1907 = vadd.f32 0.0, %v1906
        %v1908 = vpop.f32.mrb[0].mxu0
        %1909 = vmatprep.mubr.f32.mxu0 0.0
        %1910 = vmatmul.mubr.f32.gmra.mrb[0].mxu0 %v1814
        %v1911 = vpop.f32.mrb[0].mxu0
        %v1912 = vadd.f32 0.0, %v1911
        %v1913 = vpop.f32.mrb[0].mxu0
        %1914 = vmatprep.mubr.f32.mxu0 0.0
        %1915 = vmatmul.mubr.f32.gmra.mrb[0].mxu0 %v1817
        %v1916 = vpop.f32.mrb[0].mxu0
        %v1917 = vadd.f32 0.0, %v1916
        %v1918 = vpop.f32.mrb[0].mxu0
        %1919 = vmatprep.mubr.f32.mxu0 0.0
        %1920 = vmatmul.mubr.f32.gmra.mrb[0].mxu0 %v1820
        %v1921 = vpop.f32.mrb[0].mxu0
        %v1922 = vadd.f32 0.0, %v1921
        %v1923 = vpop.f32.mrb[0].mxu0
        %1924 = vmatprep.mubr.f32.mxu0 0.0
        %1925 = vmatmul.mubr.f32.gmra.mrb[0].mxu0 %v1823
        %v1926 = vpop.f32.mrb[0].mxu0
        %v1927 = vadd.f32 0.0, %v1926
        %v1928 = vpop.f32.mrb[0].mxu0
        %1929 = vdwg.mxu0
        %1930 = vadd.xlane.f32.xlu0 %v1892
        %v1931 = vpop.xlane.xlu0 %1930
        %1932 = vadd.xlane.f32.xlu0 %v1897
        %v1933 = vpop.xlane.xlu0 %1932
        %1934 = vadd.xlane.f32.xlu0 %v1902
        %v1935 = vpop.xlane.xlu0 %1934
        %1936 = vadd.xlane.f32.xlu0 %v1907
        %v1937 = vpop.xlane.xlu0 %1936
        %1938 = vadd.xlane.f32.xlu0 %v1912
        %v1939 = vpop.xlane.xlu0 %1938
        %1940 = vadd.xlane.f32.xlu0 %v1917
        %v1941 = vpop.xlane.xlu0 %1940
        %1942 = vadd.xlane.f32.xlu0 %v1922
        %v1943 = vpop.xlane.xlu0 %1942
        %1944 = vadd.xlane.f32.xlu0 %v1927
        %v1945 = vpop.xlane.xlu0 %1944
        %v1946 = vmul.f32 %v1931, 0.0009765625
        %v1947 = vmul.f32 %v1933, 0.0009765625
        %v1948 = vmul.f32 %v1935, 0.0009765625
        %v1949 = vmul.f32 %v1937, 0.0009765625
        %v1950 = vmul.f32 %v1939, 0.0009765625
        %v1951 = vmul.f32 %v1941, 0.0009765625
        %v1952 = vmul.f32 %v1943, 0.0009765625
        %v1953 = vmul.f32 %v1945, 0.0009765625
        %v1954 = vsub.f32 %v1776, %v1946
        %v1955 = vsub.f32 %v1777, %v1947
        %v1956 = vsub.f32 %v1778, %v1948
        %v1957 = vsub.f32 %v1779, %v1949
        %v1958 = vsub.f32 %v1780, %v1950
        %v1959 = vsub.f32 %v1781, %v1951
        %v1960 = vsub.f32 %v1782, %v1952
        %v1961 = vsub.f32 %v1783, %v1953
        %v1962 = vmul.f32 %v1954, %v1954
        %v1963 = vmul.f32 %v1955, %v1955
        %v1964 = vmul.f32 %v1956, %v1956
        %v1965 = vmul.f32 %v1957, %v1957
        %v1966 = vmul.f32 %v1958, %v1958
        %v1967 = vmul.f32 %v1959, %v1959
        %v1968 = vmul.f32 %v1960, %v1960
        %v1969 = vmul.f32 %v1961, %v1961
        %1970 = vmatprep.subr.mxu0 0.0
        %1971 = vmatpush1.msra.mxu0 %v1962
        %1972 = vmatprep.subr.mxu0 0.0
        %1973 = vmatpush1.msra.mxu0 %v1963
        %1974 = vmatprep.subr.mxu0 0.0
        %1975 = vmatpush1.msra.mxu0 %v1964
        %1976 = vmatprep.subr.mxu0 0.0
        %1977 = vmatpush1.msra.mxu0 %v1965
        %1978 = vmatprep.subr.mxu0 0.0
        %1979 = vmatpush1.msra.mxu0 %v1966
        %1980 = vmatprep.subr.mxu0 0.0
        %1981 = vmatpush1.msra.mxu0 %v1967
        %1982 = vmatprep.subr.mxu0 0.0
        %1983 = vmatpush1.msra.mxu0 %v1968
        %1984 = vmatprep.subr.mxu0 0.0
        %1985 = vmatpush1.msra.mxu0 %v1969
        %1986 = vmatprep.subr.mxu0 0.0
        %1987 = vmatpush1.msra.mxu0 0.0
        %1988 = vmatprep.subr.mxu0 0.0
        %1989 = vmatpush1.msra.mxu0 0.0
        %1990 = vmatprep.subr.mxu0 0.0
        %1991 = vmatpush1.msra.mxu0 0.0
        %1992 = vmatprep.subr.mxu0 0.0
        %1993 = vmatpush1.msra.mxu0 0.0
        %1994 = vmatprep.subr.mxu0 0.0
        %1995 = vmatpush1.msra.mxu0 0.0
        %1996 = vmatprep.subr.mxu0 0.0
        %1997 = vmatpush1.msra.mxu0 0.0
        %1998 = vmatprep.subr.mxu0 0.0
        %1999 = vmatpush1.msra.mxu0 0.0
        %2000 = vmatprep.subr.mxu0 0.0
        %2001 = vmatpush1.msra.mxu0 0.0
        %2002 = vmatprep.subr.mxu0 0.0
        %2003 = vmatpush1.msra.mxu0 0.0
        %2004 = vmatprep.subr.mxu0 0.0
        %2005 = vmatpush1.msra.mxu0 0.0
        %2006 = vmatprep.subr.mxu0 0.0
        %2007 = vmatpush1.msra.mxu0 0.0
        %2008 = vmatprep.subr.mxu0 0.0
        %2009 = vmatpush1.msra.mxu0 0.0
        %2010 = vmatprep.subr.mxu0 0.0
        %2011 = vmatpush1.msra.mxu0 0.0
        %2012 = vmatprep.subr.mxu0 0.0
        %2013 = vmatpush1.msra.mxu0 0.0
        %2014 = vmatprep.subr.mxu0 0.0
        %2015 = vmatpush1.msra.mxu0 0.0
        %2016 = vmatprep.subr.mxu0 0.0
        %2017 = vmatpush1.msra.mxu0 0.0
        %2018 = vmatprep.subr.mxu0 0.0
        %2019 = vmatpush1.msra.mxu0 0.0
        %2020 = vmatprep.subr.mxu0 0.0
        %2021 = vmatpush1.msra.mxu0 0.0
        %2022 = vmatprep.subr.mxu0 0.0
        %2023 = vmatpush1.msra.mxu0 0.0
        %2024 = vmatprep.subr.mxu0 0.0
        %2025 = vmatpush1.msra.mxu0 0.0
        %2026 = vmatprep.subr.mxu0 0.0
        %2027 = vmatpush1.msra.mxu0 0.0
        %2028 = vmatprep.subr.mxu0 0.0
        %2029 = vmatpush1.msra.mxu0 0.0
        %2030 = vmatprep.subr.mxu0 0.0
        %2031 = vmatpush1.msra.mxu0 0.0
        %2032 = vmatprep.subr.mxu0 0.0
        %2033 = vmatpush1.msra.mxu0 0.0
        %2034 = vmatprep.mubr.f32.mxu0 0.0
        %2035 = vmatmul.mubr.f32.gmra.mrb[0].mxu0 %v1802
        %v2036 = vpop.f32.mrb[0].mxu0
        %v2037 = vadd.f32 0.0, %v2036
        %v2038 = vpop.f32.mrb[0].mxu0
        %2039 = vmatprep.mubr.f32.mxu0 0.0
        %2040 = vmatmul.mubr.f32.gmra.mrb[0].mxu0 %v1805
        %v2041 = vpop.f32.mrb[0].mxu0
        %v2042 = vadd.f32 0.0, %v2041
        %v2043 = vpop.f32.mrb[0].mxu0
        %2044 = vmatprep.mubr.f32.mxu0 0.0
        %2045 = vmatmul.mubr.f32.gmra.mrb[0].mxu0 %v1808
        %v2046 = vpop.f32.mrb[0].mxu0
        %v2047 = vadd.f32 0.0, %v2046
        %v2048 = vpop.f32.mrb[0].mxu0
        %2049 = vmatprep.mubr.f32.mxu0 0.0
        %2050 = vmatmul.mubr.f32.gmra.mrb[0].mxu0 %v1811
        %v2051 = vpop.f32.mrb[0].mxu0
        %v2052 = vadd.f32 0.0, %v2051
        %v2053 = vpop.f32.mrb[0].mxu0
        %2054 = vmatprep.mubr.f32.mxu0 0.0
        %2055 = vmatmul.mubr.f32.gmra.mrb[0].mxu0 %v1814
        %v2056 = vpop.f32.mrb[0].mxu0
        %v2057 = vadd.f32 0.0, %v2056
        %v2058 = vpop.f32.mrb[0].mxu0
        %2059 = vmatprep.mubr.f32.mxu0 0.0
        %2060 = vmatmul.mubr.f32.gmra.mrb[0].mxu0 %v1817
        %v2061 = vpop.f32.mrb[0].mxu0
        %v2062 = vadd.f32 0.0, %v2061
        %v2063 = vpop.f32.mrb[0].mxu0
        %2064 = vmatprep.mubr.f32.mxu0 0.0
        %2065 = vmatmul.mubr.f32.gmra.mrb[0].mxu0 %v1820
        %v2066 = vpop.f32.mrb[0].mxu0
        %v2067 = vadd.f32 0.0, %v2066
        %v2068 = vpop.f32.mrb[0].mxu0
        %2069 = vmatprep.mubr.f32.mxu0 0.0
        %2070 = vmatmul.mubr.f32.gmra.mrb[0].mxu0 %v1823
        %v2071 = vpop.f32.mrb[0].mxu0
        %v2072 = vadd.f32 0.0, %v2071
        %v2073 = vpop.f32.mrb[0].mxu0
        %2074 = vdwg.mxu0
        %2075 = vadd.xlane.f32.xlu0 %v2037
        %v2076 = vpop.xlane.xlu0 %2075
        %2077 = vadd.xlane.f32.xlu0 %v2042
        %v2078 = vpop.xlane.xlu0 %2077
        %2079 = vadd.xlane.f32.xlu0 %v2047
        %v2080 = vpop.xlane.xlu0 %2079
        %2081 = vadd.xlane.f32.xlu0 %v2052
        %v2082 = vpop.xlane.xlu0 %2081
        %2083 = vadd.xlane.f32.xlu0 %v2057
        %v2084 = vpop.xlane.xlu0 %2083
        %2085 = vadd.xlane.f32.xlu0 %v2062
        %v2086 = vpop.xlane.xlu0 %2085
        %2087 = vadd.xlane.f32.xlu0 %v2067
        %v2088 = vpop.xlane.xlu0 %2087
        %2089 = vadd.xlane.f32.xlu0 %v2072
        %v2090 = vpop.xlane.xlu0 %2089
        %v2091 = vmul.f32 %v2076, 0.0009765625
        %v2092 = vmul.f32 %v2078, 0.0009765625
        %v2093 = vmul.f32 %v2080, 0.0009765625
        %v2094 = vmul.f32 %v2082, 0.0009765625
        %v2095 = vmul.f32 %v2084, 0.0009765625
        %v2096 = vmul.f32 %v2086, 0.0009765625
        %v2097 = vmul.f32 %v2088, 0.0009765625
        %v2098 = vmul.f32 %v2090, 0.0009765625
        %v2099 = vadd.f32 %v2091, 1e-05
        %v2100 = vadd.f32 %v2092, 1e-05
        %v2101 = vadd.f32 %v2093, 1e-05
        %v2102 = vadd.f32 %v2094, 1e-05
        %v2103 = vadd.f32 %v2095, 1e-05
        %v2104 = vadd.f32 %v2096, 1e-05
        %v2105 = vadd.f32 %v2097, 1e-05
        %v2106 = vadd.f32 %v2098, 1e-05
        %v2107 = vrsqrt.pop %v2099
        %v2108 = vrsqrt.pop %v2100
        %v2109 = vrsqrt.pop %v2101
        %v2110 = vrsqrt.pop %v2102
        %v2111 = vrsqrt.pop %v2103
        %v2112 = vrsqrt.pop %v2104
        %v2113 = vrsqrt.pop %v2105
        %v2114 = vrsqrt.pop %v2106
        %v2115 = vmul.f32 %v2107, %v1784
        %v2116 = vmul.f32 %v2108, %v1785
        %v2117 = vmul.f32 %v2109, %v1786
        %v2118 = vmul.f32 %v2110, %v1787
        %v2119 = vmul.f32 %v2111, %v1788
        %v2120 = vmul.f32 %v2112, %v1789
        %v2121 = vmul.f32 %v2113, %v1790
        %v2122 = vmul.f32 %v2114, %v1791
        %2124 = vset.pattern.permute.xlu0 0
        %2125 = vperm.xlu0 %2124, %v2115
        %v2126 = vpop.permute.xlu0 %2125
        %2129 = vset.pattern.permute.xlu0 0
        %2130 = vperm.xlu0 %2129, %v2116
        %v2131 = vpop.permute.xlu0 %2130
        %2134 = vset.pattern.permute.xlu0 0
        %2135 = vperm.xlu0 %2134, %v2117
        %v2136 = vpop.permute.xlu0 %2135
        %2139 = vset.pattern.permute.xlu0 0
        %2140 = vperm.xlu0 %2139, %v2118
        %v2141 = vpop.permute.xlu0 %2140
        %2144 = vset.pattern.permute.xlu0 0
        %2145 = vperm.xlu0 %2144, %v2119
        %v2146 = vpop.permute.xlu0 %2145
        %2149 = vset.pattern.permute.xlu0 0
        %2150 = vperm.xlu0 %2149, %v2120
        %v2151 = vpop.permute.xlu0 %2150
        %2154 = vset.pattern.permute.xlu0 0
        %2155 = vperm.xlu0 %2154, %v2121
        %v2156 = vpop.permute.xlu0 %2155
        %2159 = vset.pattern.permute.xlu0 0
        %2160 = vperm.xlu0 %2159, %v2122
        %v2161 = vpop.permute.xlu0 %2160
        %v2163 = vmul.f32 %v1954, %v2126
        %v2164 = vmul.f32 %v1955, %v2131
        %v2165 = vmul.f32 %v1956, %v2136
        %v2166 = vmul.f32 %v1957, %v2141
        %v2167 = vmul.f32 %v1958, %v2146
        %v2168 = vmul.f32 %v1959, %v2151
        %v2169 = vmul.f32 %v1960, %v2156
        %v2170 = vmul.f32 %v1961, %v2161
        %2172 = vset.pattern.permute.xlu0 0
        %2173 = vperm.xlu0 %2172, %v1792
        %v2174 = vpop.permute.xlu0 %2173
        %2177 = vset.pattern.permute.xlu0 0
        %2178 = vperm.xlu0 %2177, %v1793
        %v2179 = vpop.permute.xlu0 %2178
        %2182 = vset.pattern.permute.xlu0 0
        %2183 = vperm.xlu0 %2182, %v1794
        %v2184 = vpop.permute.xlu0 %2183
        %2187 = vset.pattern.permute.xlu0 0
        %2188 = vperm.xlu0 %2187, %v1795
        %v2189 = vpop.permute.xlu0 %2188
        %2192 = vset.pattern.permute.xlu0 0
        %2193 = vperm.xlu0 %2192, %v1796
        %v2194 = vpop.permute.xlu0 %2193
        %2197 = vset.pattern.permute.xlu0 0
        %2198 = vperm.xlu0 %2197, %v1797
        %v2199 = vpop.permute.xlu0 %2198
        %2202 = vset.pattern.permute.xlu0 0
        %2203 = vperm.xlu0 %2202, %v1798
        %v2204 = vpop.permute.xlu0 %2203
        %2207 = vset.pattern.permute.xlu0 0
        %2208 = vperm.xlu0 %2207, %v1799
        %v2209 = vpop.permute.xlu0 %2208
        %v2211 = vadd.f32 %v2163, %v2174
        %v2212 = vadd.f32 %v2164, %v2179
        %v2213 = vadd.f32 %v2165, %v2184
        %v2214 = vadd.f32 %v2166, %v2189
        %v2215 = vadd.f32 %v2167, %v2194
        %v2216 = vadd.f32 %v2168, %v2199
        %v2217 = vadd.f32 %v2169, %v2204
        %v2218 = vadd.f32 %v2170, %v2209
        %v2219 = vmax.f32 %v2211, 0.0
        %v2220 = vmax.f32 %v2212, 0.0
        %v2221 = vmax.f32 %v2213, 0.0
        %v2222 = vmax.f32 %v2214, 0.0
        %v2223 = vmax.f32 %v2215, 0.0
        %v2224 = vmax.f32 %v2216, 0.0
        %v2225 = vmax.f32 %v2217, 0.0
        %v2226 = vmax.f32 %v2218, 0.0
        %v2227 = vld [vmem:[%s6] sm:$0xff]
        %v2228 = vld [vmem:[%s6 + $0x8] sm:$0xff]
        %v2229 = vld [vmem:[%s6 + $0x10] sm:$0xff]
        %v2230 = vld [vmem:[%s6 + $0x18] sm:$0xff]
        %v2231 = vld [vmem:[%s6 + $0x20] sm:$0xff]
        %v2232 = vld [vmem:[%s6 + $0x28] sm:$0xff]
        %v2233 = vld [vmem:[%s6 + $0x30] sm:$0xff]
        %v2234 = vld [vmem:[%s6 + $0x38] sm:$0xff]
        %2235 = vmatprep.subr.mxu0 0.0
        %2236 = vmatpush1.msra.mxu0 %v513
        %2237 = vmatprep.subr.mxu0 0.0
        %2238 = vmatpush1.msra.mxu0 %v514
        %2239 = vmatprep.subr.mxu0 0.0
        %2240 = vmatpush1.msra.mxu0 %v515
        %2241 = vmatprep.subr.mxu0 0.0
        %2242 = vmatpush1.msra.mxu0 %v516
        %2243 = vmatprep.subr.mxu0 0.0
        %2244 = vmatpush1.msra.mxu0 %v517
        %2245 = vmatprep.subr.mxu0 0.0
        %2246 = vmatpush1.msra.mxu0 %v518
        %2247 = vmatprep.subr.mxu0 0.0
        %2248 = vmatpush1.msra.mxu0 %v519
        %2249 = vmatprep.subr.mxu0 0.0
        %2250 = vmatpush1.msra.mxu0 %v520
        %2251 = vmatprep.subr.mxu0 0.0
        %2252 = vmatpush1.msra.mxu0 %v521
        %2253 = vmatprep.subr.mxu0 0.0
        %2254 = vmatpush1.msra.mxu0 %v522
        %2255 = vmatprep.subr.mxu0 0.0
        %2256 = vmatpush1.msra.mxu0 %v523
        %2257 = vmatprep.subr.mxu0 0.0
        %2258 = vmatpush1.msra.mxu0 %v524
        %2259 = vmatprep.subr.mxu0 0.0
        %2260 = vmatpush1.msra.mxu0 %v525
        %2261 = vmatprep.subr.mxu0 0.0
        %2262 = vmatpush1.msra.mxu0 %v526
        %2263 = vmatprep.subr.mxu0 0.0
        %2264 = vmatpush1.msra.mxu0 %v527
        %2265 = vmatprep.subr.mxu0 0.0
        %2266 = vmatpush1.msra.mxu0 %v528
        %2267 = vmatprep.subr.mxu0 0.0
        %2268 = vmatpush1.msra.mxu0 0.0
        %2269 = vmatprep.subr.mxu0 0.0
        %2270 = vmatpush1.msra.mxu0 0.0
        %2271 = vmatprep.subr.mxu0 0.0
        %2272 = vmatpush1.msra.mxu0 0.0
        %2273 = vmatprep.subr.mxu0 0.0
        %2274 = vmatpush1.msra.mxu0 0.0
        %2275 = vmatprep.subr.mxu0 0.0
        %2276 = vmatpush1.msra.mxu0 0.0
        %2277 = vmatprep.subr.mxu0 0.0
        %2278 = vmatpush1.msra.mxu0 0.0
        %2279 = vmatprep.subr.mxu0 0.0
        %2280 = vmatpush1.msra.mxu0 0.0
        %2281 = vmatprep.subr.mxu0 0.0
        %2282 = vmatpush1.msra.mxu0 0.0
        %2283 = vmatprep.subr.mxu0 0.0
        %2284 = vmatpush1.msra.mxu0 0.0
        %2285 = vmatprep.subr.mxu0 0.0
        %2286 = vmatpush1.msra.mxu0 0.0
        %2287 = vmatprep.subr.mxu0 0.0
        %2288 = vmatpush1.msra.mxu0 0.0
        %2289 = vmatprep.subr.mxu0 0.0
        %2290 = vmatpush1.msra.mxu0 0.0
        %2291 = vmatprep.subr.mxu0 0.0
        %2292 = vmatpush1.msra.mxu0 0.0
        %2293 = vmatprep.subr.mxu0 0.0
        %2294 = vmatpush1.msra.mxu0 0.0
        %2295 = vmatprep.subr.mxu0 0.0
        %2296 = vmatpush1.msra.mxu0 0.0
        %2297 = vmatprep.subr.mxu0 0.0
        %2298 = vmatpush1.msra.mxu0 0.0
        %2299 = vmatprep.mubr.f32.mxu0 0.0
        %2300 = vmatmul.mubr.f32.gmra.mrb[0].mxu0 %v2219
        %v2301 = vpop.f32.mrb[0].mxu0
        %v2302 = vadd.f32 0.0, %v2301
        %v2303 = vpop.f32.mrb[0].mxu0
        %2304 = vmatprep.mubr.f32.mxu0 0.0
        %2305 = vmatmul.mubr.f32.gmra.mrb[0].mxu0 %v2220
        %v2306 = vpop.f32.mrb[0].mxu0
        %v2307 = vadd.f32 0.0, %v2306
        %v2308 = vpop.f32.mrb[0].mxu0
        %2309 = vmatprep.mubr.f32.mxu0 0.0
        %2310 = vmatmul.mubr.f32.gmra.mrb[0].mxu0 %v2221
        %v2311 = vpop.f32.mrb[0].mxu0
        %v2312 = vadd.f32 0.0, %v2311
        %v2313 = vpop.f32.mrb[0].mxu0
        %2314 = vmatprep.mubr.f32.mxu0 0.0
        %2315 = vmatmul.mubr.f32.gmra.mrb[0].mxu0 %v2222
        %v2316 = vpop.f32.mrb[0].mxu0
        %v2317 = vadd.f32 0.0, %v2316
        %v2318 = vpop.f32.mrb[0].mxu0
        %2319 = vmatprep.mubr.f32.mxu0 0.0
        %2320 = vmatmul.mubr.f32.gmra.mrb[0].mxu0 %v2223
        %v2321 = vpop.f32.mrb[0].mxu0
        %v2322 = vadd.f32 0.0, %v2321
        %v2323 = vpop.f32.mrb[0].mxu0
        %2324 = vmatprep.mubr.f32.mxu0 0.0
        %2325 = vmatmul.mubr.f32.gmra.mrb[0].mxu0 %v2224
        %v2326 = vpop.f32.mrb[0].mxu0
        %v2327 = vadd.f32 0.0, %v2326
        %v2328 = vpop.f32.mrb[0].mxu0
        %2329 = vmatprep.mubr.f32.mxu0 0.0
        %2330 = vmatmul.mubr.f32.gmra.mrb[0].mxu0 %v2225
        %v2331 = vpop.f32.mrb[0].mxu0
        %v2332 = vadd.f32 0.0, %v2331
        %v2333 = vpop.f32.mrb[0].mxu0
        %2334 = vmatprep.mubr.f32.mxu0 0.0
        %2335 = vmatmul.mubr.f32.gmra.mrb[0].mxu0 %v2226
        %v2336 = vpop.f32.mrb[0].mxu0
        %v2337 = vadd.f32 0.0, %v2336
        %v2338 = vpop.f32.mrb[0].mxu0
        %2339 = vdwg.mxu0
        %v2340 = vld [vmem:[%s5] sm:$0xff]
        %v2341 = vld [vmem:[%s5 + $0x8] sm:$0xff]
        %v2342 = vld [vmem:[%s5 + $0x10] sm:$0xff]
        %v2343 = vld [vmem:[%s5 + $0x18] sm:$0xff]
        %v2344 = vld [vmem:[%s5 + $0x20] sm:$0xff]
        %v2345 = vld [vmem:[%s5 + $0x28] sm:$0xff]
        %v2346 = vld [vmem:[%s5 + $0x30] sm:$0xff]
        %v2347 = vld [vmem:[%s5 + $0x38] sm:$0xff]
        %2348 = vmatprep.subr.mxu0 0.0
        %2349 = vmatpush1.msra.mxu0 %v623
        %2350 = vmatprep.subr.mxu0 0.0
        %2351 = vmatpush1.msra.mxu0 %v624
        %2352 = vmatprep.subr.mxu0 0.0
        %2353 = vmatpush1.msra.mxu0 %v625
        %2354 = vmatprep.subr.mxu0 0.0
        %2355 = vmatpush1.msra.mxu0 %v626
        %2356 = vmatprep.subr.mxu0 0.0
        %2357 = vmatpush1.msra.mxu0 %v627
        %2358 = vmatprep.subr.mxu0 0.0
        %2359 = vmatpush1.msra.mxu0 %v628
        %2360 = vmatprep.subr.mxu0 0.0
        %2361 = vmatpush1.msra.mxu0 %v629
        %2362 = vmatprep.subr.mxu0 0.0
        %2363 = vmatpush1.msra.mxu0 %v630
        %2364 = vmatprep.subr.mxu0 0.0
        %2365 = vmatpush1.msra.mxu0 %v631
        %2366 = vmatprep.subr.mxu0 0.0
        %2367 = vmatpush1.msra.mxu0 %v632
        %2368 = vmatprep.subr.mxu0 0.0
        %2369 = vmatpush1.msra.mxu0 %v633
        %2370 = vmatprep.subr.mxu0 0.0
        %2371 = vmatpush1.msra.mxu0 %v634
        %2372 = vmatprep.subr.mxu0 0.0
        %2373 = vmatpush1.msra.mxu0 %v635
        %2374 = vmatprep.subr.mxu0 0.0
        %2375 = vmatpush1.msra.mxu0 %v636
        %2376 = vmatprep.subr.mxu0 0.0
        %2377 = vmatpush1.msra.mxu0 %v637
        %2378 = vmatprep.subr.mxu0 0.0
        %2379 = vmatpush1.msra.mxu0 %v638
        %2380 = vmatprep.subr.mxu0 0.0
        %2381 = vmatpush1.msra.mxu0 0.0
        %2382 = vmatprep.subr.mxu0 0.0
        %2383 = vmatpush1.msra.mxu0 0.0
        %2384 = vmatprep.subr.mxu0 0.0
        %2385 = vmatpush1.msra.mxu0 0.0
        %2386 = vmatprep.subr.mxu0 0.0
        %2387 = vmatpush1.msra.mxu0 0.0
        %2388 = vmatprep.subr.mxu0 0.0
        %2389 = vmatpush1.msra.mxu0 0.0
        %2390 = vmatprep.subr.mxu0 0.0
        %2391 = vmatpush1.msra.mxu0 0.0
        %2392 = vmatprep.subr.mxu0 0.0
        %2393 = vmatpush1.msra.mxu0 0.0
        %2394 = vmatprep.subr.mxu0 0.0
        %2395 = vmatpush1.msra.mxu0 0.0
        %2396 = vmatprep.subr.mxu0 0.0
        %2397 = vmatpush1.msra.mxu0 0.0
        %2398 = vmatprep.subr.mxu0 0.0
        %2399 = vmatpush1.msra.mxu0 0.0
        %2400 = vmatprep.subr.mxu0 0.0
        %2401 = vmatpush1.msra.mxu0 0.0
        %2402 = vmatprep.subr.mxu0 0.0
        %2403 = vmatpush1.msra.mxu0 0.0
        %2404 = vmatprep.subr.mxu0 0.0
        %2405 = vmatpush1.msra.mxu0 0.0
        %2406 = vmatprep.subr.mxu0 0.0
        %2407 = vmatpush1.msra.mxu0 0.0
        %2408 = vmatprep.subr.mxu0 0.0
        %2409 = vmatpush1.msra.mxu0 0.0
        %2410 = vmatprep.subr.mxu0 0.0
        %2411 = vmatpush1.msra.mxu0 0.0
        %2412 = vmatprep.mubr.f32.mxu0 0.0
        %2413 = vmatmul.mubr.f32.gmra.mrb[0].mxu0 %v2219
        %v2414 = vpop.f32.mrb[0].mxu0
        %v2415 = vadd.f32 0.0, %v2414
        %v2416 = vpop.f32.mrb[0].mxu0
        %2417 = vmatprep.mubr.f32.mxu0 0.0
        %2418 = vmatmul.mubr.f32.gmra.mrb[0].mxu0 %v2220
        %v2419 = vpop.f32.mrb[0].mxu0
        %v2420 = vadd.f32 0.0, %v2419
        %v2421 = vpop.f32.mrb[0].mxu0
        %2422 = vmatprep.mubr.f32.mxu0 0.0
        %2423 = vmatmul.mubr.f32.gmra.mrb[0].mxu0 %v2221
        %v2424 = vpop.f32.mrb[0].mxu0
        %v2425 = vadd.f32 0.0, %v2424
        %v2426 = vpop.f32.mrb[0].mxu0
        %2427 = vmatprep.mubr.f32.mxu0 0.0
        %2428 = vmatmul.mubr.f32.gmra.mrb[0].mxu0 %v2222
        %v2429 = vpop.f32.mrb[0].mxu0
        %v2430 = vadd.f32 0.0, %v2429
        %v2431 = vpop.f32.mrb[0].mxu0
        %2432 = vmatprep.mubr.f32.mxu0 0.0
        %2433 = vmatmul.mubr.f32.gmra.mrb[0].mxu0 %v2223
        %v2434 = vpop.f32.mrb[0].mxu0
        %v2435 = vadd.f32 0.0, %v2434
        %v2436 = vpop.f32.mrb[0].mxu0
        %2437 = vmatprep.mubr.f32.mxu0 0.0
        %2438 = vmatmul.mubr.f32.gmra.mrb[0].mxu0 %v2224
        %v2439 = vpop.f32.mrb[0].mxu0
        %v2440 = vadd.f32 0.0, %v2439
        %v2441 = vpop.f32.mrb[0].mxu0
        %2442 = vmatprep.mubr.f32.mxu0 0.0
        %2443 = vmatmul.mubr.f32.gmra.mrb[0].mxu0 %v2225
        %v2444 = vpop.f32.mrb[0].mxu0
        %v2445 = vadd.f32 0.0, %v2444
        %v2446 = vpop.f32.mrb[0].mxu0
        %2447 = vmatprep.mubr.f32.mxu0 0.0
        %2448 = vmatmul.mubr.f32.gmra.mrb[0].mxu0 %v2226
        %v2449 = vpop.f32.mrb[0].mxu0
        %v2450 = vadd.f32 0.0, %v2449
        %v2451 = vpop.f32.mrb[0].mxu0
        %2452 = vdwg.mxu0
        %s2453 = scalar_lea.vmem %s5, 64
        %v2454 = vld [vmem:[%s2453] sm:$0xff]
        %v2455 = vld [vmem:[%s2453 + $0x8] sm:$0xff]
        %v2456 = vld [vmem:[%s2453 + $0x10] sm:$0xff]
        %v2457 = vld [vmem:[%s2453 + $0x18] sm:$0xff]
        %v2458 = vld [vmem:[%s2453 + $0x20] sm:$0xff]
        %v2459 = vld [vmem:[%s2453 + $0x28] sm:$0xff]
        %v2460 = vld [vmem:[%s2453 + $0x30] sm:$0xff]
        %v2461 = vld [vmem:[%s2453 + $0x38] sm:$0xff]
        %v2463 = vsel %vm1800, %v2454, 0
        %v2466 = vsel %vm1800, %v2455, 0
        %v2469 = vsel %vm1800, %v2456, 0
        %v2472 = vsel %vm1800, %v2457, 0
        %v2475 = vsel %vm1800, %v2458, 0
        %v2478 = vsel %vm1800, %v2459, 0
        %v2481 = vsel %vm1800, %v2460, 0
        %v2484 = vsel %vm1800, %v2461, 0
        %2486 = vmatprep.subr.mxu0 0.0
        %2487 = vmatpush1.msra.mxu0 %v2415
        %2488 = vmatprep.subr.mxu0 0.0
        %2489 = vmatpush1.msra.mxu0 %v2420
        %2490 = vmatprep.subr.mxu0 0.0
        %2491 = vmatpush1.msra.mxu0 %v2425
        %2492 = vmatprep.subr.mxu0 0.0
        %2493 = vmatpush1.msra.mxu0 %v2430
        %2494 = vmatprep.subr.mxu0 0.0
        %2495 = vmatpush1.msra.mxu0 %v2435
        %2496 = vmatprep.subr.mxu0 0.0
        %2497 = vmatpush1.msra.mxu0 %v2440
        %2498 = vmatprep.subr.mxu0 0.0
        %2499 = vmatpush1.msra.mxu0 %v2445
        %2500 = vmatprep.subr.mxu0 0.0
        %2501 = vmatpush1.msra.mxu0 %v2450
        %2502 = vmatprep.subr.mxu0 0.0
        %2503 = vmatpush1.msra.mxu0 0.0
        %2504 = vmatprep.subr.mxu0 0.0
        %2505 = vmatpush1.msra.mxu0 0.0
        %2506 = vmatprep.subr.mxu0 0.0
        %2507 = vmatpush1.msra.mxu0 0.0
        %2508 = vmatprep.subr.mxu0 0.0
        %2509 = vmatpush1.msra.mxu0 0.0
        %2510 = vmatprep.subr.mxu0 0.0
        %2511 = vmatpush1.msra.mxu0 0.0
        %2512 = vmatprep.subr.mxu0 0.0
        %2513 = vmatpush1.msra.mxu0 0.0
        %2514 = vmatprep.subr.mxu0 0.0
        %2515 = vmatpush1.msra.mxu0 0.0
        %2516 = vmatprep.subr.mxu0 0.0
        %2517 = vmatpush1.msra.mxu0 0.0
        %2518 = vmatprep.subr.mxu0 0.0
        %2519 = vmatpush1.msra.mxu0 0.0
        %2520 = vmatprep.subr.mxu0 0.0
        %2521 = vmatpush1.msra.mxu0 0.0
        %2522 = vmatprep.subr.mxu0 0.0
        %2523 = vmatpush1.msra.mxu0 0.0
        %2524 = vmatprep.subr.mxu0 0.0
        %2525 = vmatpush1.msra.mxu0 0.0
        %2526 = vmatprep.subr.mxu0 0.0
        %2527 = vmatpush1.msra.mxu0 0.0
        %2528 = vmatprep.subr.mxu0 0.0
        %2529 = vmatpush1.msra.mxu0 0.0
        %2530 = vmatprep.subr.mxu0 0.0
        %2531 = vmatpush1.msra.mxu0 0.0
        %2532 = vmatprep.subr.mxu0 0.0
        %2533 = vmatpush1.msra.mxu0 0.0
        %2534 = vmatprep.subr.mxu0 0.0
        %2535 = vmatpush1.msra.mxu0 0.0
        %2536 = vmatprep.subr.mxu0 0.0
        %2537 = vmatpush1.msra.mxu0 0.0
        %2538 = vmatprep.subr.mxu0 0.0
        %2539 = vmatpush1.msra.mxu0 0.0
        %2540 = vmatprep.subr.mxu0 0.0
        %2541 = vmatpush1.msra.mxu0 0.0
        %2542 = vmatprep.subr.mxu0 0.0
        %2543 = vmatpush1.msra.mxu0 0.0
        %2544 = vmatprep.subr.mxu0 0.0
        %2545 = vmatpush1.msra.mxu0 0.0
        %2546 = vmatprep.subr.mxu0 0.0
        %2547 = vmatpush1.msra.mxu0 0.0
        %2548 = vmatprep.subr.mxu0 0.0
        %2549 = vmatpush1.msra.mxu0 0.0
        %2550 = vmatprep.mubr.f32.mxu0 0.0
        %2551 = vmatmul.mubr.f32.gmra.mrb[0].mxu0 %v2463
        %v2552 = vpop.f32.mrb[0].mxu0
        %v2553 = vadd.f32 0.0, %v2552
        %v2554 = vpop.f32.mrb[0].mxu0
        %2555 = vmatprep.mubr.f32.mxu0 0.0
        %2556 = vmatmul.mubr.f32.gmra.mrb[0].mxu0 %v2466
        %v2557 = vpop.f32.mrb[0].mxu0
        %v2558 = vadd.f32 0.0, %v2557
        %v2559 = vpop.f32.mrb[0].mxu0
        %2560 = vmatprep.mubr.f32.mxu0 0.0
        %2561 = vmatmul.mubr.f32.gmra.mrb[0].mxu0 %v2469
        %v2562 = vpop.f32.mrb[0].mxu0
        %v2563 = vadd.f32 0.0, %v2562
        %v2564 = vpop.f32.mrb[0].mxu0
        %2565 = vmatprep.mubr.f32.mxu0 0.0
        %2566 = vmatmul.mubr.f32.gmra.mrb[0].mxu0 %v2472
        %v2567 = vpop.f32.mrb[0].mxu0
        %v2568 = vadd.f32 0.0, %v2567
        %v2569 = vpop.f32.mrb[0].mxu0
        %2570 = vmatprep.mubr.f32.mxu0 0.0
        %2571 = vmatmul.mubr.f32.gmra.mrb[0].mxu0 %v2475
        %v2572 = vpop.f32.mrb[0].mxu0
        %v2573 = vadd.f32 0.0, %v2572
        %v2574 = vpop.f32.mrb[0].mxu0
        %2575 = vmatprep.mubr.f32.mxu0 0.0
        %2576 = vmatmul.mubr.f32.gmra.mrb[0].mxu0 %v2478
        %v2577 = vpop.f32.mrb[0].mxu0
        %v2578 = vadd.f32 0.0, %v2577
        %v2579 = vpop.f32.mrb[0].mxu0
        %2580 = vmatprep.mubr.f32.mxu0 0.0
        %2581 = vmatmul.mubr.f32.gmra.mrb[0].mxu0 %v2481
        %v2582 = vpop.f32.mrb[0].mxu0
        %v2583 = vadd.f32 0.0, %v2582
        %v2584 = vpop.f32.mrb[0].mxu0
        %2585 = vmatprep.mubr.f32.mxu0 0.0
        %2586 = vmatmul.mubr.f32.gmra.mrb[0].mxu0 %v2484
        %v2587 = vpop.f32.mrb[0].mxu0
        %v2588 = vadd.f32 0.0, %v2587
        %v2589 = vpop.f32.mrb[0].mxu0
        %2590 = vdwg.mxu0
        %v2592 = vsel %vm1800, %v2340, 0
        %v2595 = vsel %vm1800, %v2341, 0
        %v2598 = vsel %vm1800, %v2342, 0
        %v2601 = vsel %vm1800, %v2343, 0
        %v2604 = vsel %vm1800, %v2344, 0
        %v2607 = vsel %vm1800, %v2345, 0
        %v2610 = vsel %vm1800, %v2346, 0
        %v2613 = vsel %vm1800, %v2347, 0
        %2615 = vmatprep.subr.mxu0 0.0
        %2616 = vmatpush1.msra.mxu0 %v2302
        %2617 = vmatprep.subr.mxu0 0.0
        %2618 = vmatpush1.msra.mxu0 %v2307
        %2619 = vmatprep.subr.mxu0 0.0
        %2620 = vmatpush1.msra.mxu0 %v2312
        %2621 = vmatprep.subr.mxu0 0.0
        %2622 = vmatpush1.msra.mxu0 %v2317
        %2623 = vmatprep.subr.mxu0 0.0
        %2624 = vmatpush1.msra.mxu0 %v2322
        %2625 = vmatprep.subr.mxu0 0.0
        %2626 = vmatpush1.msra.mxu0 %v2327
        %2627 = vmatprep.subr.mxu0 0.0
        %2628 = vmatpush1.msra.mxu0 %v2332
        %2629 = vmatprep.subr.mxu0 0.0
        %2630 = vmatpush1.msra.mxu0 %v2337
        %2631 = vmatprep.subr.mxu0 0.0
        %2632 = vmatpush1.msra.mxu0 0.0
        %2633 = vmatprep.subr.mxu0 0.0
        %2634 = vmatpush1.msra.mxu0 0.0
        %2635 = vmatprep.subr.mxu0 0.0
        %2636 = vmatpush1.msra.mxu0 0.0
        %2637 = vmatprep.subr.mxu0 0.0
        %2638 = vmatpush1.msra.mxu0 0.0
        %2639 = vmatprep.subr.mxu0 0.0
        %2640 = vmatpush1.msra.mxu0 0.0
        %2641 = vmatprep.subr.mxu0 0.0
        %2642 = vmatpush1.msra.mxu0 0.0
        %2643 = vmatprep.subr.mxu0 0.0
        %2644 = vmatpush1.msra.mxu0 0.0
        %2645 = vmatprep.subr.mxu0 0.0
        %2646 = vmatpush1.msra.mxu0 0.0
        %2647 = vmatprep.subr.mxu0 0.0
        %2648 = vmatpush1.msra.mxu0 0.0
        %2649 = vmatprep.subr.mxu0 0.0
        %2650 = vmatpush1.msra.mxu0 0.0
        %2651 = vmatprep.subr.mxu0 0.0
        %2652 = vmatpush1.msra.mxu0 0.0
        %2653 = vmatprep.subr.mxu0 0.0
        %2654 = vmatpush1.msra.mxu0 0.0
        %2655 = vmatprep.subr.mxu0 0.0
        %2656 = vmatpush1.msra.mxu0 0.0
        %2657 = vmatprep.subr.mxu0 0.0
        %2658 = vmatpush1.msra.mxu0 0.0
        %2659 = vmatprep.subr.mxu0 0.0
        %2660 = vmatpush1.msra.mxu0 0.0
        %2661 = vmatprep.subr.mxu0 0.0
        %2662 = vmatpush1.msra.mxu0 0.0
        %2663 = vmatprep.subr.mxu0 0.0
        %2664 = vmatpush1.msra.mxu0 0.0
        %2665 = vmatprep.subr.mxu0 0.0
        %2666 = vmatpush1.msra.mxu0 0.0
        %2667 = vmatprep.subr.mxu0 0.0
        %2668 = vmatpush1.msra.mxu0 0.0
        %2669 = vmatprep.subr.mxu0 0.0
        %2670 = vmatpush1.msra.mxu0 0.0
        %2671 = vmatprep.subr.mxu0 0.0
        %2672 = vmatpush1.msra.mxu0 0.0
        %2673 = vmatprep.subr.mxu0 0.0
        %2674 = vmatpush1.msra.mxu0 0.0
        %2675 = vmatprep.subr.mxu0 0.0
        %2676 = vmatpush1.msra.mxu0 0.0
        %2677 = vmatprep.subr.mxu0 0.0
        %2678 = vmatpush1.msra.mxu0 0.0
        %2679 = vmatprep.mubr.f32.mxu0 0.0
        %2680 = vmatmul.mubr.f32.gmra.mrb[0].mxu0 %v2592
        %v2681 = vpop.f32.mrb[0].mxu0
        %v2682 = vadd.f32 %v2553, %v2681
        %v2683 = vpop.f32.mrb[0].mxu0
        %2684 = vmatprep.mubr.f32.mxu0 0.0
        %2685 = vmatmul.mubr.f32.gmra.mrb[0].mxu0 %v2595
        %v2686 = vpop.f32.mrb[0].mxu0
        %v2687 = vadd.f32 %v2558, %v2686
        %v2688 = vpop.f32.mrb[0].mxu0
        %2689 = vmatprep.mubr.f32.mxu0 0.0
        %2690 = vmatmul.mubr.f32.gmra.mrb[0].mxu0 %v2598
        %v2691 = vpop.f32.mrb[0].mxu0
        %v2692 = vadd.f32 %v2563, %v2691
        %v2693 = vpop.f32.mrb[0].mxu0
        %2694 = vmatprep.mubr.f32.mxu0 0.0
        %2695 = vmatmul.mubr.f32.gmra.mrb[0].mxu0 %v2601
        %v2696 = vpop.f32.mrb[0].mxu0
        %v2697 = vadd.f32 %v2568, %v2696
        %v2698 = vpop.f32.mrb[0].mxu0
        %2699 = vmatprep.mubr.f32.mxu0 0.0
        %2700 = vmatmul.mubr.f32.gmra.mrb[0].mxu0 %v2604
        %v2701 = vpop.f32.mrb[0].mxu0
        %v2702 = vadd.f32 %v2573, %v2701
        %v2703 = vpop.f32.mrb[0].mxu0
        %2704 = vmatprep.mubr.f32.mxu0 0.0
        %2705 = vmatmul.mubr.f32.gmra.mrb[0].mxu0 %v2607
        %v2706 = vpop.f32.mrb[0].mxu0
        %v2707 = vadd.f32 %v2578, %v2706
        %v2708 = vpop.f32.mrb[0].mxu0
        %2709 = vmatprep.mubr.f32.mxu0 0.0
        %2710 = vmatmul.mubr.f32.gmra.mrb[0].mxu0 %v2610
        %v2711 = vpop.f32.mrb[0].mxu0
        %v2712 = vadd.f32 %v2583, %v2711
        %v2713 = vpop.f32.mrb[0].mxu0
        %2714 = vmatprep.mubr.f32.mxu0 0.0
        %2715 = vmatmul.mubr.f32.gmra.mrb[0].mxu0 %v2613
        %v2716 = vpop.f32.mrb[0].mxu0
        %v2717 = vadd.f32 %v2588, %v2716
        %v2718 = vpop.f32.mrb[0].mxu0
        %2719 = vdwg.mxu0
        %2720 = vmatprep.subr.mxu0 0.0
        %2721 = vmatpush1.msra.mxu0 %v993
        %2722 = vmatprep.subr.mxu0 0.0
        %2723 = vmatpush1.msra.mxu0 %v994
        %2724 = vmatprep.subr.mxu0 0.0
        %2725 = vmatpush1.msra.mxu0 %v995
        %2726 = vmatprep.subr.mxu0 0.0
        %2727 = vmatpush1.msra.mxu0 %v996
        %2728 = vmatprep.subr.mxu0 0.0
        %2729 = vmatpush1.msra.mxu0 %v997
        %2730 = vmatprep.subr.mxu0 0.0
        %2731 = vmatpush1.msra.mxu0 %v998
        %2732 = vmatprep.subr.mxu0 0.0
        %2733 = vmatpush1.msra.mxu0 %v999
        %2734 = vmatprep.subr.mxu0 0.0
        %2735 = vmatpush1.msra.mxu0 %v1000
        %2736 = vmatprep.subr.mxu0 0.0
        %2737 = vmatpush1.msra.mxu0 %v1001
        %2738 = vmatprep.subr.mxu0 0.0
        %2739 = vmatpush1.msra.mxu0 %v1002
        %2740 = vmatprep.subr.mxu0 0.0
        %2741 = vmatpush1.msra.mxu0 %v1003
        %2742 = vmatprep.subr.mxu0 0.0
        %2743 = vmatpush1.msra.mxu0 %v1004
        %2744 = vmatprep.subr.mxu0 0.0
        %2745 = vmatpush1.msra.mxu0 %v1005
        %2746 = vmatprep.subr.mxu0 0.0
        %2747 = vmatpush1.msra.mxu0 %v1006
        %2748 = vmatprep.subr.mxu0 0.0
        %2749 = vmatpush1.msra.mxu0 %v1007
        %2750 = vmatprep.subr.mxu0 0.0
        %2751 = vmatpush1.msra.mxu0 %v1008
        %2752 = vmatprep.subr.mxu0 0.0
        %2753 = vmatpush1.msra.mxu0 0.0
        %2754 = vmatprep.subr.mxu0 0.0
        %2755 = vmatpush1.msra.mxu0 0.0
        %2756 = vmatprep.subr.mxu0 0.0
        %2757 = vmatpush1.msra.mxu0 0.0
        %2758 = vmatprep.subr.mxu0 0.0
        %2759 = vmatpush1.msra.mxu0 0.0
        %2760 = vmatprep.subr.mxu0 0.0
        %2761 = vmatpush1.msra.mxu0 0.0
        %2762 = vmatprep.subr.mxu0 0.0
        %2763 = vmatpush1.msra.mxu0 0.0
        %2764 = vmatprep.subr.mxu0 0.0
        %2765 = vmatpush1.msra.mxu0 0.0
        %2766 = vmatprep.subr.mxu0 0.0
        %2767 = vmatpush1.msra.mxu0 0.0
        %2768 = vmatprep.subr.mxu0 0.0
        %2769 = vmatpush1.msra.mxu0 0.0
        %2770 = vmatprep.subr.mxu0 0.0
        %2771 = vmatpush1.msra.mxu0 0.0
        %2772 = vmatprep.subr.mxu0 0.0
        %2773 = vmatpush1.msra.mxu0 0.0
        %2774 = vmatprep.subr.mxu0 0.0
        %2775 = vmatpush1.msra.mxu0 0.0
        %2776 = vmatprep.subr.mxu0 0.0
        %2777 = vmatpush1.msra.mxu0 0.0
        %2778 = vmatprep.subr.mxu0 0.0
        %2779 = vmatpush1.msra.mxu0 0.0
        %2780 = vmatprep.subr.mxu0 0.0
        %2781 = vmatpush1.msra.mxu0 0.0
        %2782 = vmatprep.subr.mxu0 0.0
        %2783 = vmatpush1.msra.mxu0 0.0
        %2784 = vmatprep.mubr.f32.mxu0 0.0
        %2785 = vmatmul.mubr.f32.gmra.mrb[0].mxu0 %v2219
        %v2786 = vpop.f32.mrb[0].mxu0
        %v2787 = vadd.f32 0.0, %v2786
        %v2788 = vpop.f32.mrb[0].mxu0
        %2789 = vmatprep.mubr.f32.mxu0 0.0
        %2790 = vmatmul.mubr.f32.gmra.mrb[0].mxu0 %v2220
        %v2791 = vpop.f32.mrb[0].mxu0
        %v2792 = vadd.f32 0.0, %v2791
        %v2793 = vpop.f32.mrb[0].mxu0
        %2794 = vmatprep.mubr.f32.mxu0 0.0
        %2795 = vmatmul.mubr.f32.gmra.mrb[0].mxu0 %v2221
        %v2796 = vpop.f32.mrb[0].mxu0
        %v2797 = vadd.f32 0.0, %v2796
        %v2798 = vpop.f32.mrb[0].mxu0
        %2799 = vmatprep.mubr.f32.mxu0 0.0
        %2800 = vmatmul.mubr.f32.gmra.mrb[0].mxu0 %v2222
        %v2801 = vpop.f32.mrb[0].mxu0
        %v2802 = vadd.f32 0.0, %v2801
        %v2803 = vpop.f32.mrb[0].mxu0
        %2804 = vmatprep.mubr.f32.mxu0 0.0
        %2805 = vmatmul.mubr.f32.gmra.mrb[0].mxu0 %v2223
        %v2806 = vpop.f32.mrb[0].mxu0
        %v2807 = vadd.f32 0.0, %v2806
        %v2808 = vpop.f32.mrb[0].mxu0
        %2809 = vmatprep.mubr.f32.mxu0 0.0
        %2810 = vmatmul.mubr.f32.gmra.mrb[0].mxu0 %v2224
        %v2811 = vpop.f32.mrb[0].mxu0
        %v2812 = vadd.f32 0.0, %v2811
        %v2813 = vpop.f32.mrb[0].mxu0
        %2814 = vmatprep.mubr.f32.mxu0 0.0
        %2815 = vmatmul.mubr.f32.gmra.mrb[0].mxu0 %v2225
        %v2816 = vpop.f32.mrb[0].mxu0
        %v2817 = vadd.f32 0.0, %v2816
        %v2818 = vpop.f32.mrb[0].mxu0
        %2819 = vmatprep.mubr.f32.mxu0 0.0
        %2820 = vmatmul.mubr.f32.gmra.mrb[0].mxu0 %v2226
        %v2821 = vpop.f32.mrb[0].mxu0
        %v2822 = vadd.f32 0.0, %v2821
        %v2823 = vpop.f32.mrb[0].mxu0
        %2824 = vdwg.mxu0
        %s2825 = scalar_lea.vmem %s5, 128
        %v2826 = vld [vmem:[%s2825] sm:$0xff]
        %v2827 = vld [vmem:[%s2825 + $0x8] sm:$0xff]
        %v2828 = vld [vmem:[%s2825 + $0x10] sm:$0xff]
        %v2829 = vld [vmem:[%s2825 + $0x18] sm:$0xff]
        %v2830 = vld [vmem:[%s2825 + $0x20] sm:$0xff]
        %v2831 = vld [vmem:[%s2825 + $0x28] sm:$0xff]
        %v2832 = vld [vmem:[%s2825 + $0x30] sm:$0xff]
        %v2833 = vld [vmem:[%s2825 + $0x38] sm:$0xff]
        %v2835 = vsel %vm1800, %v2826, 0
        %v2838 = vsel %vm1800, %v2827, 0
        %v2841 = vsel %vm1800, %v2828, 0
        %v2844 = vsel %vm1800, %v2829, 0
        %v2847 = vsel %vm1800, %v2830, 0
        %v2850 = vsel %vm1800, %v2831, 0
        %v2853 = vsel %vm1800, %v2832, 0
        %v2856 = vsel %vm1800, %v2833, 0
        %2858 = vmatprep.subr.mxu0 0.0
        %2859 = vmatpush1.msra.mxu0 %v2787
        %2860 = vmatprep.subr.mxu0 0.0
        %2861 = vmatpush1.msra.mxu0 %v2792
        %2862 = vmatprep.subr.mxu0 0.0
        %2863 = vmatpush1.msra.mxu0 %v2797
        %2864 = vmatprep.subr.mxu0 0.0
        %2865 = vmatpush1.msra.mxu0 %v2802
        %2866 = vmatprep.subr.mxu0 0.0
        %2867 = vmatpush1.msra.mxu0 %v2807
        %2868 = vmatprep.subr.mxu0 0.0
        %2869 = vmatpush1.msra.mxu0 %v2812
        %2870 = vmatprep.subr.mxu0 0.0
        %2871 = vmatpush1.msra.mxu0 %v2817
        %2872 = vmatprep.subr.mxu0 0.0
        %2873 = vmatpush1.msra.mxu0 %v2822
        %2874 = vmatprep.subr.mxu0 0.0
        %2875 = vmatpush1.msra.mxu0 0.0
        %2876 = vmatprep.subr.mxu0 0.0
        %2877 = vmatpush1.msra.mxu0 0.0
        %2878 = vmatprep.subr.mxu0 0.0
        %2879 = vmatpush1.msra.mxu0 0.0
        %2880 = vmatprep.subr.mxu0 0.0
        %2881 = vmatpush1.msra.mxu0 0.0
        %2882 = vmatprep.subr.mxu0 0.0
        %2883 = vmatpush1.msra.mxu0 0.0
        %2884 = vmatprep.subr.mxu0 0.0
        %2885 = vmatpush1.msra.mxu0 0.0
        %2886 = vmatprep.subr.mxu0 0.0
        %2887 = vmatpush1.msra.mxu0 0.0
        %2888 = vmatprep.subr.mxu0 0.0
        %2889 = vmatpush1.msra.mxu0 0.0
        %2890 = vmatprep.subr.mxu0 0.0
        %2891 = vmatpush1.msra.mxu0 0.0
        %2892 = vmatprep.subr.mxu0 0.0
        %2893 = vmatpush1.msra.mxu0 0.0
        %2894 = vmatprep.subr.mxu0 0.0
        %2895 = vmatpush1.msra.mxu0 0.0
        %2896 = vmatprep.subr.mxu0 0.0
        %2897 = vmatpush1.msra.mxu0 0.0
        %2898 = vmatprep.subr.mxu0 0.0
        %2899 = vmatpush1.msra.mxu0 0.0
        %2900 = vmatprep.subr.mxu0 0.0
        %2901 = vmatpush1.msra.mxu0 0.0
        %2902 = vmatprep.subr.mxu0 0.0
        %2903 = vmatpush1.msra.mxu0 0.0
        %2904 = vmatprep.subr.mxu0 0.0
        %2905 = vmatpush1.msra.mxu0 0.0
        %2906 = vmatprep.subr.mxu0 0.0
        %2907 = vmatpush1.msra.mxu0 0.0
        %2908 = vmatprep.subr.mxu0 0.0
        %2909 = vmatpush1.msra.mxu0 0.0
        %2910 = vmatprep.subr.mxu0 0.0
        %2911 = vmatpush1.msra.mxu0 0.0
        %2912 = vmatprep.subr.mxu0 0.0
        %2913 = vmatpush1.msra.mxu0 0.0
        %2914 = vmatprep.subr.mxu0 0.0
        %2915 = vmatpush1.msra.mxu0 0.0
        %2916 = vmatprep.subr.mxu0 0.0
        %2917 = vmatpush1.msra.mxu0 0.0
        %2918 = vmatprep.subr.mxu0 0.0
        %2919 = vmatpush1.msra.mxu0 0.0
        %2920 = vmatprep.subr.mxu0 0.0
        %2921 = vmatpush1.msra.mxu0 0.0
        %2922 = vmatprep.mubr.f32.mxu0 0.0
        %2923 = vmatmul.mubr.f32.gmra.mrb[0].mxu0 %v2835
        %v2924 = vpop.f32.mrb[0].mxu0
        %v2925 = vadd.f32 0.0, %v2924
        %v2926 = vpop.f32.mrb[0].mxu0
        %2927 = vmatprep.mubr.f32.mxu0 0.0
        %2928 = vmatmul.mubr.f32.gmra.mrb[0].mxu0 %v2838
        %v2929 = vpop.f32.mrb[0].mxu0
        %v2930 = vadd.f32 0.0, %v2929
        %v2931 = vpop.f32.mrb[0].mxu0
        %2932 = vmatprep.mubr.f32.mxu0 0.0
        %2933 = vmatmul.mubr.f32.gmra.mrb[0].mxu0 %v2841
        %v2934 = vpop.f32.mrb[0].mxu0
        %v2935 = vadd.f32 0.0, %v2934
        %v2936 = vpop.f32.mrb[0].mxu0
        %2937 = vmatprep.mubr.f32.mxu0 0.0
        %2938 = vmatmul.mubr.f32.gmra.mrb[0].mxu0 %v2844
        %v2939 = vpop.f32.mrb[0].mxu0
        %v2940 = vadd.f32 0.0, %v2939
        %v2941 = vpop.f32.mrb[0].mxu0
        %2942 = vmatprep.mubr.f32.mxu0 0.0
        %2943 = vmatmul.mubr.f32.gmra.mrb[0].mxu0 %v2847
        %v2944 = vpop.f32.mrb[0].mxu0
        %v2945 = vadd.f32 0.0, %v2944
        %v2946 = vpop.f32.mrb[0].mxu0
        %2947 = vmatprep.mubr.f32.mxu0 0.0
        %2948 = vmatmul.mubr.f32.gmra.mrb[0].mxu0 %v2850
        %v2949 = vpop.f32.mrb[0].mxu0
        %v2950 = vadd.f32 0.0, %v2949
        %v2951 = vpop.f32.mrb[0].mxu0
        %2952 = vmatprep.mubr.f32.mxu0 0.0
        %2953 = vmatmul.mubr.f32.gmra.mrb[0].mxu0 %v2853
        %v2954 = vpop.f32.mrb[0].mxu0
        %v2955 = vadd.f32 0.0, %v2954
        %v2956 = vpop.f32.mrb[0].mxu0
        %2957 = vmatprep.mubr.f32.mxu0 0.0
        %2958 = vmatmul.mubr.f32.gmra.mrb[0].mxu0 %v2856
        %v2959 = vpop.f32.mrb[0].mxu0
        %v2960 = vadd.f32 0.0, %v2959
        %v2961 = vpop.f32.mrb[0].mxu0
        %2962 = vdwg.mxu0
        %v2963 = vadd.f32 %v2682, %v2925
        %v2964 = vadd.f32 %v2687, %v2930
        %v2965 = vadd.f32 %v2692, %v2935
        %v2966 = vadd.f32 %v2697, %v2940
        %v2967 = vadd.f32 %v2702, %v2945
        %v2968 = vadd.f32 %v2707, %v2950
        %v2969 = vadd.f32 %v2712, %v2955
        %v2970 = vadd.f32 %v2717, %v2960
        %2971 = vmatprep.subr.mxu0 0.0
        %2972 = vmatpush1.msra.mxu0 %v1241
        %2973 = vmatprep.subr.mxu0 0.0
        %2974 = vmatpush1.msra.mxu0 %v1242
        %2975 = vmatprep.subr.mxu0 0.0
        %2976 = vmatpush1.msra.mxu0 %v1243
        %2977 = vmatprep.subr.mxu0 0.0
        %2978 = vmatpush1.msra.mxu0 %v1244
        %2979 = vmatprep.subr.mxu0 0.0
        %2980 = vmatpush1.msra.mxu0 %v1245
        %2981 = vmatprep.subr.mxu0 0.0
        %2982 = vmatpush1.msra.mxu0 %v1246
        %2983 = vmatprep.subr.mxu0 0.0
        %2984 = vmatpush1.msra.mxu0 %v1247
        %2985 = vmatprep.subr.mxu0 0.0
        %2986 = vmatpush1.msra.mxu0 %v1248
        %2987 = vmatprep.subr.mxu0 0.0
        %2988 = vmatpush1.msra.mxu0 %v1249
        %2989 = vmatprep.subr.mxu0 0.0
        %2990 = vmatpush1.msra.mxu0 %v1250
        %2991 = vmatprep.subr.mxu0 0.0
        %2992 = vmatpush1.msra.mxu0 %v1251
        %2993 = vmatprep.subr.mxu0 0.0
        %2994 = vmatpush1.msra.mxu0 %v1252
        %2995 = vmatprep.subr.mxu0 0.0
        %2996 = vmatpush1.msra.mxu0 %v1253
        %2997 = vmatprep.subr.mxu0 0.0
        %2998 = vmatpush1.msra.mxu0 %v1254
        %2999 = vmatprep.subr.mxu0 0.0
        %3000 = vmatpush1.msra.mxu0 %v1255
        %3001 = vmatprep.subr.mxu0 0.0
        %3002 = vmatpush1.msra.mxu0 %v1256
        %3003 = vmatprep.subr.mxu0 0.0
        %3004 = vmatpush1.msra.mxu0 0.0
        %3005 = vmatprep.subr.mxu0 0.0
        %3006 = vmatpush1.msra.mxu0 0.0
        %3007 = vmatprep.subr.mxu0 0.0
        %3008 = vmatpush1.msra.mxu0 0.0
        %3009 = vmatprep.subr.mxu0 0.0
        %3010 = vmatpush1.msra.mxu0 0.0
        %3011 = vmatprep.subr.mxu0 0.0
        %3012 = vmatpush1.msra.mxu0 0.0
        %3013 = vmatprep.subr.mxu0 0.0
        %3014 = vmatpush1.msra.mxu0 0.0
        %3015 = vmatprep.subr.mxu0 0.0
        %3016 = vmatpush1.msra.mxu0 0.0
        %3017 = vmatprep.subr.mxu0 0.0
        %3018 = vmatpush1.msra.mxu0 0.0
        %3019 = vmatprep.subr.mxu0 0.0
        %3020 = vmatpush1.msra.mxu0 0.0
        %3021 = vmatprep.subr.mxu0 0.0
        %3022 = vmatpush1.msra.mxu0 0.0
        %3023 = vmatprep.subr.mxu0 0.0
        %3024 = vmatpush1.msra.mxu0 0.0
        %3025 = vmatprep.subr.mxu0 0.0
        %3026 = vmatpush1.msra.mxu0 0.0
        %3027 = vmatprep.subr.mxu0 0.0
        %3028 = vmatpush1.msra.mxu0 0.0
        %3029 = vmatprep.subr.mxu0 0.0
        %3030 = vmatpush1.msra.mxu0 0.0
        %3031 = vmatprep.subr.mxu0 0.0
        %3032 = vmatpush1.msra.mxu0 0.0
        %3033 = vmatprep.subr.mxu0 0.0
        %3034 = vmatpush1.msra.mxu0 0.0
        %3035 = vmatprep.mubr.f32.mxu0 0.0
        %3036 = vmatmul.mubr.f32.gmra.mrb[0].mxu0 %v2219
        %v3037 = vpop.f32.mrb[0].mxu0
        %v3038 = vadd.f32 0.0, %v3037
        %v3039 = vpop.f32.mrb[0].mxu0
        %3040 = vmatprep.mubr.f32.mxu0 0.0
        %3041 = vmatmul.mubr.f32.gmra.mrb[0].mxu0 %v2220
        %v3042 = vpop.f32.mrb[0].mxu0
        %v3043 = vadd.f32 0.0, %v3042
        %v3044 = vpop.f32.mrb[0].mxu0
        %3045 = vmatprep.mubr.f32.mxu0 0.0
        %3046 = vmatmul.mubr.f32.gmra.mrb[0].mxu0 %v2221
        %v3047 = vpop.f32.mrb[0].mxu0
        %v3048 = vadd.f32 0.0, %v3047
        %v3049 = vpop.f32.mrb[0].mxu0
        %3050 = vmatprep.mubr.f32.mxu0 0.0
        %3051 = vmatmul.mubr.f32.gmra.mrb[0].mxu0 %v2222
        %v3052 = vpop.f32.mrb[0].mxu0
        %v3053 = vadd.f32 0.0, %v3052
        %v3054 = vpop.f32.mrb[0].mxu0
        %3055 = vmatprep.mubr.f32.mxu0 0.0
        %3056 = vmatmul.mubr.f32.gmra.mrb[0].mxu0 %v2223
        %v3057 = vpop.f32.mrb[0].mxu0
        %v3058 = vadd.f32 0.0, %v3057
        %v3059 = vpop.f32.mrb[0].mxu0
        %3060 = vmatprep.mubr.f32.mxu0 0.0
        %3061 = vmatmul.mubr.f32.gmra.mrb[0].mxu0 %v2224
        %v3062 = vpop.f32.mrb[0].mxu0
        %v3063 = vadd.f32 0.0, %v3062
        %v3064 = vpop.f32.mrb[0].mxu0
        %3065 = vmatprep.mubr.f32.mxu0 0.0
        %3066 = vmatmul.mubr.f32.gmra.mrb[0].mxu0 %v2225
        %v3067 = vpop.f32.mrb[0].mxu0
        %v3068 = vadd.f32 0.0, %v3067
        %v3069 = vpop.f32.mrb[0].mxu0
        %3070 = vmatprep.mubr.f32.mxu0 0.0
        %3071 = vmatmul.mubr.f32.gmra.mrb[0].mxu0 %v2226
        %v3072 = vpop.f32.mrb[0].mxu0
        %v3073 = vadd.f32 0.0, %v3072
        %v3074 = vpop.f32.mrb[0].mxu0
        %3075 = vdwg.mxu0
        %s3076 = scalar_lea.vmem %s5, 192
        %v3077 = vld [vmem:[%s3076] sm:$0xff]
        %v3078 = vld [vmem:[%s3076 + $0x8] sm:$0xff]
        %v3079 = vld [vmem:[%s3076 + $0x10] sm:$0xff]
        %v3080 = vld [vmem:[%s3076 + $0x18] sm:$0xff]
        %v3081 = vld [vmem:[%s3076 + $0x20] sm:$0xff]
        %v3082 = vld [vmem:[%s3076 + $0x28] sm:$0xff]
        %v3083 = vld [vmem:[%s3076 + $0x30] sm:$0xff]
        %v3084 = vld [vmem:[%s3076 + $0x38] sm:$0xff]
        %v3086 = vsel %vm1800, %v3077, 0
        %v3089 = vsel %vm1800, %v3078, 0
        %v3092 = vsel %vm1800, %v3079, 0
        %v3095 = vsel %vm1800, %v3080, 0
        %v3098 = vsel %vm1800, %v3081, 0
        %v3101 = vsel %vm1800, %v3082, 0
        %v3104 = vsel %vm1800, %v3083, 0
        %v3107 = vsel %vm1800, %v3084, 0
        %3109 = vmatprep.subr.mxu0 0.0
        %3110 = vmatpush1.msra.mxu0 %v3038
        %3111 = vmatprep.subr.mxu0 0.0
        %3112 = vmatpush1.msra.mxu0 %v3043
        %3113 = vmatprep.subr.mxu0 0.0
        %3114 = vmatpush1.msra.mxu0 %v3048
        %3115 = vmatprep.subr.mxu0 0.0
        %3116 = vmatpush1.msra.mxu0 %v3053
        %3117 = vmatprep.subr.mxu0 0.0
        %3118 = vmatpush1.msra.mxu0 %v3058
        %3119 = vmatprep.subr.mxu0 0.0
        %3120 = vmatpush1.msra.mxu0 %v3063
        %3121 = vmatprep.subr.mxu0 0.0
        %3122 = vmatpush1.msra.mxu0 %v3068
        %3123 = vmatprep.subr.mxu0 0.0
        %3124 = vmatpush1.msra.mxu0 %v3073
        %3125 = vmatprep.subr.mxu0 0.0
        %3126 = vmatpush1.msra.mxu0 0.0
        %3127 = vmatprep.subr.mxu0 0.0
        %3128 = vmatpush1.msra.mxu0 0.0
        %3129 = vmatprep.subr.mxu0 0.0
        %3130 = vmatpush1.msra.mxu0 0.0
        %3131 = vmatprep.subr.mxu0 0.0
        %3132 = vmatpush1.msra.mxu0 0.0
        %3133 = vmatprep.subr.mxu0 0.0
        %3134 = vmatpush1.msra.mxu0 0.0
        %3135 = vmatprep.subr.mxu0 0.0
        %3136 = vmatpush1.msra.mxu0 0.0
        %3137 = vmatprep.subr.mxu0 0.0
        %3138 = vmatpush1.msra.mxu0 0.0
        %3139 = vmatprep.subr.mxu0 0.0
        %3140 = vmatpush1.msra.mxu0 0.0
        %3141 = vmatprep.subr.mxu0 0.0
        %3142 = vmatpush1.msra.mxu0 0.0
        %3143 = vmatprep.subr.mxu0 0.0
        %3144 = vmatpush1.msra.mxu0 0.0
        %3145 = vmatprep.subr.mxu0 0.0
        %3146 = vmatpush1.msra.mxu0 0.0
        %3147 = vmatprep.subr.mxu0 0.0
        %3148 = vmatpush1.msra.mxu0 0.0
        %3149 = vmatprep.subr.mxu0 0.0
        %3150 = vmatpush1.msra.mxu0 0.0
        %3151 = vmatprep.subr.mxu0 0.0
        %3152 = vmatpush1.msra.mxu0 0.0
        %3153 = vmatprep.subr.mxu0 0.0
        %3154 = vmatpush1.msra.mxu0 0.0
        %3155 = vmatprep.subr.mxu0 0.0
        %3156 = vmatpush1.msra.mxu0 0.0
        %3157 = vmatprep.subr.mxu0 0.0
        %3158 = vmatpush1.msra.mxu0 0.0
        %3159 = vmatprep.subr.mxu0 0.0
        %3160 = vmatpush1.msra.mxu0 0.0
        %3161 = vmatprep.subr.mxu0 0.0
        %3162 = vmatpush1.msra.mxu0 0.0
        %3163 = vmatprep.subr.mxu0 0.0
        %3164 = vmatpush1.msra.mxu0 0.0
        %3165 = vmatprep.subr.mxu0 0.0
        %3166 = vmatpush1.msra.mxu0 0.0
        %3167 = vmatprep.subr.mxu0 0.0
        %3168 = vmatpush1.msra.mxu0 0.0
        %3169 = vmatprep.subr.mxu0 0.0
        %3170 = vmatpush1.msra.mxu0 0.0
        %3171 = vmatprep.subr.mxu0 0.0
        %3172 = vmatpush1.msra.mxu0 0.0
        %3173 = vmatprep.mubr.f32.mxu0 0.0
        %3174 = vmatmul.mubr.f32.gmra.mrb[0].mxu0 %v3086
        %v3175 = vpop.f32.mrb[0].mxu0
        %v3176 = vadd.f32 0.0, %v3175
        %v3177 = vpop.f32.mrb[0].mxu0
        %3178 = vmatprep.mubr.f32.mxu0 0.0
        %3179 = vmatmul.mubr.f32.gmra.mrb[0].mxu0 %v3089
        %v3180 = vpop.f32.mrb[0].mxu0
        %v3181 = vadd.f32 0.0, %v3180
        %v3182 = vpop.f32.mrb[0].mxu0
        %3183 = vmatprep.mubr.f32.mxu0 0.0
        %3184 = vmatmul.mubr.f32.gmra.mrb[0].mxu0 %v3092
        %v3185 = vpop.f32.mrb[0].mxu0
        %v3186 = vadd.f32 0.0, %v3185
        %v3187 = vpop.f32.mrb[0].mxu0
        %3188 = vmatprep.mubr.f32.mxu0 0.0
        %3189 = vmatmul.mubr.f32.gmra.mrb[0].mxu0 %v3095
        %v3190 = vpop.f32.mrb[0].mxu0
        %v3191 = vadd.f32 0.0, %v3190
        %v3192 = vpop.f32.mrb[0].mxu0
        %3193 = vmatprep.mubr.f32.mxu0 0.0
        %3194 = vmatmul.mubr.f32.gmra.mrb[0].mxu0 %v3098
        %v3195 = vpop.f32.mrb[0].mxu0
        %v3196 = vadd.f32 0.0, %v3195
        %v3197 = vpop.f32.mrb[0].mxu0
        %3198 = vmatprep.mubr.f32.mxu0 0.0
        %3199 = vmatmul.mubr.f32.gmra.mrb[0].mxu0 %v3101
        %v3200 = vpop.f32.mrb[0].mxu0
        %v3201 = vadd.f32 0.0, %v3200
        %v3202 = vpop.f32.mrb[0].mxu0
        %3203 = vmatprep.mubr.f32.mxu0 0.0
        %3204 = vmatmul.mubr.f32.gmra.mrb[0].mxu0 %v3104
        %v3205 = vpop.f32.mrb[0].mxu0
        %v3206 = vadd.f32 0.0, %v3205
        %v3207 = vpop.f32.mrb[0].mxu0
        %3208 = vmatprep.mubr.f32.mxu0 0.0
        %3209 = vmatmul.mubr.f32.gmra.mrb[0].mxu0 %v3107
        %v3210 = vpop.f32.mrb[0].mxu0
        %v3211 = vadd.f32 0.0, %v3210
        %v3212 = vpop.f32.mrb[0].mxu0
        %3213 = vdwg.mxu0
        %v3214 = vadd.f32 %v2963, %v3176
        %v3215 = vadd.f32 %v2964, %v3181
        %v3216 = vadd.f32 %v2965, %v3186
        %v3217 = vadd.f32 %v2966, %v3191
        %v3218 = vadd.f32 %v2967, %v3196
        %v3219 = vadd.f32 %v2968, %v3201
        %v3220 = vadd.f32 %v2969, %v3206
        %v3221 = vadd.f32 %v2970, %v3211
        %3222 = vmatprep.subr.mxu0 0.0
        %3223 = vmatpush1.msra.mxu0 %v1489
        %3224 = vmatprep.subr.mxu0 0.0
        %3225 = vmatpush1.msra.mxu0 %v1490
        %3226 = vmatprep.subr.mxu0 0.0
        %3227 = vmatpush1.msra.mxu0 %v1491
        %3228 = vmatprep.subr.mxu0 0.0
        %3229 = vmatpush1.msra.mxu0 %v1492
        %3230 = vmatprep.subr.mxu0 0.0
        %3231 = vmatpush1.msra.mxu0 %v1493
        %3232 = vmatprep.subr.mxu0 0.0
        %3233 = vmatpush1.msra.mxu0 %v1494
        %3234 = vmatprep.subr.mxu0 0.0
        %3235 = vmatpush1.msra.mxu0 %v1495
        %3236 = vmatprep.subr.mxu0 0.0
        %3237 = vmatpush1.msra.mxu0 %v1496
        %3238 = vmatprep.subr.mxu0 0.0
        %3239 = vmatpush1.msra.mxu0 %v1497
        %3240 = vmatprep.subr.mxu0 0.0
        %3241 = vmatpush1.msra.mxu0 %v1498
        %3242 = vmatprep.subr.mxu0 0.0
        %3243 = vmatpush1.msra.mxu0 %v1499
        %3244 = vmatprep.subr.mxu0 0.0
        %3245 = vmatpush1.msra.mxu0 %v1500
        %3246 = vmatprep.subr.mxu0 0.0
        %3247 = vmatpush1.msra.mxu0 %v1501
        %3248 = vmatprep.subr.mxu0 0.0
        %3249 = vmatpush1.msra.mxu0 %v1502
        %3250 = vmatprep.subr.mxu0 0.0
        %3251 = vmatpush1.msra.mxu0 %v1503
        %3252 = vmatprep.subr.mxu0 0.0
        %3253 = vmatpush1.msra.mxu0 %v1504
        %3254 = vmatprep.subr.mxu0 0.0
        %3255 = vmatpush1.msra.mxu0 0.0
        %3256 = vmatprep.subr.mxu0 0.0
        %3257 = vmatpush1.msra.mxu0 0.0
        %3258 = vmatprep.subr.mxu0 0.0
        %3259 = vmatpush1.msra.mxu0 0.0
        %3260 = vmatprep.subr.mxu0 0.0
        %3261 = vmatpush1.msra.mxu0 0.0
        %3262 = vmatprep.subr.mxu0 0.0
        %3263 = vmatpush1.msra.mxu0 0.0
        %3264 = vmatprep.subr.mxu0 0.0
        %3265 = vmatpush1.msra.mxu0 0.0
        %3266 = vmatprep.subr.mxu0 0.0
        %3267 = vmatpush1.msra.mxu0 0.0
        %3268 = vmatprep.subr.mxu0 0.0
        %3269 = vmatpush1.msra.mxu0 0.0
        %3270 = vmatprep.subr.mxu0 0.0
        %3271 = vmatpush1.msra.mxu0 0.0
        %3272 = vmatprep.subr.mxu0 0.0
        %3273 = vmatpush1.msra.mxu0 0.0
        %3274 = vmatprep.subr.mxu0 0.0
        %3275 = vmatpush1.msra.mxu0 0.0
        %3276 = vmatprep.subr.mxu0 0.0
        %3277 = vmatpush1.msra.mxu0 0.0
        %3278 = vmatprep.subr.mxu0 0.0
        %3279 = vmatpush1.msra.mxu0 0.0
        %3280 = vmatprep.subr.mxu0 0.0
        %3281 = vmatpush1.msra.mxu0 0.0
        %3282 = vmatprep.subr.mxu0 0.0
        %3283 = vmatpush1.msra.mxu0 0.0
        %3284 = vmatprep.subr.mxu0 0.0
        %3285 = vmatpush1.msra.mxu0 0.0
        %3286 = vmatprep.mubr.f32.mxu0 0.0
        %3287 = vmatmul.mubr.f32.gmra.mrb[0].mxu0 %v2219
        %v3288 = vpop.f32.mrb[0].mxu0
        %v3289 = vadd.f32 0.0, %v3288
        %v3290 = vpop.f32.mrb[0].mxu0
        %3291 = vmatprep.mubr.f32.mxu0 0.0
        %3292 = vmatmul.mubr.f32.gmra.mrb[0].mxu0 %v2220
        %v3293 = vpop.f32.mrb[0].mxu0
        %v3294 = vadd.f32 0.0, %v3293
        %v3295 = vpop.f32.mrb[0].mxu0
        %3296 = vmatprep.mubr.f32.mxu0 0.0
        %3297 = vmatmul.mubr.f32.gmra.mrb[0].mxu0 %v2221
        %v3298 = vpop.f32.mrb[0].mxu0
        %v3299 = vadd.f32 0.0, %v3298
        %v3300 = vpop.f32.mrb[0].mxu0
        %3301 = vmatprep.mubr.f32.mxu0 0.0
        %3302 = vmatmul.mubr.f32.gmra.mrb[0].mxu0 %v2222
        %v3303 = vpop.f32.mrb[0].mxu0
        %v3304 = vadd.f32 0.0, %v3303
        %v3305 = vpop.f32.mrb[0].mxu0
        %3306 = vmatprep.mubr.f32.mxu0 0.0
        %3307 = vmatmul.mubr.f32.gmra.mrb[0].mxu0 %v2223
        %v3308 = vpop.f32.mrb[0].mxu0
        %v3309 = vadd.f32 0.0, %v3308
        %v3310 = vpop.f32.mrb[0].mxu0
        %3311 = vmatprep.mubr.f32.mxu0 0.0
        %3312 = vmatmul.mubr.f32.gmra.mrb[0].mxu0 %v2224
        %v3313 = vpop.f32.mrb[0].mxu0
        %v3314 = vadd.f32 0.0, %v3313
        %v3315 = vpop.f32.mrb[0].mxu0
        %3316 = vmatprep.mubr.f32.mxu0 0.0
        %3317 = vmatmul.mubr.f32.gmra.mrb[0].mxu0 %v2225
        %v3318 = vpop.f32.mrb[0].mxu0
        %v3319 = vadd.f32 0.0, %v3318
        %v3320 = vpop.f32.mrb[0].mxu0
        %3321 = vmatprep.mubr.f32.mxu0 0.0
        %3322 = vmatmul.mubr.f32.gmra.mrb[0].mxu0 %v2226
        %v3323 = vpop.f32.mrb[0].mxu0
        %v3324 = vadd.f32 0.0, %v3323
        %v3325 = vpop.f32.mrb[0].mxu0
        %3326 = vdwg.mxu0
        %s3327 = scalar_lea.vmem %s5, 256
        %v3328 = vld [vmem:[%s3327] sm:$0xff]
        %v3329 = vld [vmem:[%s3327 + $0x8] sm:$0xff]
        %v3330 = vld [vmem:[%s3327 + $0x10] sm:$0xff]
        %v3331 = vld [vmem:[%s3327 + $0x18] sm:$0xff]
        %v3332 = vld [vmem:[%s3327 + $0x20] sm:$0xff]
        %v3333 = vld [vmem:[%s3327 + $0x28] sm:$0xff]
        %v3334 = vld [vmem:[%s3327 + $0x30] sm:$0xff]
        %v3335 = vld [vmem:[%s3327 + $0x38] sm:$0xff]
        %v3337 = vsel %vm1800, %v3328, 0
        %v3340 = vsel %vm1800, %v3329, 0
        %v3343 = vsel %vm1800, %v3330, 0
        %v3346 = vsel %vm1800, %v3331, 0
        %v3349 = vsel %vm1800, %v3332, 0
        %v3352 = vsel %vm1800, %v3333, 0
        %v3355 = vsel %vm1800, %v3334, 0
        %v3358 = vsel %vm1800, %v3335, 0
        %3360 = vmatprep.subr.mxu0 0.0
        %3361 = vmatpush1.msra.mxu0 %v3289
        %3362 = vmatprep.subr.mxu0 0.0
        %3363 = vmatpush1.msra.mxu0 %v3294
        %3364 = vmatprep.subr.mxu0 0.0
        %3365 = vmatpush1.msra.mxu0 %v3299
        %3366 = vmatprep.subr.mxu0 0.0
        %3367 = vmatpush1.msra.mxu0 %v3304
        %3368 = vmatprep.subr.mxu0 0.0
        %3369 = vmatpush1.msra.mxu0 %v3309
        %3370 = vmatprep.subr.mxu0 0.0
        %3371 = vmatpush1.msra.mxu0 %v3314
        %3372 = vmatprep.subr.mxu0 0.0
        %3373 = vmatpush1.msra.mxu0 %v3319
        %3374 = vmatprep.subr.mxu0 0.0
        %3375 = vmatpush1.msra.mxu0 %v3324
        %3376 = vmatprep.subr.mxu0 0.0
        %3377 = vmatpush1.msra.mxu0 0.0
        %3378 = vmatprep.subr.mxu0 0.0
        %3379 = vmatpush1.msra.mxu0 0.0
        %3380 = vmatprep.subr.mxu0 0.0
        %3381 = vmatpush1.msra.mxu0 0.0
        %3382 = vmatprep.subr.mxu0 0.0
        %3383 = vmatpush1.msra.mxu0 0.0
        %3384 = vmatprep.subr.mxu0 0.0
        %3385 = vmatpush1.msra.mxu0 0.0
        %3386 = vmatprep.subr.mxu0 0.0
        %3387 = vmatpush1.msra.mxu0 0.0
        %3388 = vmatprep.subr.mxu0 0.0
        %3389 = vmatpush1.msra.mxu0 0.0
        %3390 = vmatprep.subr.mxu0 0.0
        %3391 = vmatpush1.msra.mxu0 0.0
        %3392 = vmatprep.subr.mxu0 0.0
        %3393 = vmatpush1.msra.mxu0 0.0
        %3394 = vmatprep.subr.mxu0 0.0
        %3395 = vmatpush1.msra.mxu0 0.0
        %3396 = vmatprep.subr.mxu0 0.0
        %3397 = vmatpush1.msra.mxu0 0.0
        %3398 = vmatprep.subr.mxu0 0.0
        %3399 = vmatpush1.msra.mxu0 0.0
        %3400 = vmatprep.subr.mxu0 0.0
        %3401 = vmatpush1.msra.mxu0 0.0
        %3402 = vmatprep.subr.mxu0 0.0
        %3403 = vmatpush1.msra.mxu0 0.0
        %3404 = vmatprep.subr.mxu0 0.0
        %3405 = vmatpush1.msra.mxu0 0.0
        %3406 = vmatprep.subr.mxu0 0.0
        %3407 = vmatpush1.msra.mxu0 0.0
        %3408 = vmatprep.subr.mxu0 0.0
        %3409 = vmatpush1.msra.mxu0 0.0
        %3410 = vmatprep.subr.mxu0 0.0
        %3411 = vmatpush1.msra.mxu0 0.0
        %3412 = vmatprep.subr.mxu0 0.0
        %3413 = vmatpush1.msra.mxu0 0.0
        %3414 = vmatprep.subr.mxu0 0.0
        %3415 = vmatpush1.msra.mxu0 0.0
        %3416 = vmatprep.subr.mxu0 0.0
        %3417 = vmatpush1.msra.mxu0 0.0
        %3418 = vmatprep.subr.mxu0 0.0
        %3419 = vmatpush1.msra.mxu0 0.0
        %3420 = vmatprep.subr.mxu0 0.0
        %3421 = vmatpush1.msra.mxu0 0.0
        %3422 = vmatprep.subr.mxu0 0.0
        %3423 = vmatpush1.msra.mxu0 0.0
        %3424 = vmatprep.mubr.f32.mxu0 0.0
        %3425 = vmatmul.mubr.f32.gmra.mrb[0].mxu0 %v3337
        %v3426 = vpop.f32.mrb[0].mxu0
        %v3427 = vadd.f32 0.0, %v3426
        %v3428 = vpop.f32.mrb[0].mxu0
        %3429 = vmatprep.mubr.f32.mxu0 0.0
        %3430 = vmatmul.mubr.f32.gmra.mrb[0].mxu0 %v3340
        %v3431 = vpop.f32.mrb[0].mxu0
        %v3432 = vadd.f32 0.0, %v3431
        %v3433 = vpop.f32.mrb[0].mxu0
        %3434 = vmatprep.mubr.f32.mxu0 0.0
        %3435 = vmatmul.mubr.f32.gmra.mrb[0].mxu0 %v3343
        %v3436 = vpop.f32.mrb[0].mxu0
        %v3437 = vadd.f32 0.0, %v3436
        %v3438 = vpop.f32.mrb[0].mxu0
        %3439 = vmatprep.mubr.f32.mxu0 0.0
        %3440 = vmatmul.mubr.f32.gmra.mrb[0].mxu0 %v3346
        %v3441 = vpop.f32.mrb[0].mxu0
        %v3442 = vadd.f32 0.0, %v3441
        %v3443 = vpop.f32.mrb[0].mxu0
        %3444 = vmatprep.mubr.f32.mxu0 0.0
        %3445 = vmatmul.mubr.f32.gmra.mrb[0].mxu0 %v3349
        %v3446 = vpop.f32.mrb[0].mxu0
        %v3447 = vadd.f32 0.0, %v3446
        %v3448 = vpop.f32.mrb[0].mxu0
        %3449 = vmatprep.mubr.f32.mxu0 0.0
        %3450 = vmatmul.mubr.f32.gmra.mrb[0].mxu0 %v3352
        %v3451 = vpop.f32.mrb[0].mxu0
        %v3452 = vadd.f32 0.0, %v3451
        %v3453 = vpop.f32.mrb[0].mxu0
        %3454 = vmatprep.mubr.f32.mxu0 0.0
        %3455 = vmatmul.mubr.f32.gmra.mrb[0].mxu0 %v3355
        %v3456 = vpop.f32.mrb[0].mxu0
        %v3457 = vadd.f32 0.0, %v3456
        %v3458 = vpop.f32.mrb[0].mxu0
        %3459 = vmatprep.mubr.f32.mxu0 0.0
        %3460 = vmatmul.mubr.f32.gmra.mrb[0].mxu0 %v3358
        %v3461 = vpop.f32.mrb[0].mxu0
        %v3462 = vadd.f32 0.0, %v3461
        %v3463 = vpop.f32.mrb[0].mxu0
        %3464 = vdwg.mxu0
        %v3465 = vadd.f32 %v3214, %v3427
        %v3466 = vadd.f32 %v3215, %v3432
        %v3467 = vadd.f32 %v3216, %v3437
        %v3468 = vadd.f32 %v3217, %v3442
        %v3469 = vadd.f32 %v3218, %v3447
        %v3470 = vadd.f32 %v3219, %v3452
        %v3471 = vadd.f32 %v3220, %v3457
        %v3472 = vadd.f32 %v3221, %v3462
        %3474 = vset.pattern.permute.xlu0 0
        %3475 = vperm.xlu0 %3474, %v2227
        %v3476 = vpop.permute.xlu0 %3475
        %3479 = vset.pattern.permute.xlu0 0
        %3480 = vperm.xlu0 %3479, %v2228
        %v3481 = vpop.permute.xlu0 %3480
        %3484 = vset.pattern.permute.xlu0 0
        %3485 = vperm.xlu0 %3484, %v2229
        %v3486 = vpop.permute.xlu0 %3485
        %3489 = vset.pattern.permute.xlu0 0
        %3490 = vperm.xlu0 %3489, %v2230
        %v3491 = vpop.permute.xlu0 %3490
        %3494 = vset.pattern.permute.xlu0 0
        %3495 = vperm.xlu0 %3494, %v2231
        %v3496 = vpop.permute.xlu0 %3495
        %3499 = vset.pattern.permute.xlu0 0
        %3500 = vperm.xlu0 %3499, %v2232
        %v3501 = vpop.permute.xlu0 %3500
        %3504 = vset.pattern.permute.xlu0 0
        %3505 = vperm.xlu0 %3504, %v2233
        %v3506 = vpop.permute.xlu0 %3505
        %3509 = vset.pattern.permute.xlu0 0
        %3510 = vperm.xlu0 %3509, %v2234
        %v3511 = vpop.permute.xlu0 %3510
        %v3513 = vadd.f32 %v3465, %v3476
        %v3514 = vadd.f32 %v3466, %v3481
        %v3515 = vadd.f32 %v3467, %v3486
        %v3516 = vadd.f32 %v3468, %v3491
        %v3517 = vadd.f32 %v3469, %v3496
        %v3518 = vadd.f32 %v3470, %v3501
        %v3519 = vadd.f32 %v3471, %v3506
        %v3520 = vadd.f32 %v3472, %v3511
        %v3521 = vld [vmem:[%s7] sm:$0xff]
        %v3522 = vld [vmem:[%s7 + $0x8] sm:$0xff]
        %v3523 = vld [vmem:[%s7 + $0x10] sm:$0xff]
        %v3524 = vld [vmem:[%s7 + $0x18] sm:$0xff]
        %v3525 = vld [vmem:[%s7 + $0x20] sm:$0xff]
        %v3526 = vld [vmem:[%s7 + $0x28] sm:$0xff]
        %v3527 = vld [vmem:[%s7 + $0x30] sm:$0xff]
        %v3528 = vld [vmem:[%s7 + $0x38] sm:$0xff]
        %v3529 = vld [vmem:[%s8] sm:$0xff]
        %v3530 = vld [vmem:[%s8 + $0x8] sm:$0xff]
        %v3531 = vld [vmem:[%s8 + $0x10] sm:$0xff]
        %v3532 = vld [vmem:[%s8 + $0x18] sm:$0xff]
        %v3533 = vld [vmem:[%s8 + $0x20] sm:$0xff]
        %v3534 = vld [vmem:[%s8 + $0x28] sm:$0xff]
        %v3535 = vld [vmem:[%s8 + $0x30] sm:$0xff]
        %v3536 = vld [vmem:[%s8 + $0x38] sm:$0xff]
        %3537 = vmatprep.subr.mxu0 0.0
        %3538 = vmatpush1.msra.mxu0 %v3513
        %3539 = vmatprep.subr.mxu0 0.0
        %3540 = vmatpush1.msra.mxu0 %v3514
        %3541 = vmatprep.subr.mxu0 0.0
        %3542 = vmatpush1.msra.mxu0 %v3515
        %3543 = vmatprep.subr.mxu0 0.0
        %3544 = vmatpush1.msra.mxu0 %v3516
        %3545 = vmatprep.subr.mxu0 0.0
        %3546 = vmatpush1.msra.mxu0 %v3517
        %3547 = vmatprep.subr.mxu0 0.0
        %3548 = vmatpush1.msra.mxu0 %v3518
        %3549 = vmatprep.subr.mxu0 0.0
        %3550 = vmatpush1.msra.mxu0 %v3519
        %3551 = vmatprep.subr.mxu0 0.0
        %3552 = vmatpush1.msra.mxu0 %v3520
        %3553 = vmatprep.subr.mxu0 0.0
        %3554 = vmatpush1.msra.mxu0 0.0
        %3555 = vmatprep.subr.mxu0 0.0
        %3556 = vmatpush1.msra.mxu0 0.0
        %3557 = vmatprep.subr.mxu0 0.0
        %3558 = vmatpush1.msra.mxu0 0.0
        %3559 = vmatprep.subr.mxu0 0.0
        %3560 = vmatpush1.msra.mxu0 0.0
        %3561 = vmatprep.subr.mxu0 0.0
        %3562 = vmatpush1.msra.mxu0 0.0
        %3563 = vmatprep.subr.mxu0 0.0
        %3564 = vmatpush1.msra.mxu0 0.0
        %3565 = vmatprep.subr.mxu0 0.0
        %3566 = vmatpush1.msra.mxu0 0.0
        %3567 = vmatprep.subr.mxu0 0.0
        %3568 = vmatpush1.msra.mxu0 0.0
        %3569 = vmatprep.subr.mxu0 0.0
        %3570 = vmatpush1.msra.mxu0 0.0
        %3571 = vmatprep.subr.mxu0 0.0
        %3572 = vmatpush1.msra.mxu0 0.0
        %3573 = vmatprep.subr.mxu0 0.0
        %3574 = vmatpush1.msra.mxu0 0.0
        %3575 = vmatprep.subr.mxu0 0.0
        %3576 = vmatpush1.msra.mxu0 0.0
        %3577 = vmatprep.subr.mxu0 0.0
        %3578 = vmatpush1.msra.mxu0 0.0
        %3579 = vmatprep.subr.mxu0 0.0
        %3580 = vmatpush1.msra.mxu0 0.0
        %3581 = vmatprep.subr.mxu0 0.0
        %3582 = vmatpush1.msra.mxu0 0.0
        %3583 = vmatprep.subr.mxu0 0.0
        %3584 = vmatpush1.msra.mxu0 0.0
        %3585 = vmatprep.subr.mxu0 0.0
        %3586 = vmatpush1.msra.mxu0 0.0
        %3587 = vmatprep.subr.mxu0 0.0
        %3588 = vmatpush1.msra.mxu0 0.0
        %3589 = vmatprep.subr.mxu0 0.0
        %3590 = vmatpush1.msra.mxu0 0.0
        %3591 = vmatprep.subr.mxu0 0.0
        %3592 = vmatpush1.msra.mxu0 0.0
        %3593 = vmatprep.subr.mxu0 0.0
        %3594 = vmatpush1.msra.mxu0 0.0
        %3595 = vmatprep.subr.mxu0 0.0
        %3596 = vmatpush1.msra.mxu0 0.0
        %3597 = vmatprep.subr.mxu0 0.0
        %3598 = vmatpush1.msra.mxu0 0.0
        %3599 = vmatprep.subr.mxu0 0.0
        %3600 = vmatpush1.msra.mxu0 0.0
        %3601 = vmatprep.mubr.f32.mxu0 0.0
        %3602 = vmatmul.mubr.f32.gmra.mrb[0].mxu0 %v1802
        %v3603 = vpop.f32.mrb[0].mxu0
        %v3604 = vadd.f32 0.0, %v3603
        %v3605 = vpop.f32.mrb[0].mxu0
        %3606 = vmatprep.mubr.f32.mxu0 0.0
        %3607 = vmatmul.mubr.f32.gmra.mrb[0].mxu0 %v1805
        %v3608 = vpop.f32.mrb[0].mxu0
        %v3609 = vadd.f32 0.0, %v3608
        %v3610 = vpop.f32.mrb[0].mxu0
        %3611 = vmatprep.mubr.f32.mxu0 0.0
        %3612 = vmatmul.mubr.f32.gmra.mrb[0].mxu0 %v1808
        %v3613 = vpop.f32.mrb[0].mxu0
        %v3614 = vadd.f32 0.0, %v3613
        %v3615 = vpop.f32.mrb[0].mxu0
        %3616 = vmatprep.mubr.f32.mxu0 0.0
        %3617 = vmatmul.mubr.f32.gmra.mrb[0].mxu0 %v1811
        %v3618 = vpop.f32.mrb[0].mxu0
        %v3619 = vadd.f32 0.0, %v3618
        %v3620 = vpop.f32.mrb[0].mxu0
        %3621 = vmatprep.mubr.f32.mxu0 0.0
        %3622 = vmatmul.mubr.f32.gmra.mrb[0].mxu0 %v1814
        %v3623 = vpop.f32.mrb[0].mxu0
        %v3624 = vadd.f32 0.0, %v3623
        %v3625 = vpop.f32.mrb[0].mxu0
        %3626 = vmatprep.mubr.f32.mxu0 0.0
        %3627 = vmatmul.mubr.f32.gmra.mrb[0].mxu0 %v1817
        %v3628 = vpop.f32.mrb[0].mxu0
        %v3629 = vadd.f32 0.0, %v3628
        %v3630 = vpop.f32.mrb[0].mxu0
        %3631 = vmatprep.mubr.f32.mxu0 0.0
        %3632 = vmatmul.mubr.f32.gmra.mrb[0].mxu0 %v1820
        %v3633 = vpop.f32.mrb[0].mxu0
        %v3634 = vadd.f32 0.0, %v3633
        %v3635 = vpop.f32.mrb[0].mxu0
        %3636 = vmatprep.mubr.f32.mxu0 0.0
        %3637 = vmatmul.mubr.f32.gmra.mrb[0].mxu0 %v1823
        %v3638 = vpop.f32.mrb[0].mxu0
        %v3639 = vadd.f32 0.0, %v3638
        %v3640 = vpop.f32.mrb[0].mxu0
        %3641 = vdwg.mxu0
        %3642 = vadd.xlane.f32.xlu0 %v3604
        %v3643 = vpop.xlane.xlu0 %3642
        %3644 = vadd.xlane.f32.xlu0 %v3609
        %v3645 = vpop.xlane.xlu0 %3644
        %3646 = vadd.xlane.f32.xlu0 %v3614
        %v3647 = vpop.xlane.xlu0 %3646
        %3648 = vadd.xlane.f32.xlu0 %v3619
        %v3649 = vpop.xlane.xlu0 %3648
        %3650 = vadd.xlane.f32.xlu0 %v3624
        %v3651 = vpop.xlane.xlu0 %3650
        %3652 = vadd.xlane.f32.xlu0 %v3629
        %v3653 = vpop.xlane.xlu0 %3652
        %3654 = vadd.xlane.f32.xlu0 %v3634
        %v3655 = vpop.xlane.xlu0 %3654
        %3656 = vadd.xlane.f32.xlu0 %v3639
        %v3657 = vpop.xlane.xlu0 %3656
        %v3658 = vmul.f32 %v3643, 0.0009765625
        %v3659 = vmul.f32 %v3645, 0.0009765625
        %v3660 = vmul.f32 %v3647, 0.0009765625
        %v3661 = vmul.f32 %v3649, 0.0009765625
        %v3662 = vmul.f32 %v3651, 0.0009765625
        %v3663 = vmul.f32 %v3653, 0.0009765625
        %v3664 = vmul.f32 %v3655, 0.0009765625
        %v3665 = vmul.f32 %v3657, 0.0009765625
        %v3666 = vsub.f32 %v3513, %v3658
        %v3667 = vsub.f32 %v3514, %v3659
        %v3668 = vsub.f32 %v3515, %v3660
        %v3669 = vsub.f32 %v3516, %v3661
        %v3670 = vsub.f32 %v3517, %v3662
        %v3671 = vsub.f32 %v3518, %v3663
        %v3672 = vsub.f32 %v3519, %v3664
        %v3673 = vsub.f32 %v3520, %v3665
        %v3674 = vmul.f32 %v3666, %v3666
        %v3675 = vmul.f32 %v3667, %v3667
        %v3676 = vmul.f32 %v3668, %v3668
        %v3677 = vmul.f32 %v3669, %v3669
        %v3678 = vmul.f32 %v3670, %v3670
        %v3679 = vmul.f32 %v3671, %v3671
        %v3680 = vmul.f32 %v3672, %v3672
        %v3681 = vmul.f32 %v3673, %v3673
        %3682 = vmatprep.subr.mxu0 0.0
        %3683 = vmatpush1.msra.mxu0 %v3674
        %3684 = vmatprep.subr.mxu0 0.0
        %3685 = vmatpush1.msra.mxu0 %v3675
        %3686 = vmatprep.subr.mxu0 0.0
        %3687 = vmatpush1.msra.mxu0 %v3676
        %3688 = vmatprep.subr.mxu0 0.0
        %3689 = vmatpush1.msra.mxu0 %v3677
        %3690 = vmatprep.subr.mxu0 0.0
        %3691 = vmatpush1.msra.mxu0 %v3678
        %3692 = vmatprep.subr.mxu0 0.0
        %3693 = vmatpush1.msra.mxu0 %v3679
        %3694 = vmatprep.subr.mxu0 0.0
        %3695 = vmatpush1.msra.mxu0 %v3680
        %3696 = vmatprep.subr.mxu0 0.0
        %3697 = vmatpush1.msra.mxu0 %v3681
        %3698 = vmatprep.subr.mxu0 0.0
        %3699 = vmatpush1.msra.mxu0 0.0
        %3700 = vmatprep.subr.mxu0 0.0
        %3701 = vmatpush1.msra.mxu0 0.0
        %3702 = vmatprep.subr.mxu0 0.0
        %3703 = vmatpush1.msra.mxu0 0.0
        %3704 = vmatprep.subr.mxu0 0.0
        %3705 = vmatpush1.msra.mxu0 0.0
        %3706 = vmatprep.subr.mxu0 0.0
        %3707 = vmatpush1.msra.mxu0 0.0
        %3708 = vmatprep.subr.mxu0 0.0
        %3709 = vmatpush1.msra.mxu0 0.0
        %3710 = vmatprep.subr.mxu0 0.0
        %3711 = vmatpush1.msra.mxu0 0.0
        %3712 = vmatprep.subr.mxu0 0.0
        %3713 = vmatpush1.msra.mxu0 0.0
        %3714 = vmatprep.subr.mxu0 0.0
        %3715 = vmatpush1.msra.mxu0 0.0
        %3716 = vmatprep.subr.mxu0 0.0
        %3717 = vmatpush1.msra.mxu0 0.0
        %3718 = vmatprep.subr.mxu0 0.0
        %3719 = vmatpush1.msra.mxu0 0.0
        %3720 = vmatprep.subr.mxu0 0.0
        %3721 = vmatpush1.msra.mxu0 0.0
        %3722 = vmatprep.subr.mxu0 0.0
        %3723 = vmatpush1.msra.mxu0 0.0
        %3724 = vmatprep.subr.mxu0 0.0
        %3725 = vmatpush1.msra.mxu0 0.0
        %3726 = vmatprep.subr.mxu0 0.0
        %3727 = vmatpush1.msra.mxu0 0.0
        %3728 = vmatprep.subr.mxu0 0.0
        %3729 = vmatpush1.msra.mxu0 0.0
        %3730 = vmatprep.subr.mxu0 0.0
        %3731 = vmatpush1.msra.mxu0 0.0
        %3732 = vmatprep.subr.mxu0 0.0
        %3733 = vmatpush1.msra.mxu0 0.0
        %3734 = vmatprep.subr.mxu0 0.0
        %3735 = vmatpush1.msra.mxu0 0.0
        %3736 = vmatprep.subr.mxu0 0.0
        %3737 = vmatpush1.msra.mxu0 0.0
        %3738 = vmatprep.subr.mxu0 0.0
        %3739 = vmatpush1.msra.mxu0 0.0
        %3740 = vmatprep.subr.mxu0 0.0
        %3741 = vmatpush1.msra.mxu0 0.0
        %3742 = vmatprep.subr.mxu0 0.0
        %3743 = vmatpush1.msra.mxu0 0.0
        %3744 = vmatprep.subr.mxu0 0.0
        %3745 = vmatpush1.msra.mxu0 0.0
        %3746 = vmatprep.mubr.f32.mxu0 0.0
        %3747 = vmatmul.mubr.f32.gmra.mrb[0].mxu0 %v1802
        %v3748 = vpop.f32.mrb[0].mxu0
        %v3749 = vadd.f32 0.0, %v3748
        %v3750 = vpop.f32.mrb[0].mxu0
        %3751 = vmatprep.mubr.f32.mxu0 0.0
        %3752 = vmatmul.mubr.f32.gmra.mrb[0].mxu0 %v1805
        %v3753 = vpop.f32.mrb[0].mxu0
        %v3754 = vadd.f32 0.0, %v3753
        %v3755 = vpop.f32.mrb[0].mxu0
        %3756 = vmatprep.mubr.f32.mxu0 0.0
        %3757 = vmatmul.mubr.f32.gmra.mrb[0].mxu0 %v1808
        %v3758 = vpop.f32.mrb[0].mxu0
        %v3759 = vadd.f32 0.0, %v3758
        %v3760 = vpop.f32.mrb[0].mxu0
        %3761 = vmatprep.mubr.f32.mxu0 0.0
        %3762 = vmatmul.mubr.f32.gmra.mrb[0].mxu0 %v1811
        %v3763 = vpop.f32.mrb[0].mxu0
        %v3764 = vadd.f32 0.0, %v3763
        %v3765 = vpop.f32.mrb[0].mxu0
        %3766 = vmatprep.mubr.f32.mxu0 0.0
        %3767 = vmatmul.mubr.f32.gmra.mrb[0].mxu0 %v1814
        %v3768 = vpop.f32.mrb[0].mxu0
        %v3769 = vadd.f32 0.0, %v3768
        %v3770 = vpop.f32.mrb[0].mxu0
        %3771 = vmatprep.mubr.f32.mxu0 0.0
        %3772 = vmatmul.mubr.f32.gmra.mrb[0].mxu0 %v1817
        %v3773 = vpop.f32.mrb[0].mxu0
        %v3774 = vadd.f32 0.0, %v3773
        %v3775 = vpop.f32.mrb[0].mxu0
        %3776 = vmatprep.mubr.f32.mxu0 0.0
        %3777 = vmatmul.mubr.f32.gmra.mrb[0].mxu0 %v1820
        %v3778 = vpop.f32.mrb[0].mxu0
        %v3779 = vadd.f32 0.0, %v3778
        %v3780 = vpop.f32.mrb[0].mxu0
        %3781 = vmatprep.mubr.f32.mxu0 0.0
        %3782 = vmatmul.mubr.f32.gmra.mrb[0].mxu0 %v1823
        %v3783 = vpop.f32.mrb[0].mxu0
        %v3784 = vadd.f32 0.0, %v3783
        %v3785 = vpop.f32.mrb[0].mxu0
        %3786 = vdwg.mxu0
        %3787 = vadd.xlane.f32.xlu0 %v3749
        %v3788 = vpop.xlane.xlu0 %3787
        %3789 = vadd.xlane.f32.xlu0 %v3754
        %v3790 = vpop.xlane.xlu0 %3789
        %3791 = vadd.xlane.f32.xlu0 %v3759
        %v3792 = vpop.xlane.xlu0 %3791
        %3793 = vadd.xlane.f32.xlu0 %v3764
        %v3794 = vpop.xlane.xlu0 %3793
        %3795 = vadd.xlane.f32.xlu0 %v3769
        %v3796 = vpop.xlane.xlu0 %3795
        %3797 = vadd.xlane.f32.xlu0 %v3774
        %v3798 = vpop.xlane.xlu0 %3797
        %3799 = vadd.xlane.f32.xlu0 %v3779
        %v3800 = vpop.xlane.xlu0 %3799
        %3801 = vadd.xlane.f32.xlu0 %v3784
        %v3802 = vpop.xlane.xlu0 %3801
        %v3803 = vmul.f32 %v3788, 0.0009765625
        %v3804 = vmul.f32 %v3790, 0.0009765625
        %v3805 = vmul.f32 %v3792, 0.0009765625
        %v3806 = vmul.f32 %v3794, 0.0009765625
        %v3807 = vmul.f32 %v3796, 0.0009765625
        %v3808 = vmul.f32 %v3798, 0.0009765625
        %v3809 = vmul.f32 %v3800, 0.0009765625
        %v3810 = vmul.f32 %v3802, 0.0009765625
        %v3811 = vadd.f32 %v3803, 1e-05
        %v3812 = vadd.f32 %v3804, 1e-05
        %v3813 = vadd.f32 %v3805, 1e-05
        %v3814 = vadd.f32 %v3806, 1e-05
        %v3815 = vadd.f32 %v3807, 1e-05
        %v3816 = vadd.f32 %v3808, 1e-05
        %v3817 = vadd.f32 %v3809, 1e-05
        %v3818 = vadd.f32 %v3810, 1e-05
        %v3819 = vrsqrt.pop %v3811
        %v3820 = vrsqrt.pop %v3812
        %v3821 = vrsqrt.pop %v3813
        %v3822 = vrsqrt.pop %v3814
        %v3823 = vrsqrt.pop %v3815
        %v3824 = vrsqrt.pop %v3816
        %v3825 = vrsqrt.pop %v3817
        %v3826 = vrsqrt.pop %v3818
        %v3827 = vmul.f32 %v3819, %v3521
        %v3828 = vmul.f32 %v3820, %v3522
        %v3829 = vmul.f32 %v3821, %v3523
        %v3830 = vmul.f32 %v3822, %v3524
        %v3831 = vmul.f32 %v3823, %v3525
        %v3832 = vmul.f32 %v3824, %v3526
        %v3833 = vmul.f32 %v3825, %v3527
        %v3834 = vmul.f32 %v3826, %v3528
        %3836 = vset.pattern.permute.xlu0 0
        %3837 = vperm.xlu0 %3836, %v3827
        %v3838 = vpop.permute.xlu0 %3837
        %3841 = vset.pattern.permute.xlu0 0
        %3842 = vperm.xlu0 %3841, %v3828
        %v3843 = vpop.permute.xlu0 %3842
        %3846 = vset.pattern.permute.xlu0 0
        %3847 = vperm.xlu0 %3846, %v3829
        %v3848 = vpop.permute.xlu0 %3847
        %3851 = vset.pattern.permute.xlu0 0
        %3852 = vperm.xlu0 %3851, %v3830
        %v3853 = vpop.permute.xlu0 %3852
        %3856 = vset.pattern.permute.xlu0 0
        %3857 = vperm.xlu0 %3856, %v3831
        %v3858 = vpop.permute.xlu0 %3857
        %3861 = vset.pattern.permute.xlu0 0
        %3862 = vperm.xlu0 %3861, %v3832
        %v3863 = vpop.permute.xlu0 %3862
        %3866 = vset.pattern.permute.xlu0 0
        %3867 = vperm.xlu0 %3866, %v3833
        %v3868 = vpop.permute.xlu0 %3867
        %3871 = vset.pattern.permute.xlu0 0
        %3872 = vperm.xlu0 %3871, %v3834
        %v3873 = vpop.permute.xlu0 %3872
        %v3875 = vmul.f32 %v3666, %v3838
        %v3876 = vmul.f32 %v3667, %v3843
        %v3877 = vmul.f32 %v3668, %v3848
        %v3878 = vmul.f32 %v3669, %v3853
        %v3879 = vmul.f32 %v3670, %v3858
        %v3880 = vmul.f32 %v3671, %v3863
        %v3881 = vmul.f32 %v3672, %v3868
        %v3882 = vmul.f32 %v3673, %v3873
        %3884 = vset.pattern.permute.xlu0 0
        %3885 = vperm.xlu0 %3884, %v3529
        %v3886 = vpop.permute.xlu0 %3885
        %3889 = vset.pattern.permute.xlu0 0
        %3890 = vperm.xlu0 %3889, %v3530
        %v3891 = vpop.permute.xlu0 %3890
        %3894 = vset.pattern.permute.xlu0 0
        %3895 = vperm.xlu0 %3894, %v3531
        %v3896 = vpop.permute.xlu0 %3895
        %3899 = vset.pattern.permute.xlu0 0
        %3900 = vperm.xlu0 %3899, %v3532
        %v3901 = vpop.permute.xlu0 %3900
        %3904 = vset.pattern.permute.xlu0 0
        %3905 = vperm.xlu0 %3904, %v3533
        %v3906 = vpop.permute.xlu0 %3905
        %3909 = vset.pattern.permute.xlu0 0
        %3910 = vperm.xlu0 %3909, %v3534
        %v3911 = vpop.permute.xlu0 %3910
        %3914 = vset.pattern.permute.xlu0 0
        %3915 = vperm.xlu0 %3914, %v3535
        %v3916 = vpop.permute.xlu0 %3915
        %3919 = vset.pattern.permute.xlu0 0
        %3920 = vperm.xlu0 %3919, %v3536
        %v3921 = vpop.permute.xlu0 %3920
        %v3923 = vadd.f32 %v3875, %v3886
        %v3924 = vadd.f32 %v3876, %v3891
        %v3925 = vadd.f32 %v3877, %v3896
        %v3926 = vadd.f32 %v3878, %v3901
        %v3927 = vadd.f32 %v3879, %v3906
        %v3928 = vadd.f32 %v3880, %v3911
        %v3929 = vadd.f32 %v3881, %v3916
        %v3930 = vadd.f32 %v3882, %v3921
        %v3931 = vld [vmem:[%s9] sm:$0xff]
        %v3932 = vld [vmem:[%s9 + $0x8] sm:$0xff]
        %v3933 = vld [vmem:[%s9 + $0x10] sm:$0xff]
        %v3934 = vld [vmem:[%s9 + $0x18] sm:$0xff]
        %v3935 = vld [vmem:[%s9 + $0x20] sm:$0xff]
        %v3936 = vld [vmem:[%s9 + $0x28] sm:$0xff]
        %v3937 = vld [vmem:[%s9 + $0x30] sm:$0xff]
        %v3938 = vld [vmem:[%s9 + $0x38] sm:$0xff]
        %v3939 = vld [vmem:[%s10] sm:$0xff]
        %v3940 = vld [vmem:[%s10 + $0x8] sm:$0xff]
        %v3941 = vld [vmem:[%s10 + $0x10] sm:$0xff]
        %v3942 = vld [vmem:[%s10 + $0x18] sm:$0xff]
        %v3943 = vld [vmem:[%s10 + $0x20] sm:$0xff]
        %v3944 = vld [vmem:[%s10 + $0x28] sm:$0xff]
        %v3945 = vld [vmem:[%s10 + $0x30] sm:$0xff]
        %v3946 = vld [vmem:[%s10 + $0x38] sm:$0xff]
        %3948 = vset.pattern.permute.xlu0 0
        %3949 = vperm.xlu0 %3948, %v3939
        %v3950 = vpop.permute.xlu0 %3949
        %3953 = vset.pattern.permute.xlu0 0
        %3954 = vperm.xlu0 %3953, %v3940
        %v3955 = vpop.permute.xlu0 %3954
        %3958 = vset.pattern.permute.xlu0 0
        %3959 = vperm.xlu0 %3958, %v3941
        %v3960 = vpop.permute.xlu0 %3959
        %3963 = vset.pattern.permute.xlu0 0
        %3964 = vperm.xlu0 %3963, %v3942
        %v3965 = vpop.permute.xlu0 %3964
        %3968 = vset.pattern.permute.xlu0 0
        %3969 = vperm.xlu0 %3968, %v3943
        %v3970 = vpop.permute.xlu0 %3969
        %3973 = vset.pattern.permute.xlu0 0
        %3974 = vperm.xlu0 %3973, %v3944
        %v3975 = vpop.permute.xlu0 %3974
        %3978 = vset.pattern.permute.xlu0 0
        %3979 = vperm.xlu0 %3978, %v3945
        %v3980 = vpop.permute.xlu0 %3979
        %3983 = vset.pattern.permute.xlu0 0
        %3984 = vperm.xlu0 %3983, %v3946
        %v3985 = vpop.permute.xlu0 %3984
        %v3988 = vsel %vm733, %v3931, 0
        %v3991 = vsel %vm733, %v3932, 0
        %v3994 = vsel %vm733, %v3933, 0
        %v3997 = vsel %vm733, %v3934, 0
        %v4000 = vsel %vm733, %v3935, 0
        %v4003 = vsel %vm733, %v3936, 0
        %v4006 = vsel %vm733, %v3937, 0
        %v4009 = vsel %vm733, %v3938, 0
        %4011 = vmatprep.subr.mxu0 0.0
        %4012 = vmatpush1.msra.mxu0 %v493
        %4013 = vmatprep.subr.mxu0 0.0
        %4014 = vmatpush1.msra.mxu0 %v494
        %4015 = vmatprep.subr.mxu0 0.0
        %4016 = vmatpush1.msra.mxu0 %v495
        %4017 = vmatprep.subr.mxu0 0.0
        %4018 = vmatpush1.msra.mxu0 %v496
        %4019 = vmatprep.subr.mxu0 0.0
        %4020 = vmatpush1.msra.mxu0 0.0
        %4021 = vmatprep.subr.mxu0 0.0
        %4022 = vmatpush1.msra.mxu0 0.0
        %4023 = vmatprep.subr.mxu0 0.0
        %4024 = vmatpush1.msra.mxu0 0.0
        %4025 = vmatprep.subr.mxu0 0.0
        %4026 = vmatpush1.msra.mxu0 0.0
        %4027 = vmatprep.subr.mxu0 0.0
        %4028 = vmatpush1.msra.mxu0 0.0
        %4029 = vmatprep.subr.mxu0 0.0
        %4030 = vmatpush1.msra.mxu0 0.0
        %4031 = vmatprep.subr.mxu0 0.0
        %4032 = vmatpush1.msra.mxu0 0.0
        %4033 = vmatprep.subr.mxu0 0.0
        %4034 = vmatpush1.msra.mxu0 0.0
        %4035 = vmatprep.subr.mxu0 0.0
        %4036 = vmatpush1.msra.mxu0 0.0
        %4037 = vmatprep.subr.mxu0 0.0
        %4038 = vmatpush1.msra.mxu0 0.0
        %4039 = vmatprep.subr.mxu0 0.0
        %4040 = vmatpush1.msra.mxu0 0.0
        %4041 = vmatprep.subr.mxu0 0.0
        %4042 = vmatpush1.msra.mxu0 0.0
        %4043 = vmatprep.subr.mxu0 0.0
        %4044 = vmatpush1.msra.mxu0 0.0
        %4045 = vmatprep.subr.mxu0 0.0
        %4046 = vmatpush1.msra.mxu0 0.0
        %4047 = vmatprep.subr.mxu0 0.0
        %4048 = vmatpush1.msra.mxu0 0.0
        %4049 = vmatprep.subr.mxu0 0.0
        %4050 = vmatpush1.msra.mxu0 0.0
        %4051 = vmatprep.subr.mxu0 0.0
        %4052 = vmatpush1.msra.mxu0 0.0
        %4053 = vmatprep.subr.mxu0 0.0
        %4054 = vmatpush1.msra.mxu0 0.0
        %4055 = vmatprep.subr.mxu0 0.0
        %4056 = vmatpush1.msra.mxu0 0.0
        %4057 = vmatprep.subr.mxu0 0.0
        %4058 = vmatpush1.msra.mxu0 0.0
        %4059 = vmatprep.subr.mxu0 0.0
        %4060 = vmatpush1.msra.mxu0 0.0
        %4061 = vmatprep.subr.mxu0 0.0
        %4062 = vmatpush1.msra.mxu0 0.0
        %4063 = vmatprep.subr.mxu0 0.0
        %4064 = vmatpush1.msra.mxu0 0.0
        %4065 = vmatprep.subr.mxu0 0.0
        %4066 = vmatpush1.msra.mxu0 0.0
        %4067 = vmatprep.subr.mxu0 0.0
        %4068 = vmatpush1.msra.mxu0 0.0
        %4069 = vmatprep.subr.mxu0 0.0
        %4070 = vmatpush1.msra.mxu0 0.0
        %4071 = vmatprep.subr.mxu0 0.0
        %4072 = vmatpush1.msra.mxu0 0.0
        %4073 = vmatprep.subr.mxu0 0.0
        %4074 = vmatpush1.msra.mxu0 0.0
        %4075 = vmatprep.mubr.f32.mxu0 0.0
        %4076 = vmatmul.mubr.f32.gmra.mrb[0].mxu0 %v3988
        %v4077 = vpop.f32.mrb[0].mxu0
        %v4078 = vadd.f32 %v3950, %v4077
        %v4079 = vpop.f32.mrb[0].mxu0
        %4080 = vmatprep.mubr.f32.mxu0 0.0
        %4081 = vmatmul.mubr.f32.gmra.mrb[0].mxu0 %v3991
        %v4082 = vpop.f32.mrb[0].mxu0
        %v4083 = vadd.f32 %v3955, %v4082
        %v4084 = vpop.f32.mrb[0].mxu0
        %4085 = vmatprep.mubr.f32.mxu0 0.0
        %4086 = vmatmul.mubr.f32.gmra.mrb[0].mxu0 %v3994
        %v4087 = vpop.f32.mrb[0].mxu0
        %v4088 = vadd.f32 %v3960, %v4087
        %v4089 = vpop.f32.mrb[0].mxu0
        %4090 = vmatprep.mubr.f32.mxu0 0.0
        %4091 = vmatmul.mubr.f32.gmra.mrb[0].mxu0 %v3997
        %v4092 = vpop.f32.mrb[0].mxu0
        %v4093 = vadd.f32 %v3965, %v4092
        %v4094 = vpop.f32.mrb[0].mxu0
        %4095 = vmatprep.mubr.f32.mxu0 0.0
        %4096 = vmatmul.mubr.f32.gmra.mrb[0].mxu0 %v4000
        %v4097 = vpop.f32.mrb[0].mxu0
        %v4098 = vadd.f32 %v3970, %v4097
        %v4099 = vpop.f32.mrb[0].mxu0
        %4100 = vmatprep.mubr.f32.mxu0 0.0
        %4101 = vmatmul.mubr.f32.gmra.mrb[0].mxu0 %v4003
        %v4102 = vpop.f32.mrb[0].mxu0
        %v4103 = vadd.f32 %v3975, %v4102
        %v4104 = vpop.f32.mrb[0].mxu0
        %4105 = vmatprep.mubr.f32.mxu0 0.0
        %4106 = vmatmul.mubr.f32.gmra.mrb[0].mxu0 %v4006
        %v4107 = vpop.f32.mrb[0].mxu0
        %v4108 = vadd.f32 %v3980, %v4107
        %v4109 = vpop.f32.mrb[0].mxu0
        %4110 = vmatprep.mubr.f32.mxu0 0.0
        %4111 = vmatmul.mubr.f32.gmra.mrb[0].mxu0 %v4009
        %v4112 = vpop.f32.mrb[0].mxu0
        %v4113 = vadd.f32 %v3985, %v4112
        %v4114 = vpop.f32.mrb[0].mxu0
        %4115 = vdwg.mxu0
        %v4116 = vld [vmem:[%s11] sm:$0xff]
        %v4117 = vld [vmem:[%s11 + $0x8] sm:$0xff]
        %v4118 = vld [vmem:[%s11 + $0x10] sm:$0xff]
        %v4119 = vld [vmem:[%s11 + $0x18] sm:$0xff]
        %v4120 = vld [vmem:[%s11 + $0x20] sm:$0xff]
        %v4121 = vld [vmem:[%s11 + $0x28] sm:$0xff]
        %v4122 = vld [vmem:[%s11 + $0x30] sm:$0xff]
        %v4123 = vld [vmem:[%s11 + $0x38] sm:$0xff]
        %v4124 = vld [vmem:[%s12] sm:$0xff]
        %v4125 = vld [vmem:[%s12 + $0x8] sm:$0xff]
        %v4126 = vld [vmem:[%s12 + $0x10] sm:$0xff]
        %v4127 = vld [vmem:[%s12 + $0x18] sm:$0xff]
        %v4128 = vld [vmem:[%s12 + $0x20] sm:$0xff]
        %v4129 = vld [vmem:[%s12 + $0x28] sm:$0xff]
        %v4130 = vld [vmem:[%s12 + $0x30] sm:$0xff]
        %v4131 = vld [vmem:[%s12 + $0x38] sm:$0xff]
        %4132 = vmatprep.subr.mxu0 0.0
        %4133 = vmatpush1.msra.mxu0 %v4078
        %4134 = vmatprep.subr.mxu0 0.0
        %4135 = vmatpush1.msra.mxu0 %v4083
        %4136 = vmatprep.subr.mxu0 0.0
        %4137 = vmatpush1.msra.mxu0 %v4088
        %4138 = vmatprep.subr.mxu0 0.0
        %4139 = vmatpush1.msra.mxu0 %v4093
        %4140 = vmatprep.subr.mxu0 0.0
        %4141 = vmatpush1.msra.mxu0 %v4098
        %4142 = vmatprep.subr.mxu0 0.0
        %4143 = vmatpush1.msra.mxu0 %v4103
        %4144 = vmatprep.subr.mxu0 0.0
        %4145 = vmatpush1.msra.mxu0 %v4108
        %4146 = vmatprep.subr.mxu0 0.0
        %4147 = vmatpush1.msra.mxu0 %v4113
        %4148 = vmatprep.subr.mxu0 0.0
        %4149 = vmatpush1.msra.mxu0 0.0
        %4150 = vmatprep.subr.mxu0 0.0
        %4151 = vmatpush1.msra.mxu0 0.0
        %4152 = vmatprep.subr.mxu0 0.0
        %4153 = vmatpush1.msra.mxu0 0.0
        %4154 = vmatprep.subr.mxu0 0.0
        %4155 = vmatpush1.msra.mxu0 0.0
        %4156 = vmatprep.subr.mxu0 0.0
        %4157 = vmatpush1.msra.mxu0 0.0
        %4158 = vmatprep.subr.mxu0 0.0
        %4159 = vmatpush1.msra.mxu0 0.0
        %4160 = vmatprep.subr.mxu0 0.0
        %4161 = vmatpush1.msra.mxu0 0.0
        %4162 = vmatprep.subr.mxu0 0.0
        %4163 = vmatpush1.msra.mxu0 0.0
        %4164 = vmatprep.subr.mxu0 0.0
        %4165 = vmatpush1.msra.mxu0 0.0
        %4166 = vmatprep.subr.mxu0 0.0
        %4167 = vmatpush1.msra.mxu0 0.0
        %4168 = vmatprep.subr.mxu0 0.0
        %4169 = vmatpush1.msra.mxu0 0.0
        %4170 = vmatprep.subr.mxu0 0.0
        %4171 = vmatpush1.msra.mxu0 0.0
        %4172 = vmatprep.subr.mxu0 0.0
        %4173 = vmatpush1.msra.mxu0 0.0
        %4174 = vmatprep.subr.mxu0 0.0
        %4175 = vmatpush1.msra.mxu0 0.0
        %4176 = vmatprep.subr.mxu0 0.0
        %4177 = vmatpush1.msra.mxu0 0.0
        %4178 = vmatprep.subr.mxu0 0.0
        %4179 = vmatpush1.msra.mxu0 0.0
        %4180 = vmatprep.subr.mxu0 0.0
        %4181 = vmatpush1.msra.mxu0 0.0
        %4182 = vmatprep.subr.mxu0 0.0
        %4183 = vmatpush1.msra.mxu0 0.0
        %4184 = vmatprep.subr.mxu0 0.0
        %4185 = vmatpush1.msra.mxu0 0.0
        %4186 = vmatprep.subr.mxu0 0.0
        %4187 = vmatpush1.msra.mxu0 0.0
        %4188 = vmatprep.subr.mxu0 0.0
        %4189 = vmatpush1.msra.mxu0 0.0
        %4190 = vmatprep.subr.mxu0 0.0
        %4191 = vmatpush1.msra.mxu0 0.0
        %4192 = vmatprep.subr.mxu0 0.0
        %4193 = vmatpush1.msra.mxu0 0.0
        %4194 = vmatprep.subr.mxu0 0.0
        %4195 = vmatpush1.msra.mxu0 0.0
        %4196 = vmatprep.mubr.f32.mxu0 0.0
        %4197 = vmatmul.mubr.f32.gmra.mrb[0].mxu0 %v1802
        %v4198 = vpop.f32.mrb[0].mxu0
        %v4199 = vadd.f32 0.0, %v4198
        %v4200 = vpop.f32.mrb[0].mxu0
        %4201 = vmatprep.mubr.f32.mxu0 0.0
        %4202 = vmatmul.mubr.f32.gmra.mrb[0].mxu0 %v1805
        %v4203 = vpop.f32.mrb[0].mxu0
        %v4204 = vadd.f32 0.0, %v4203
        %v4205 = vpop.f32.mrb[0].mxu0
        %4206 = vmatprep.mubr.f32.mxu0 0.0
        %4207 = vmatmul.mubr.f32.gmra.mrb[0].mxu0 %v1808
        %v4208 = vpop.f32.mrb[0].mxu0
        %v4209 = vadd.f32 0.0, %v4208
        %v4210 = vpop.f32.mrb[0].mxu0
        %4211 = vmatprep.mubr.f32.mxu0 0.0
        %4212 = vmatmul.mubr.f32.gmra.mrb[0].mxu0 %v1811
        %v4213 = vpop.f32.mrb[0].mxu0
        %v4214 = vadd.f32 0.0, %v4213
        %v4215 = vpop.f32.mrb[0].mxu0
        %4216 = vmatprep.mubr.f32.mxu0 0.0
        %4217 = vmatmul.mubr.f32.gmra.mrb[0].mxu0 %v1814
        %v4218 = vpop.f32.mrb[0].mxu0
        %v4219 = vadd.f32 0.0, %v4218
        %v4220 = vpop.f32.mrb[0].mxu0
        %4221 = vmatprep.mubr.f32.mxu0 0.0
        %4222 = vmatmul.mubr.f32.gmra.mrb[0].mxu0 %v1817
        %v4223 = vpop.f32.mrb[0].mxu0
        %v4224 = vadd.f32 0.0, %v4223
        %v4225 = vpop.f32.mrb[0].mxu0
        %4226 = vmatprep.mubr.f32.mxu0 0.0
        %4227 = vmatmul.mubr.f32.gmra.mrb[0].mxu0 %v1820
        %v4228 = vpop.f32.mrb[0].mxu0
        %v4229 = vadd.f32 0.0, %v4228
        %v4230 = vpop.f32.mrb[0].mxu0
        %4231 = vmatprep.mubr.f32.mxu0 0.0
        %4232 = vmatmul.mubr.f32.gmra.mrb[0].mxu0 %v1823
        %v4233 = vpop.f32.mrb[0].mxu0
        %v4234 = vadd.f32 0.0, %v4233
        %v4235 = vpop.f32.mrb[0].mxu0
        %4236 = vdwg.mxu0
        %4237 = vadd.xlane.f32.xlu0 %v4199
        %v4238 = vpop.xlane.xlu0 %4237
        %4239 = vadd.xlane.f32.xlu0 %v4204
        %v4240 = vpop.xlane.xlu0 %4239
        %4241 = vadd.xlane.f32.xlu0 %v4209
        %v4242 = vpop.xlane.xlu0 %4241
        %4243 = vadd.xlane.f32.xlu0 %v4214
        %v4244 = vpop.xlane.xlu0 %4243
        %4245 = vadd.xlane.f32.xlu0 %v4219
        %v4246 = vpop.xlane.xlu0 %4245
        %4247 = vadd.xlane.f32.xlu0 %v4224
        %v4248 = vpop.xlane.xlu0 %4247
        %4249 = vadd.xlane.f32.xlu0 %v4229
        %v4250 = vpop.xlane.xlu0 %4249
        %4251 = vadd.xlane.f32.xlu0 %v4234
        %v4252 = vpop.xlane.xlu0 %4251
        %v4253 = vmul.f32 %v4238, 0.0009765625
        %v4254 = vmul.f32 %v4240, 0.0009765625
        %v4255 = vmul.f32 %v4242, 0.0009765625
        %v4256 = vmul.f32 %v4244, 0.0009765625
        %v4257 = vmul.f32 %v4246, 0.0009765625
        %v4258 = vmul.f32 %v4248, 0.0009765625
        %v4259 = vmul.f32 %v4250, 0.0009765625
        %v4260 = vmul.f32 %v4252, 0.0009765625
        %v4261 = vsub.f32 %v4078, %v4253
        %v4262 = vsub.f32 %v4083, %v4254
        %v4263 = vsub.f32 %v4088, %v4255
        %v4264 = vsub.f32 %v4093, %v4256
        %v4265 = vsub.f32 %v4098, %v4257
        %v4266 = vsub.f32 %v4103, %v4258
        %v4267 = vsub.f32 %v4108, %v4259
        %v4268 = vsub.f32 %v4113, %v4260
        %v4269 = vmul.f32 %v4261, %v4261
        %v4270 = vmul.f32 %v4262, %v4262
        %v4271 = vmul.f32 %v4263, %v4263
        %v4272 = vmul.f32 %v4264, %v4264
        %v4273 = vmul.f32 %v4265, %v4265
        %v4274 = vmul.f32 %v4266, %v4266
        %v4275 = vmul.f32 %v4267, %v4267
        %v4276 = vmul.f32 %v4268, %v4268
        %4277 = vmatprep.subr.mxu0 0.0
        %4278 = vmatpush1.msra.mxu0 %v4269
        %4279 = vmatprep.subr.mxu0 0.0
        %4280 = vmatpush1.msra.mxu0 %v4270
        %4281 = vmatprep.subr.mxu0 0.0
        %4282 = vmatpush1.msra.mxu0 %v4271
        %4283 = vmatprep.subr.mxu0 0.0
        %4284 = vmatpush1.msra.mxu0 %v4272
        %4285 = vmatprep.subr.mxu0 0.0
        %4286 = vmatpush1.msra.mxu0 %v4273
        %4287 = vmatprep.subr.mxu0 0.0
        %4288 = vmatpush1.msra.mxu0 %v4274
        %4289 = vmatprep.subr.mxu0 0.0
        %4290 = vmatpush1.msra.mxu0 %v4275
        %4291 = vmatprep.subr.mxu0 0.0
        %4292 = vmatpush1.msra.mxu0 %v4276
        %4293 = vmatprep.subr.mxu0 0.0
        %4294 = vmatpush1.msra.mxu0 0.0
        %4295 = vmatprep.subr.mxu0 0.0
        %4296 = vmatpush1.msra.mxu0 0.0
        %4297 = vmatprep.subr.mxu0 0.0
        %4298 = vmatpush1.msra.mxu0 0.0
        %4299 = vmatprep.subr.mxu0 0.0
        %4300 = vmatpush1.msra.mxu0 0.0
        %4301 = vmatprep.subr.mxu0 0.0
        %4302 = vmatpush1.msra.mxu0 0.0
        %4303 = vmatprep.subr.mxu0 0.0
        %4304 = vmatpush1.msra.mxu0 0.0
        %4305 = vmatprep.subr.mxu0 0.0
        %4306 = vmatpush1.msra.mxu0 0.0
        %4307 = vmatprep.subr.mxu0 0.0
        %4308 = vmatpush1.msra.mxu0 0.0
        %4309 = vmatprep.subr.mxu0 0.0
        %4310 = vmatpush1.msra.mxu0 0.0
        %4311 = vmatprep.subr.mxu0 0.0
        %4312 = vmatpush1.msra.mxu0 0.0
        %4313 = vmatprep.subr.mxu0 0.0
        %4314 = vmatpush1.msra.mxu0 0.0
        %4315 = vmatprep.subr.mxu0 0.0
        %4316 = vmatpush1.msra.mxu0 0.0
        %4317 = vmatprep.subr.mxu0 0.0
        %4318 = vmatpush1.msra.mxu0 0.0
        %4319 = vmatprep.subr.mxu0 0.0
        %4320 = vmatpush1.msra.mxu0 0.0
        %4321 = vmatprep.subr.mxu0 0.0
        %4322 = vmatpush1.msra.mxu0 0.0
        %4323 = vmatprep.subr.mxu0 0.0
        %4324 = vmatpush1.msra.mxu0 0.0
        %4325 = vmatprep.subr.mxu0 0.0
        %4326 = vmatpush1.msra.mxu0 0.0
        %4327 = vmatprep.subr.mxu0 0.0
        %4328 = vmatpush1.msra.mxu0 0.0
        %4329 = vmatprep.subr.mxu0 0.0
        %4330 = vmatpush1.msra.mxu0 0.0
        %4331 = vmatprep.subr.mxu0 0.0
        %4332 = vmatpush1.msra.mxu0 0.0
        %4333 = vmatprep.subr.mxu0 0.0
        %4334 = vmatpush1.msra.mxu0 0.0
        %4335 = vmatprep.subr.mxu0 0.0
        %4336 = vmatpush1.msra.mxu0 0.0
        %4337 = vmatprep.subr.mxu0 0.0
        %4338 = vmatpush1.msra.mxu0 0.0
        %4339 = vmatprep.subr.mxu0 0.0
        %4340 = vmatpush1.msra.mxu0 0.0
        %4341 = vmatprep.mubr.f32.mxu0 0.0
        %4342 = vmatmul.mubr.f32.gmra.mrb[0].mxu0 %v1802
        %v4343 = vpop.f32.mrb[0].mxu0
        %v4344 = vadd.f32 0.0, %v4343
        %v4345 = vpop.f32.mrb[0].mxu0
        %4346 = vmatprep.mubr.f32.mxu0 0.0
        %4347 = vmatmul.mubr.f32.gmra.mrb[0].mxu0 %v1805
        %v4348 = vpop.f32.mrb[0].mxu0
        %v4349 = vadd.f32 0.0, %v4348
        %v4350 = vpop.f32.mrb[0].mxu0
        %4351 = vmatprep.mubr.f32.mxu0 0.0
        %4352 = vmatmul.mubr.f32.gmra.mrb[0].mxu0 %v1808
        %v4353 = vpop.f32.mrb[0].mxu0
        %v4354 = vadd.f32 0.0, %v4353
        %v4355 = vpop.f32.mrb[0].mxu0
        %4356 = vmatprep.mubr.f32.mxu0 0.0
        %4357 = vmatmul.mubr.f32.gmra.mrb[0].mxu0 %v1811
        %v4358 = vpop.f32.mrb[0].mxu0
        %v4359 = vadd.f32 0.0, %v4358
        %v4360 = vpop.f32.mrb[0].mxu0
        %4361 = vmatprep.mubr.f32.mxu0 0.0
        %4362 = vmatmul.mubr.f32.gmra.mrb[0].mxu0 %v1814
        %v4363 = vpop.f32.mrb[0].mxu0
        %v4364 = vadd.f32 0.0, %v4363
        %v4365 = vpop.f32.mrb[0].mxu0
        %4366 = vmatprep.mubr.f32.mxu0 0.0
        %4367 = vmatmul.mubr.f32.gmra.mrb[0].mxu0 %v1817
        %v4368 = vpop.f32.mrb[0].mxu0
        %v4369 = vadd.f32 0.0, %v4368
        %v4370 = vpop.f32.mrb[0].mxu0
        %4371 = vmatprep.mubr.f32.mxu0 0.0
        %4372 = vmatmul.mubr.f32.gmra.mrb[0].mxu0 %v1820
        %v4373 = vpop.f32.mrb[0].mxu0
        %v4374 = vadd.f32 0.0, %v4373
        %v4375 = vpop.f32.mrb[0].mxu0
        %4376 = vmatprep.mubr.f32.mxu0 0.0
        %4377 = vmatmul.mubr.f32.gmra.mrb[0].mxu0 %v1823
        %v4378 = vpop.f32.mrb[0].mxu0
        %v4379 = vadd.f32 0.0, %v4378
        %v4380 = vpop.f32.mrb[0].mxu0
        %4381 = vdwg.mxu0
        %4382 = vadd.xlane.f32.xlu0 %v4344
        %v4383 = vpop.xlane.xlu0 %4382
        %4384 = vadd.xlane.f32.xlu0 %v4349
        %v4385 = vpop.xlane.xlu0 %4384
        %4386 = vadd.xlane.f32.xlu0 %v4354
        %v4387 = vpop.xlane.xlu0 %4386
        %4388 = vadd.xlane.f32.xlu0 %v4359
        %v4389 = vpop.xlane.xlu0 %4388
        %4390 = vadd.xlane.f32.xlu0 %v4364
        %v4391 = vpop.xlane.xlu0 %4390
        %4392 = vadd.xlane.f32.xlu0 %v4369
        %v4393 = vpop.xlane.xlu0 %4392
        %4394 = vadd.xlane.f32.xlu0 %v4374
        %v4395 = vpop.xlane.xlu0 %4394
        %4396 = vadd.xlane.f32.xlu0 %v4379
        %v4397 = vpop.xlane.xlu0 %4396
        %v4398 = vmul.f32 %v4383, 0.0009765625
        %v4399 = vmul.f32 %v4385, 0.0009765625
        %v4400 = vmul.f32 %v4387, 0.0009765625
        %v4401 = vmul.f32 %v4389, 0.0009765625
        %v4402 = vmul.f32 %v4391, 0.0009765625
        %v4403 = vmul.f32 %v4393, 0.0009765625
        %v4404 = vmul.f32 %v4395, 0.0009765625
        %v4405 = vmul.f32 %v4397, 0.0009765625
        %v4406 = vadd.f32 %v4398, 1e-05
        %v4407 = vadd.f32 %v4399, 1e-05
        %v4408 = vadd.f32 %v4400, 1e-05
        %v4409 = vadd.f32 %v4401, 1e-05
        %v4410 = vadd.f32 %v4402, 1e-05
        %v4411 = vadd.f32 %v4403, 1e-05
        %v4412 = vadd.f32 %v4404, 1e-05
        %v4413 = vadd.f32 %v4405, 1e-05
        %v4414 = vrsqrt.pop %v4406
        %v4415 = vrsqrt.pop %v4407
        %v4416 = vrsqrt.pop %v4408
        %v4417 = vrsqrt.pop %v4409
        %v4418 = vrsqrt.pop %v4410
        %v4419 = vrsqrt.pop %v4411
        %v4420 = vrsqrt.pop %v4412
        %v4421 = vrsqrt.pop %v4413
        %v4422 = vmul.f32 %v4414, %v4116
        %v4423 = vmul.f32 %v4415, %v4117
        %v4424 = vmul.f32 %v4416, %v4118
        %v4425 = vmul.f32 %v4417, %v4119
        %v4426 = vmul.f32 %v4418, %v4120
        %v4427 = vmul.f32 %v4419, %v4121
        %v4428 = vmul.f32 %v4420, %v4122
        %v4429 = vmul.f32 %v4421, %v4123
        %4431 = vset.pattern.permute.xlu0 0
        %4432 = vperm.xlu0 %4431, %v4422
        %v4433 = vpop.permute.xlu0 %4432
        %4436 = vset.pattern.permute.xlu0 0
        %4437 = vperm.xlu0 %4436, %v4423
        %v4438 = vpop.permute.xlu0 %4437
        %4441 = vset.pattern.permute.xlu0 0
        %4442 = vperm.xlu0 %4441, %v4424
        %v4443 = vpop.permute.xlu0 %4442
        %4446 = vset.pattern.permute.xlu0 0
        %4447 = vperm.xlu0 %4446, %v4425
        %v4448 = vpop.permute.xlu0 %4447
        %4451 = vset.pattern.permute.xlu0 0
        %4452 = vperm.xlu0 %4451, %v4426
        %v4453 = vpop.permute.xlu0 %4452
        %4456 = vset.pattern.permute.xlu0 0
        %4457 = vperm.xlu0 %4456, %v4427
        %v4458 = vpop.permute.xlu0 %4457
        %4461 = vset.pattern.permute.xlu0 0
        %4462 = vperm.xlu0 %4461, %v4428
        %v4463 = vpop.permute.xlu0 %4462
        %4466 = vset.pattern.permute.xlu0 0
        %4467 = vperm.xlu0 %4466, %v4429
        %v4468 = vpop.permute.xlu0 %4467
        %v4470 = vmul.f32 %v4261, %v4433
        %v4471 = vmul.f32 %v4262, %v4438
        %v4472 = vmul.f32 %v4263, %v4443
        %v4473 = vmul.f32 %v4264, %v4448
        %v4474 = vmul.f32 %v4265, %v4453
        %v4475 = vmul.f32 %v4266, %v4458
        %v4476 = vmul.f32 %v4267, %v4463
        %v4477 = vmul.f32 %v4268, %v4468
        %4479 = vset.pattern.permute.xlu0 0
        %4480 = vperm.xlu0 %4479, %v4124
        %v4481 = vpop.permute.xlu0 %4480
        %4484 = vset.pattern.permute.xlu0 0
        %4485 = vperm.xlu0 %4484, %v4125
        %v4486 = vpop.permute.xlu0 %4485
        %4489 = vset.pattern.permute.xlu0 0
        %4490 = vperm.xlu0 %4489, %v4126
        %v4491 = vpop.permute.xlu0 %4490
        %4494 = vset.pattern.permute.xlu0 0
        %4495 = vperm.xlu0 %4494, %v4127
        %v4496 = vpop.permute.xlu0 %4495
        %4499 = vset.pattern.permute.xlu0 0
        %4500 = vperm.xlu0 %4499, %v4128
        %v4501 = vpop.permute.xlu0 %4500
        %4504 = vset.pattern.permute.xlu0 0
        %4505 = vperm.xlu0 %4504, %v4129
        %v4506 = vpop.permute.xlu0 %4505
        %4509 = vset.pattern.permute.xlu0 0
        %4510 = vperm.xlu0 %4509, %v4130
        %v4511 = vpop.permute.xlu0 %4510
        %4514 = vset.pattern.permute.xlu0 0
        %4515 = vperm.xlu0 %4514, %v4131
        %v4516 = vpop.permute.xlu0 %4515
        %v4518 = vadd.f32 %v4470, %v4481
        %v4519 = vadd.f32 %v4471, %v4486
        %v4520 = vadd.f32 %v4472, %v4491
        %v4521 = vadd.f32 %v4473, %v4496
        %v4522 = vadd.f32 %v4474, %v4501
        %v4523 = vadd.f32 %v4475, %v4506
        %v4524 = vadd.f32 %v4476, %v4511
        %v4525 = vadd.f32 %v4477, %v4516
        %v4526 = vadd.f32 %v3923, %v4518
        %v4527 = vadd.f32 %v3924, %v4519
        %v4528 = vadd.f32 %v3925, %v4520
        %v4529 = vadd.f32 %v3926, %v4521
        %v4530 = vadd.f32 %v3927, %v4522
        %v4531 = vadd.f32 %v3928, %v4523
        %v4532 = vadd.f32 %v3929, %v4524
        %v4533 = vadd.f32 %v3930, %v4525
        %v4534 = vmax.f32 %v4526, 0.0
        %v4535 = vmax.f32 %v4527, 0.0
        %v4536 = vmax.f32 %v4528, 0.0
        %v4537 = vmax.f32 %v4529, 0.0
        %v4538 = vmax.f32 %v4530, 0.0
        %v4539 = vmax.f32 %v4531, 0.0
        %v4540 = vmax.f32 %v4532, 0.0
        %v4541 = vmax.f32 %v4533, 0.0
        %4542 = vst [vmem:[%s487] sm:$0xff] %v4534
        %4543 = vst [vmem:[%s487 + $0x8] sm:$0xff] %v4535
        %4544 = vst [vmem:[%s487 + $0x10] sm:$0xff] %v4536
        %4545 = vst [vmem:[%s487 + $0x18] sm:$0xff] %v4537
        %4546 = vst [vmem:[%s487 + $0x20] sm:$0xff] %v4538
        %4547 = vst [vmem:[%s487 + $0x28] sm:$0xff] %v4539
        %4548 = vst [vmem:[%s487 + $0x30] sm:$0xff] %v4540
        %4549 = vst [vmem:[%s487 + $0x38] sm:$0xff] %v4541
        %s4550 = sand.u32 %s357, 1
        %s4551 = scalar_lea.sflag [#allocation3], %s4550
        %s4552 = sand.u32 %s357, 1
        %s4553 = smul.addr %s4552, 64
        %s4554 = scalar_lea.vmem [#allocation2], %s4553
        // Predicated region
        $region81: #{res_block_forward.1} parent=79 // pred_check
          %p4555 = pneg %p367
        $region82: #{res_block_forward.1} parent=79 // pred_check_branch
          %4557 = sbr.rel (%p4555) target = $region84
        $region83: #{res_block_forward.1} parent=79 // pred_region
          %s4559 = ssub.s32 1024, 1024
          %4560 = vsyncadd %s4551, %s4559
          %s4561 = smul.addr %s29, 8
          %s4562 = smul.addr %s4561, 128
          %s4563 = scalar_lea.hbm %s15, %s4562
          %s4564 = sshll.u32 %s4554, 4
          %s4565 = int_to_ptr.vmem [resolvable:$true] %s4564
          %4570 = dma.vmem_to_hbm [thread:$0]  %s4565, 1024, %s4563, %s4551, 128, 128, 8
        $region84: #{res_block_forward.1} parent=79 // pred_fallthru
          _
      $region80: #{res_block_forward.1} parent=5 // pred_fallthru
        _
      %p4571 = scmp.le.s32.totalorder 2, %s24
      // Predicated region
      $region85: #{res_block_forward.1} parent=5 // pred_check
        %p4572 = pneg %p4571
      $region86: #{res_block_forward.1} parent=5 // pred_check_branch
        %4574 = sbr.rel (%p4572) target = $region88
      $region87: #{res_block_forward.1} parent=5 // pred_region
        %s4575 = ssub.s32 %s24, 2
        // Predicated region
        $region89: #{res_block_forward.1} parent=87 // pred_check
          %p4576 = pneg %p373
        $region90: #{res_block_forward.1} parent=87 // pred_check_branch
          %4578 = sbr.rel (%p4576) target = $region92
        $region91: #{res_block_forward.1} parent=87 // pred_region
          %s4579 = sand.u32 %s358, 1
          %s4580 = scalar_lea.sflag [#allocation3], %s4579
          %s4581 = sand.u32 %s358, 1
          %s4582 = smul.addr %s4581, 64
          %s4583 = scalar_lea.vmem [#allocation2], %s4582
          %4584 = dma.done %s4580, 1024
        $region92: #{res_block_forward.1} parent=87 // pred_fallthru
          _
      $region88: #{res_block_forward.1} parent=5 // pred_fallthru
        _
    $region6: #{res_block_forward.1} parent=1 // loop_footer
      %s28 = sadd.s32 1, %s24
    $region7: #{res_block_forward.1} parent=1 // loop_footer_branch
      %23 = sbr.rel target = $region3
    $region8: #{res_block_forward.1} parent=1 // loop_exit
      _
    %4585 = vsyncpa [#allocation3], 1
    %s4586 = scalar_lea.sflag [#allocation3], 1
    %4587 = vsyncpa %s4586, 1

</llo_original>
